<compile_context>
chip_gen: v5e
topology: v5e:2x2
jax: 0.10.0
libtpu: 0.0.40
codegen_flags: <defaults>
</compile_context>

<pallas_src>
import numpy as np
import jax
import jax.numpy as jnp
from jax.experimental import pallas as pl
from jax.experimental.pallas import tpu as pltpu

L = 1.0
_SMALL_INPUT_BYTES = 1 << 20  # below this per tensor, skip the kernel entirely


def temporal_next_kernel(tf_ref, tl_ref, tf_out_ref, tl_out_ref):
    tf = tf_ref[...]
    tf_out_ref[...] = jnp.where(tf >= 0, tf - L, tf + L).astype(tf_out_ref.dtype)
    tl_out_ref[...] = (1.0 - tl_ref[...]).astype(tl_out_ref.dtype)


def _cdiv(a, b):
    return -(-a // b)


def _target_block_bytes():
    """~2 MiB input blocks everywhere; ~4 MiB when VMEM >= 100 MiB (v5e/v6e)."""
    try:
        info = pltpu.get_tpu_info()
        vmem = int(getattr(info, "vmem_capacity_bytes", 64 << 20))
    except Exception:
        vmem = 64 << 20
    return (4 << 20) if vmem >= (100 << 20) else (2 << 20)


def _plan(shape, itemsize, target_block_bytes):
    """Pick a lane-dense 2-D presentation and a row tile.

    Returns (mode, rows, lanes, pad, tile_rows, n_steps).
      mode == "collapse": reshape to (prod(leading), last_dim)        (free reshape)
      mode == "flatten" : flatten + reshape to (rows, wide_lanes)     (+ optional pad)
    """
    n_elem = int(np.prod(shape)) if len(shape) else 1
    last = shape[-1] if len(shape) else 1

    if (len(shape) >= 2 and last % 128 == 0
            and 8 * last * itemsize <= target_block_bytes):
        mode, lanes, pad = "collapse", last, 0
        rows = n_elem // last
    else:
        mode = "flatten"
        lanes = 128
        for cand in (1024, 512, 256, 128):
            if n_elem % cand == 0:
                lanes = cand
                break
        pad = (-n_elem) % lanes
        rows = (n_elem + pad) // lanes

    row_bytes = lanes * itemsize
    tr = max(8, (target_block_bytes // row_bytes) // 8 * 8)
    if tr >= rows:
        tr = rows  # full-extent row block is always legal
    n_steps = _cdiv(rows, tr)

    # Make sure v7x megacore gets >= 2 grid steps whenever the rows can be split.
    if n_steps < 2 and rows > 8:
        half = (rows + 1) // 2
        tr = max(8, _cdiv(half, 8) * 8)
        if tr >= rows:
            tr = rows
        n_steps = _cdiv(rows, tr)

    return mode, rows, lanes, pad, tr, n_steps


def temporal_next(feature, logic, time_feature, time_logic):
    assert time_feature.shape == time_logic.shape
    orig_shape = time_feature.shape
    tf_dt = time_feature.dtype
    tl_dt = time_logic.dtype
    itemsize = max(jnp.dtype(tf_dt).itemsize, jnp.dtype(tl_dt).itemsize)
    n_elem = int(np.prod(orig_shape)) if len(orig_shape) else 1

    # Fast path: tiny tensors — dispatch + DMA setup would dominate, and plain jnp
    # lets XLA fuse these trivial elementwise ops with neighbors.
    if n_elem * itemsize < _SMALL_INPUT_BYTES:
        tf_new = jnp.where(time_feature >= 0, time_feature - L, time_feature + L)
        tl_new = 1.0 - time_logic
        return feature, logic, tf_new, tl_new

    target = _target_block_bytes()
    mode, rows, lanes, pad, tr, n_steps = _plan(orig_shape, itemsize, target)

    if mode == "collapse":
        tf2 = time_feature.reshape(rows, lanes)
        tl2 = time_logic.reshape(rows, lanes)
    else:
        tf_flat = time_feature.reshape(-1)
        tl_flat = time_logic.reshape(-1)
        if pad:
            tf_flat = jnp.pad(tf_flat, (0, pad))
            tl_flat = jnp.pad(tl_flat, (0, pad))
        tf2 = tf_flat.reshape(rows, lanes)
        tl2 = tl_flat.reshape(rows, lanes)

    block_bytes = tr * lanes * itemsize
    # 2 inputs + 2 outputs, double-buffered, + 25% headroom for compiler scratch.
    vmem_limit = min(max(int(8 * block_bytes * 1.25), 8 << 20), 100 << 20)

    spec = pl.BlockSpec((tr, lanes), lambda i: (i, 0))
    cost = pl.CostEstimate(
        flops=5 * rows * lanes,                      # cmp+select+sub+add and 1-x
        transcendentals=0,
        bytes_accessed=4 * rows * lanes * itemsize,  # 2 reads + 2 writes
    )

    tf_out, tl_out = pl.pallas_call(
        temporal_next_kernel,
        grid_spec=pltpu.PrefetchScalarGridSpec(
            num_scalar_prefetch=0,
            grid=(n_steps,),
            in_specs=[spec, spec],
            out_specs=[spec, spec],
        ),
        out_shape=[
            jax.ShapeDtypeStruct((rows, lanes), tf_dt),
            jax.ShapeDtypeStruct((rows, lanes), tl_dt),
        ],
        compiler_params=pltpu.CompilerParams(
            dimension_semantics=("parallel",),
            vmem_limit_bytes=vmem_limit,
        ),
        cost_estimate=cost,
    )(tf2, tl2)

    if mode == "collapse":
        tf_new = tf_out.reshape(orig_shape)
        tl_new = tl_out.reshape(orig_shape)
    else:
        tf_new = tf_out.reshape(-1)[:n_elem].reshape(orig_shape)
        tl_new = tl_out.reshape(-1)[:n_elem].reshape(orig_shape)

    return feature, logic, tf_new, tl_new


def reference_forward(feature, logic, time_feature, time_logic):
    """Pure-JAX reference mirroring the torch forward."""
    tf = jnp.where(time_feature >= 0, time_feature - L, time_feature + L)
    tl = 1.0 - time_logic
    return feature, logic, tf, tl


if __name__ == "__main__":
    key = jax.random.PRNGKey(0)
    case_keys = jax.random.split(key, 3)

    def make_inputs(shape, k):
        kf, kl, ktf, ktl = jax.random.split(k, 4)
        return (
            jax.random.normal(kf, shape, jnp.float32),
            jax.random.uniform(kl, shape, jnp.float32),
            jax.random.normal(ktf, shape, jnp.float32),
            jax.random.uniform(ktl, shape, jnp.float32),
        )

    cases = [
        (2, 16, 256),    # tiny          -> jnp fast path
        (4, 512, 512),   # 128-aligned D -> collapse path through the Pallas kernel
        (8, 256, 200),   # D not 128-aligned -> wide-lane flatten path through the kernel
    ]

    for shape, ck in zip(cases, case_keys):
        args = make_inputs(shape, ck)
        outs = jax.block_until_ready(temporal_next(*args))
        refs = reference_forward(*args)
        for o, r in zip(outs, refs):
            np.testing.assert_allclose(np.asarray(o), np.asarray(r), rtol=1e-6, atol=1e-6)

    print("KERNEL_OK")
</pallas_src>

<mosaic_0001>
module attributes {stable_mosaic.version = 11 : i64} {
  func.func @temporal_next_kernel(%arg0: i32, %arg1: memref<1024x512xf32, #tpu.memory_space<vmem>>, %arg2: memref<1024x512xf32, #tpu.memory_space<vmem>>, %arg3: memref<1024x512xf32, #tpu.memory_space<vmem>>, %arg4: memref<1024x512xf32, #tpu.memory_space<vmem>>) attributes {dimension_semantics = [#tpu.dimension_semantics<parallel>], iteration_bounds = array<i64: 2>, scalar_prefetch = 0 : i64, scratch_operands = 0 : i64, tpu.core_type = #tpu.core_type<tc>, window_params = [{transform_indices = @transform_0, window_bounds = array<i64: 1024, 512>}, {transform_indices = @transform_1, window_bounds = array<i64: 1024, 512>}, {transform_indices = @transform_2, window_bounds = array<i64: 1024, 512>}, {transform_indices = @transform_3, window_bounds = array<i64: 1024, 512>}]} {
    %c0 = arith.constant 0 : index
    %c0_0 = arith.constant 0 : index
    %0 = vector.load %arg1[%c0, %c0_0] : memref<1024x512xf32, #tpu.memory_space<vmem>>, vector<1024x512xf32>
    %cst = arith.constant 0.000000e+00 : f32
    %1 = vector.broadcast %cst : f32 to vector<1024x512xf32>
    %2 = arith.cmpf oge, %0, %1 : vector<1024x512xf32>
    %cst_1 = arith.constant 1.000000e+00 : f32
    %3 = vector.broadcast %cst_1 : f32 to vector<1024x512xf32>
    %4 = arith.subf %0, %3 : vector<1024x512xf32>
    %cst_2 = arith.constant 1.000000e+00 : f32
    %5 = vector.broadcast %cst_2 : f32 to vector<1024x512xf32>
    %6 = arith.addf %0, %5 : vector<1024x512xf32>
    %7 = arith.select %2, %4, %6 : vector<1024x512xi1>, vector<1024x512xf32>
    %c0_3 = arith.constant 0 : index
    %c0_4 = arith.constant 0 : index
    %8 = vector.load %arg3[%c0_3, %c0_4] : memref<1024x512xf32, #tpu.memory_space<vmem>>, vector<1024x512xf32>
    tpu.vector_store %arg3[%c0_3, %c0_4], %7 {strides = array<i32>} : memref<1024x512xf32, #tpu.memory_space<vmem>>, vector<1024x512xf32>,
    %c0_5 = arith.constant 0 : index
    %c0_6 = arith.constant 0 : index
    %9 = vector.load %arg2[%c0_5, %c0_6] : memref<1024x512xf32, #tpu.memory_space<vmem>>, vector<1024x512xf32>
    %cst_7 = arith.constant 1.000000e+00 : f32
    %10 = vector.broadcast %cst_7 : f32 to vector<1024x512xf32>
    %11 = arith.subf %10, %9 : vector<1024x512xf32>
    %c0_8 = arith.constant 0 : index
    %c0_9 = arith.constant 0 : index
    %12 = vector.load %arg4[%c0_8, %c0_9] : memref<1024x512xf32, #tpu.memory_space<vmem>>, vector<1024x512xf32>
    tpu.vector_store %arg4[%c0_8, %c0_9], %11 {strides = array<i32>} : memref<1024x512xf32, #tpu.memory_space<vmem>>, vector<1024x512xf32>,
    return
  }
  func.func @transform_0(%arg0: i32) -> (i32, i32) {
    %c0_i32 = arith.constant 0 : i32
    %c0_i32_0 = arith.constant 0 : i32
    return %arg0, %c0_i32 : i32, i32
  }
  func.func @transform_1(%arg0: i32) -> (i32, i32) {
    %c0_i32 = arith.constant 0 : i32
    %c0_i32_0 = arith.constant 0 : i32
    return %arg0, %c0_i32 : i32, i32
  }
  func.func @transform_2(%arg0: i32) -> (i32, i32) {
    %c0_i32 = arith.constant 0 : i32
    %c0_i32_0 = arith.constant 0 : i32
    return %arg0, %c0_i32 : i32, i32
  }
  func.func @transform_3(%arg0: i32) -> (i32, i32) {
    %c0_i32 = arith.constant 0 : i32
    %c0_i32_0 = arith.constant 0 : i32
    return %arg0, %c0_i32 : i32, i32
  }
}

</mosaic_0001>

<llo_original>
// kernel: tpu_custom_call.1
$region0: #{tpu_custom_call.1}
  #allocation0 [shape = 'u32[]', space=smem, size = 0x4, offset = 0x4, fixed_abs, tag = 'smem constant byte address 0x4 - core index']
  #allocation1 [shape = 'u32[72,128]{1,0:T(1,128)}', space=vmem, size = 0x9000, scoped, tag = 'internal scratch']
  %s0 = inlined_call_operand.hbm [shape: f32[2048,512], index: 0, kind: input, shape index: {}]
  %s1 = inlined_call_operand.hbm [shape: f32[2048,512], index: 1, kind: input, shape index: {}]
  %s2 = inlined_call_operand.hbm [shape: f32[2048,512], index: 2, kind: output, shape index: {0}]
  %s3 = inlined_call_operand.hbm [shape: f32[2048,512], index: 3, kind: output, shape index: {1}]
  %4 = xla_tuple %s2, %s3
  %s5 = sld [smem:[#allocation0]]
  $region57: #{tpu_custom_call.1} parent=0
    _
  %s7 = ssub.s32 1, %s5
  %s8 = scalar_select 0, %s7, %s5
  $region1: #{tpu_custom_call.1} parent=0
    #allocation2 [shape = 'u8[4194304]{0}', space=vmem, size = 0x400000, scoped, tag = 'input window, operand 0']
    #allocation3 [shape = 's32[2]{0}', space=sflag, size = 0x8, scoped, tag = 'scoped memory for tpu_custom_call.1']
    #allocation4 [shape = 's32[2]{0}', space=sflag, size = 0x8, scoped, tag = 'scoped memory for tpu_custom_call.1']
    #allocation5 [shape = 'u8[4194304]{0}', space=vmem, size = 0x400000, scoped, tag = 'input window, operand 1']
    #allocation6 [shape = 's32[2]{0}', space=sflag, size = 0x8, scoped, tag = 'scoped memory for tpu_custom_call.1']
    #allocation7 [shape = 'u8[4194304]{0}', space=vmem, size = 0x400000, scoped, tag = 'output window, operand 0']
    #allocation8 [shape = 'u8[4194304]{0}', space=vmem, size = 0x400000, scoped, tag = 'output window, operand 1']
    #allocation9 [shape = 's32[2]{0}', space=sflag, size = 0x8, scoped, tag = 'scoped memory for tpu_custom_call.1']
    %9 = vsyncpa [#allocation3], 0
    %s10 = scalar_lea.sflag [#allocation3], 1
    %11 = vsyncpa %s10, 0
    %12 = vsyncpa [#allocation6], 0
    %s13 = scalar_lea.sflag [#allocation6], 1
    %14 = vsyncpa %s13, 0
    %15 = vsyncpa [#allocation4], 0
    %s16 = scalar_lea.sflag [#allocation4], 1
    %17 = vsyncpa %s16, 0
    %18 = vsyncpa [#allocation9], 0
    %s19 = scalar_lea.sflag [#allocation9], 1
    %20 = vsyncpa %s19, 0
    loop: start=0, step=1, limit=4
    $region2: #{tpu_custom_call.1} parent=1 // loop_pre_header
      _
    $region3: #{tpu_custom_call.1} parent=1 // loop_header
      %s22 = sphi 0, %s26
      %p23 = scmp.ge.s32.totalorder %s22, 4
      %s32 = sphi 0, %s34
      %s35 = sphi 0, %s32
      %s36 = sphi 0, %s35
      %s52 = sphi 0, %s36
      %s58 = sphi 0, %s60
      %s61 = sphi 0, %s58
      %s62 = sphi 0, %s61
      %s78 = sphi 0, %s62
      %s84 = sphi 0, %s86
      %s87 = sphi 0, %s84
      %s88 = sphi 0, %s87
      %s104 = sphi 0, %s88
      %s110 = sphi 0, %s112
      %s113 = sphi 0, %s110
      %s114 = sphi 0, %s113
      %s130 = sphi 0, %s114
    $region4: #{tpu_custom_call.1} parent=1 // loop_header_branch
      %25 = sbr.rel (%p23) target = $region8
    $region5: #{tpu_custom_call.1} parent=1 // loop_body
      %s27 = ssub.s32 %s22, 1
      %s28 = ssub.s32 %s22, 2
      %s29 = sadd.s32 %s22, 1
      %s30 = ssub.s32 %s22, %s29
      %p31 = scmp.eq.s32.totalorder %s30, 0
      %s33 = sadd.s32 %s32, 1
      %s34 = scalar_select %p31, %s32, %s33
      %p37 = pneg %p31
      %p38 = scmp.eq.s32.totalorder %s22, 1
      %p39 = por %p37, %p38
      %p40 = scmp.ne.s32.totalorder %s32, %s35
      %p41 = scmp.eq.s32.totalorder %s22, 0
      %p42 = por %p40, %p41
      %p43 = scmp.ne.s32.totalorder %s32, %s35
      %p44 = scmp.eq.s32.totalorder %s27, 1
      %p45 = por %p43, %p44
      %p46 = scmp.ne.s32.totalorder %s35, %s36
      %p47 = scmp.eq.s32.totalorder %s27, 0
      %p48 = por %p46, %p47
      %p49 = scmp.ne.s32.totalorder %s35, %s36
      %p50 = scmp.eq.s32.totalorder %s28, 1
      %p51 = por %p49, %p50
      %p53 = scmp.ne.s32.totalorder %s36, %s52
      %p54 = scmp.eq.s32.totalorder %s28, 0
      %p55 = por %p53, %p54
      %s56 = ssub.s32 %s22, %s29
      %p57 = scmp.eq.s32.totalorder %s56, 0
      %s59 = sadd.s32 %s58, 1
      %s60 = scalar_select %p57, %s58, %s59
      %p63 = pneg %p57
      %p64 = scmp.eq.s32.totalorder %s22, 1
      %p65 = por %p63, %p64
      %p66 = scmp.ne.s32.totalorder %s58, %s61
      %p67 = scmp.eq.s32.totalorder %s22, 0
      %p68 = por %p66, %p67
      %p69 = scmp.ne.s32.totalorder %s58, %s61
      %p70 = scmp.eq.s32.totalorder %s27, 1
      %p71 = por %p69, %p70
      %p72 = scmp.ne.s32.totalorder %s61, %s62
      %p73 = scmp.eq.s32.totalorder %s27, 0
      %p74 = por %p72, %p73
      %p75 = scmp.ne.s32.totalorder %s61, %s62
      %p76 = scmp.eq.s32.totalorder %s28, 1
      %p77 = por %p75, %p76
      %p79 = scmp.ne.s32.totalorder %s62, %s78
      %p80 = scmp.eq.s32.totalorder %s28, 0
      %p81 = por %p79, %p80
      %s82 = ssub.s32 %s22, %s29
      %p83 = scmp.eq.s32.totalorder %s82, 0
      %s85 = sadd.s32 %s84, 1
      %s86 = scalar_select %p83, %s84, %s85
      %p89 = pneg %p83
      %p90 = scmp.eq.s32.totalorder %s22, 1
      %p91 = por %p89, %p90
      %p92 = scmp.ne.s32.totalorder %s84, %s87
      %p93 = scmp.eq.s32.totalorder %s22, 0
      %p94 = por %p92, %p93
      %p95 = scmp.ne.s32.totalorder %s84, %s87
      %p96 = scmp.eq.s32.totalorder %s27, 1
      %p97 = por %p95, %p96
      %p98 = scmp.ne.s32.totalorder %s87, %s88
      %p99 = scmp.eq.s32.totalorder %s27, 0
      %p100 = por %p98, %p99
      %p101 = scmp.ne.s32.totalorder %s87, %s88
      %p102 = scmp.eq.s32.totalorder %s28, 1
      %p103 = por %p101, %p102
      %p105 = scmp.ne.s32.totalorder %s88, %s104
      %p106 = scmp.eq.s32.totalorder %s28, 0
      %p107 = por %p105, %p106
      %s108 = ssub.s32 %s22, %s29
      %p109 = scmp.eq.s32.totalorder %s108, 0
      %s111 = sadd.s32 %s110, 1
      %s112 = scalar_select %p109, %s110, %s111
      %p115 = pneg %p109
      %p116 = scmp.eq.s32.totalorder %s22, 1
      %p117 = por %p115, %p116
      %p118 = scmp.ne.s32.totalorder %s110, %s113
      %p119 = scmp.eq.s32.totalorder %s22, 0
      %p120 = por %p118, %p119
      %p121 = scmp.ne.s32.totalorder %s110, %s113
      %p122 = scmp.eq.s32.totalorder %s27, 1
      %p123 = por %p121, %p122
      %p124 = scmp.ne.s32.totalorder %s113, %s114
      %p125 = scmp.eq.s32.totalorder %s27, 0
      %p126 = por %p124, %p125
      %p127 = scmp.ne.s32.totalorder %s113, %s114
      %p128 = scmp.eq.s32.totalorder %s28, 1
      %p129 = por %p127, %p128
      %p131 = scmp.ne.s32.totalorder %s114, %s130
      %p132 = scmp.eq.s32.totalorder %s28, 0
      %p133 = por %p131, %p132
      %p134 = scmp.le.s32.totalorder 1, %s22
      %p135 = scmp.lt.s32.totalorder %s22, 3
      %p136 = pnand %p134, %p135
      %p137 = pneg %p136
      // Predicated region
      $region9: #{tpu_custom_call.1} parent=5 // pred_check
        _
      $region10: #{tpu_custom_call.1} parent=5 // pred_check_branch
        %139 = sbr.rel (%p136) target = $region12
      $region11: #{tpu_custom_call.1} parent=5 // pred_region
        %s140 = ssub.s32 %s22, 1
      $region12: #{tpu_custom_call.1} parent=5 // pred_fallthru
        _
      %p141 = scmp.lt.s32.totalorder %s22, 2
      // Predicated region
      $region13: #{tpu_custom_call.1} parent=5 // pred_check
        %p142 = pneg %p141
      $region14: #{tpu_custom_call.1} parent=5 // pred_check_branch
        %144 = sbr.rel (%p142) target = $region16
      $region15: #{tpu_custom_call.1} parent=5 // pred_region
        // Predicated region
        $region17: #{tpu_custom_call.1} parent=15 // pred_check
          %p145 = pneg %p42
        $region18: #{tpu_custom_call.1} parent=15 // pred_check_branch
          %147 = sbr.rel (%p145) target = $region20
        $region19: #{tpu_custom_call.1} parent=15 // pred_region
          %s148 = sand.u32 %s32, 1
          %s149 = scalar_lea.sflag [#allocation3], %s148
          %s150 = sand.u32 %s32, 1
          %s151 = smul.addr %s150, 4096
          %s152 = scalar_lea.vmem [#allocation2], %s151
          %s153 = smul.u32 128, %s22
          %155 = vsyncadd %s149, 0
          %s156 = smul.addr %s153, 4
          %s157 = smul.addr %s156, 8
          %s158 = scalar_lea.hbm %s0, %s157
          %s159 = sshll.u32 %s158, 4
          %s160 = int_to_ptr.hbm [resolvable:$true] %s159
          %s161 = sshll.u32 %s152, 4
          %s162 = int_to_ptr.vmem [resolvable:$true] %s161
          %167 = dma.hbm_to_vmem [thread:$0]  %s160, 65536, %s162, %s149, 512, 512, 32
        $region20: #{tpu_custom_call.1} parent=15 // pred_fallthru
          _
        // Predicated region
        $region21: #{tpu_custom_call.1} parent=15 // pred_check
          %p168 = pneg %p68
        $region22: #{tpu_custom_call.1} parent=15 // pred_check_branch
          %170 = sbr.rel (%p168) target = $region24
        $region23: #{tpu_custom_call.1} parent=15 // pred_region
          %s171 = sand.u32 %s58, 1
          %s172 = scalar_lea.sflag [#allocation6], %s171
          %s173 = sand.u32 %s58, 1
          %s174 = smul.addr %s173, 4096
          %s175 = scalar_lea.vmem [#allocation5], %s174
          %s176 = smul.u32 128, %s22
          %178 = vsyncadd %s172, 0
          %s179 = smul.addr %s176, 4
          %s180 = smul.addr %s179, 8
          %s181 = scalar_lea.hbm %s1, %s180
          %s182 = sshll.u32 %s181, 4
          %s183 = int_to_ptr.hbm [resolvable:$true] %s182
          %s184 = sshll.u32 %s175, 4
          %s185 = int_to_ptr.vmem [resolvable:$true] %s184
          %190 = dma.hbm_to_vmem [thread:$0]  %s183, 65536, %s185, %s172, 512, 512, 32
        $region24: #{tpu_custom_call.1} parent=15 // pred_fallthru
          _
      $region16: #{tpu_custom_call.1} parent=5 // pred_fallthru
        _
      %p191 = scmp.le.s32.totalorder 1, %s22
      %p192 = scmp.lt.s32.totalorder %s22, 3
      %p193 = pnand %p191, %p192
      %p194 = pneg %p193
      // Predicated region
      $region25: #{tpu_custom_call.1} parent=5 // pred_check
        _
      $region26: #{tpu_custom_call.1} parent=5 // pred_check_branch
        %196 = sbr.rel (%p193) target = $region28
      $region27: #{tpu_custom_call.1} parent=5 // pred_region
        %s197 = ssub.s32 %s22, 1
        %s198 = sand.u32 %s35, 1
        %s199 = scalar_lea.sflag [#allocation3], %s198
        %s200 = sand.u32 %s35, 1
        %s201 = smul.addr %s200, 4096
        %s202 = scalar_lea.vmem [#allocation2], %s201
        // Predicated region
        $region29: #{tpu_custom_call.1} parent=27 // pred_check
          %p203 = pneg %p48
        $region30: #{tpu_custom_call.1} parent=27 // pred_check_branch
          %205 = sbr.rel (%p203) target = $region32
        $region31: #{tpu_custom_call.1} parent=27 // pred_region
          %207 = dma.done %s199, 65536
        $region32: #{tpu_custom_call.1} parent=27 // pred_fallthru
          _
        %s208 = sand.u32 %s61, 1
        %s209 = scalar_lea.sflag [#allocation6], %s208
        %s210 = sand.u32 %s61, 1
        %s211 = smul.addr %s210, 4096
        %s212 = scalar_lea.vmem [#allocation5], %s211
        // Predicated region
        $region33: #{tpu_custom_call.1} parent=27 // pred_check
          %p213 = pneg %p74
        $region34: #{tpu_custom_call.1} parent=27 // pred_check_branch
          %215 = sbr.rel (%p213) target = $region36
        $region35: #{tpu_custom_call.1} parent=27 // pred_region
          %217 = dma.done %s209, 65536
        $region36: #{tpu_custom_call.1} parent=27 // pred_fallthru
          _
        %s218 = sand.u32 %s35, 1
        %s219 = scalar_lea.sflag [#allocation3], %s218
        %s220 = sand.u32 %s35, 1
        %s221 = smul.addr %s220, 4096
        %s222 = scalar_lea.vmem [#allocation2], %s221
        %p223 = pneg %p48
        %p224 = pneg %p45
        %s225 = sand.u32 %s61, 1
        %s226 = scalar_lea.sflag [#allocation6], %s225
        %s227 = sand.u32 %s61, 1
        %s228 = smul.addr %s227, 4096
        %s229 = scalar_lea.vmem [#allocation5], %s228
        %p230 = pneg %p74
        %p231 = pneg %p71
        %p232 = pneg %p100
        %p233 = pneg %p97
        %s234 = sand.u32 %s87, 1
        %s235 = scalar_lea.sflag [#allocation4], %s234
        %s236 = sand.u32 %s87, 1
        %s237 = smul.addr %s236, 4096
        %s238 = scalar_lea.vmem [#allocation7], %s237
        %p239 = pneg %p126
        %p240 = pneg %p123
        %s241 = sand.u32 %s113, 1
        %s242 = scalar_lea.sflag [#allocation9], %s241
        %s243 = sand.u32 %s113, 1
        %s244 = smul.addr %s243, 4096
        %s245 = scalar_lea.vmem [#allocation8], %s244
        %s246 = smul.u32 128, %s27
        %s247 = smul.u32 128, %s27
        %s248 = smul.u32 128, %s27
        %s249 = smul.u32 128, %s27
        %v250 = vld [vmem:[%s202] sm:$0xff]
        %v251 = vld [vmem:[%s202 + $0x8] sm:$0xff]
        %v252 = vld [vmem:[%s202 + $0x10] sm:$0xff]
        %v253 = vld [vmem:[%s202 + $0x18] sm:$0xff]
        %v254 = vld [vmem:[%s202 + $0x20] sm:$0xff]
        %v255 = vld [vmem:[%s202 + $0x28] sm:$0xff]
        %v256 = vld [vmem:[%s202 + $0x30] sm:$0xff]
        %v257 = vld [vmem:[%s202 + $0x38] sm:$0xff]
        %v258 = vld [vmem:[%s202 + $0x40] sm:$0xff]
        %v259 = vld [vmem:[%s202 + $0x48] sm:$0xff]
        %v260 = vld [vmem:[%s202 + $0x50] sm:$0xff]
        %v261 = vld [vmem:[%s202 + $0x58] sm:$0xff]
        %v262 = vld [vmem:[%s202 + $0x60] sm:$0xff]
        %v263 = vld [vmem:[%s202 + $0x68] sm:$0xff]
        %v264 = vld [vmem:[%s202 + $0x70] sm:$0xff]
        %v265 = vld [vmem:[%s202 + $0x78] sm:$0xff]
        %v266 = vld [vmem:[%s202 + $0x80] sm:$0xff]
        %v267 = vld [vmem:[%s202 + $0x88] sm:$0xff]
        %v268 = vld [vmem:[%s202 + $0x90] sm:$0xff]
        %v269 = vld [vmem:[%s202 + $0x98] sm:$0xff]
        %v270 = vld [vmem:[%s202 + $0xa0] sm:$0xff]
        %v271 = vld [vmem:[%s202 + $0xa8] sm:$0xff]
        %v272 = vld [vmem:[%s202 + $0xb0] sm:$0xff]
        %v273 = vld [vmem:[%s202 + $0xb8] sm:$0xff]
        %v274 = vld [vmem:[%s202 + $0xc0] sm:$0xff]
        %v275 = vld [vmem:[%s202 + $0xc8] sm:$0xff]
        %v276 = vld [vmem:[%s202 + $0xd0] sm:$0xff]
        %v277 = vld [vmem:[%s202 + $0xd8] sm:$0xff]
        %v278 = vld [vmem:[%s202 + $0xe0] sm:$0xff]
        %v279 = vld [vmem:[%s202 + $0xe8] sm:$0xff]
        %v280 = vld [vmem:[%s202 + $0xf0] sm:$0xff]
        %v281 = vld [vmem:[%s202 + $0xf8] sm:$0xff]
        %v282 = vld [vmem:[%s202 + $0x100] sm:$0xff]
        %v283 = vld [vmem:[%s202 + $0x108] sm:$0xff]
        %v284 = vld [vmem:[%s202 + $0x110] sm:$0xff]
        %v285 = vld [vmem:[%s202 + $0x118] sm:$0xff]
        %v286 = vld [vmem:[%s202 + $0x120] sm:$0xff]
        %v287 = vld [vmem:[%s202 + $0x128] sm:$0xff]
        %v288 = vld [vmem:[%s202 + $0x130] sm:$0xff]
        %v289 = vld [vmem:[%s202 + $0x138] sm:$0xff]
        %v290 = vld [vmem:[%s202 + $0x140] sm:$0xff]
        %v291 = vld [vmem:[%s202 + $0x148] sm:$0xff]
        %v292 = vld [vmem:[%s202 + $0x150] sm:$0xff]
        %v293 = vld [vmem:[%s202 + $0x158] sm:$0xff]
        %v294 = vld [vmem:[%s202 + $0x160] sm:$0xff]
        %v295 = vld [vmem:[%s202 + $0x168] sm:$0xff]
        %v296 = vld [vmem:[%s202 + $0x170] sm:$0xff]
        %v297 = vld [vmem:[%s202 + $0x178] sm:$0xff]
        %v298 = vld [vmem:[%s202 + $0x180] sm:$0xff]
        %v299 = vld [vmem:[%s202 + $0x188] sm:$0xff]
        %v300 = vld [vmem:[%s202 + $0x190] sm:$0xff]
        %v301 = vld [vmem:[%s202 + $0x198] sm:$0xff]
        %v302 = vld [vmem:[%s202 + $0x1a0] sm:$0xff]
        %v303 = vld [vmem:[%s202 + $0x1a8] sm:$0xff]
        %v304 = vld [vmem:[%s202 + $0x1b0] sm:$0xff]
        %v305 = vld [vmem:[%s202 + $0x1b8] sm:$0xff]
        %v306 = vld [vmem:[%s202 + $0x1c0] sm:$0xff]
        %v307 = vld [vmem:[%s202 + $0x1c8] sm:$0xff]
        %v308 = vld [vmem:[%s202 + $0x1d0] sm:$0xff]
        %v309 = vld [vmem:[%s202 + $0x1d8] sm:$0xff]
        %v310 = vld [vmem:[%s202 + $0x1e0] sm:$0xff]
        %v311 = vld [vmem:[%s202 + $0x1e8] sm:$0xff]
        %v312 = vld [vmem:[%s202 + $0x1f0] sm:$0xff]
        %v313 = vld [vmem:[%s202 + $0x1f8] sm:$0xff]
        %v314 = vld [vmem:[%s202 + $0x200] sm:$0xff]
        %v315 = vld [vmem:[%s202 + $0x208] sm:$0xff]
        %v316 = vld [vmem:[%s202 + $0x210] sm:$0xff]
        %v317 = vld [vmem:[%s202 + $0x218] sm:$0xff]
        %v318 = vld [vmem:[%s202 + $0x220] sm:$0xff]
        %v319 = vld [vmem:[%s202 + $0x228] sm:$0xff]
        %v320 = vld [vmem:[%s202 + $0x230] sm:$0xff]
        %v321 = vld [vmem:[%s202 + $0x238] sm:$0xff]
        %v322 = vld [vmem:[%s202 + $0x240] sm:$0xff]
        %v323 = vld [vmem:[%s202 + $0x248] sm:$0xff]
        %v324 = vld [vmem:[%s202 + $0x250] sm:$0xff]
        %v325 = vld [vmem:[%s202 + $0x258] sm:$0xff]
        %v326 = vld [vmem:[%s202 + $0x260] sm:$0xff]
        %v327 = vld [vmem:[%s202 + $0x268] sm:$0xff]
        %v328 = vld [vmem:[%s202 + $0x270] sm:$0xff]
        %v329 = vld [vmem:[%s202 + $0x278] sm:$0xff]
        %v330 = vld [vmem:[%s202 + $0x280] sm:$0xff]
        %v331 = vld [vmem:[%s202 + $0x288] sm:$0xff]
        %v332 = vld [vmem:[%s202 + $0x290] sm:$0xff]
        %v333 = vld [vmem:[%s202 + $0x298] sm:$0xff]
        %v334 = vld [vmem:[%s202 + $0x2a0] sm:$0xff]
        %v335 = vld [vmem:[%s202 + $0x2a8] sm:$0xff]
        %v336 = vld [vmem:[%s202 + $0x2b0] sm:$0xff]
        %v337 = vld [vmem:[%s202 + $0x2b8] sm:$0xff]
        %v338 = vld [vmem:[%s202 + $0x2c0] sm:$0xff]
        %v339 = vld [vmem:[%s202 + $0x2c8] sm:$0xff]
        %v340 = vld [vmem:[%s202 + $0x2d0] sm:$0xff]
        %v341 = vld [vmem:[%s202 + $0x2d8] sm:$0xff]
        %v342 = vld [vmem:[%s202 + $0x2e0] sm:$0xff]
        %v343 = vld [vmem:[%s202 + $0x2e8] sm:$0xff]
        %v344 = vld [vmem:[%s202 + $0x2f0] sm:$0xff]
        %v345 = vld [vmem:[%s202 + $0x2f8] sm:$0xff]
        %v346 = vld [vmem:[%s202 + $0x300] sm:$0xff]
        %v347 = vld [vmem:[%s202 + $0x308] sm:$0xff]
        %v348 = vld [vmem:[%s202 + $0x310] sm:$0xff]
        %v349 = vld [vmem:[%s202 + $0x318] sm:$0xff]
        %v350 = vld [vmem:[%s202 + $0x320] sm:$0xff]
        %v351 = vld [vmem:[%s202 + $0x328] sm:$0xff]
        %v352 = vld [vmem:[%s202 + $0x330] sm:$0xff]
        %v353 = vld [vmem:[%s202 + $0x338] sm:$0xff]
        %v354 = vld [vmem:[%s202 + $0x340] sm:$0xff]
        %v355 = vld [vmem:[%s202 + $0x348] sm:$0xff]
        %v356 = vld [vmem:[%s202 + $0x350] sm:$0xff]
        %v357 = vld [vmem:[%s202 + $0x358] sm:$0xff]
        %v358 = vld [vmem:[%s202 + $0x360] sm:$0xff]
        %v359 = vld [vmem:[%s202 + $0x368] sm:$0xff]
        %v360 = vld [vmem:[%s202 + $0x370] sm:$0xff]
        %v361 = vld [vmem:[%s202 + $0x378] sm:$0xff]
        %v362 = vld [vmem:[%s202 + $0x380] sm:$0xff]
        %v363 = vld [vmem:[%s202 + $0x388] sm:$0xff]
        %v364 = vld [vmem:[%s202 + $0x390] sm:$0xff]
        %v365 = vld [vmem:[%s202 + $0x398] sm:$0xff]
        %v366 = vld [vmem:[%s202 + $0x3a0] sm:$0xff]
        %v367 = vld [vmem:[%s202 + $0x3a8] sm:$0xff]
        %v368 = vld [vmem:[%s202 + $0x3b0] sm:$0xff]
        %v369 = vld [vmem:[%s202 + $0x3b8] sm:$0xff]
        %v370 = vld [vmem:[%s202 + $0x3c0] sm:$0xff]
        %v371 = vld [vmem:[%s202 + $0x3c8] sm:$0xff]
        %v372 = vld [vmem:[%s202 + $0x3d0] sm:$0xff]
        %v373 = vld [vmem:[%s202 + $0x3d8] sm:$0xff]
        %v374 = vld [vmem:[%s202 + $0x3e0] sm:$0xff]
        %v375 = vld [vmem:[%s202 + $0x3e8] sm:$0xff]
        %v376 = vld [vmem:[%s202 + $0x3f0] sm:$0xff]
        %v377 = vld [vmem:[%s202 + $0x3f8] sm:$0xff]
        %v378 = vld [vmem:[%s202 + $0x400] sm:$0xff]
        %v379 = vld [vmem:[%s202 + $0x408] sm:$0xff]
        %v380 = vld [vmem:[%s202 + $0x410] sm:$0xff]
        %v381 = vld [vmem:[%s202 + $0x418] sm:$0xff]
        %v382 = vld [vmem:[%s202 + $0x420] sm:$0xff]
        %v383 = vld [vmem:[%s202 + $0x428] sm:$0xff]
        %v384 = vld [vmem:[%s202 + $0x430] sm:$0xff]
        %v385 = vld [vmem:[%s202 + $0x438] sm:$0xff]
        %v386 = vld [vmem:[%s202 + $0x440] sm:$0xff]
        %v387 = vld [vmem:[%s202 + $0x448] sm:$0xff]
        %v388 = vld [vmem:[%s202 + $0x450] sm:$0xff]
        %v389 = vld [vmem:[%s202 + $0x458] sm:$0xff]
        %v390 = vld [vmem:[%s202 + $0x460] sm:$0xff]
        %v391 = vld [vmem:[%s202 + $0x468] sm:$0xff]
        %v392 = vld [vmem:[%s202 + $0x470] sm:$0xff]
        %v393 = vld [vmem:[%s202 + $0x478] sm:$0xff]
        %v394 = vld [vmem:[%s202 + $0x480] sm:$0xff]
        %v395 = vld [vmem:[%s202 + $0x488] sm:$0xff]
        %v396 = vld [vmem:[%s202 + $0x490] sm:$0xff]
        %v397 = vld [vmem:[%s202 + $0x498] sm:$0xff]
        %v398 = vld [vmem:[%s202 + $0x4a0] sm:$0xff]
        %v399 = vld [vmem:[%s202 + $0x4a8] sm:$0xff]
        %v400 = vld [vmem:[%s202 + $0x4b0] sm:$0xff]
        %v401 = vld [vmem:[%s202 + $0x4b8] sm:$0xff]
        %v402 = vld [vmem:[%s202 + $0x4c0] sm:$0xff]
        %v403 = vld [vmem:[%s202 + $0x4c8] sm:$0xff]
        %v404 = vld [vmem:[%s202 + $0x4d0] sm:$0xff]
        %v405 = vld [vmem:[%s202 + $0x4d8] sm:$0xff]
        %v406 = vld [vmem:[%s202 + $0x4e0] sm:$0xff]
        %v407 = vld [vmem:[%s202 + $0x4e8] sm:$0xff]
        %v408 = vld [vmem:[%s202 + $0x4f0] sm:$0xff]
        %v409 = vld [vmem:[%s202 + $0x4f8] sm:$0xff]
        %v410 = vld [vmem:[%s202 + $0x500] sm:$0xff]
        %v411 = vld [vmem:[%s202 + $0x508] sm:$0xff]
        %v412 = vld [vmem:[%s202 + $0x510] sm:$0xff]
        %v413 = vld [vmem:[%s202 + $0x518] sm:$0xff]
        %v414 = vld [vmem:[%s202 + $0x520] sm:$0xff]
        %v415 = vld [vmem:[%s202 + $0x528] sm:$0xff]
        %v416 = vld [vmem:[%s202 + $0x530] sm:$0xff]
        %v417 = vld [vmem:[%s202 + $0x538] sm:$0xff]
        %v418 = vld [vmem:[%s202 + $0x540] sm:$0xff]
        %v419 = vld [vmem:[%s202 + $0x548] sm:$0xff]
        %v420 = vld [vmem:[%s202 + $0x550] sm:$0xff]
        %v421 = vld [vmem:[%s202 + $0x558] sm:$0xff]
        %v422 = vld [vmem:[%s202 + $0x560] sm:$0xff]
        %v423 = vld [vmem:[%s202 + $0x568] sm:$0xff]
        %v424 = vld [vmem:[%s202 + $0x570] sm:$0xff]
        %v425 = vld [vmem:[%s202 + $0x578] sm:$0xff]
        %v426 = vld [vmem:[%s202 + $0x580] sm:$0xff]
        %v427 = vld [vmem:[%s202 + $0x588] sm:$0xff]
        %v428 = vld [vmem:[%s202 + $0x590] sm:$0xff]
        %v429 = vld [vmem:[%s202 + $0x598] sm:$0xff]
        %v430 = vld [vmem:[%s202 + $0x5a0] sm:$0xff]
        %v431 = vld [vmem:[%s202 + $0x5a8] sm:$0xff]
        %v432 = vld [vmem:[%s202 + $0x5b0] sm:$0xff]
        %v433 = vld [vmem:[%s202 + $0x5b8] sm:$0xff]
        %v434 = vld [vmem:[%s202 + $0x5c0] sm:$0xff]
        %v435 = vld [vmem:[%s202 + $0x5c8] sm:$0xff]
        %v436 = vld [vmem:[%s202 + $0x5d0] sm:$0xff]
        %v437 = vld [vmem:[%s202 + $0x5d8] sm:$0xff]
        %v438 = vld [vmem:[%s202 + $0x5e0] sm:$0xff]
        %v439 = vld [vmem:[%s202 + $0x5e8] sm:$0xff]
        %v440 = vld [vmem:[%s202 + $0x5f0] sm:$0xff]
        %v441 = vld [vmem:[%s202 + $0x5f8] sm:$0xff]
        %v442 = vld [vmem:[%s202 + $0x600] sm:$0xff]
        %v443 = vld [vmem:[%s202 + $0x608] sm:$0xff]
        %v444 = vld [vmem:[%s202 + $0x610] sm:$0xff]
        %v445 = vld [vmem:[%s202 + $0x618] sm:$0xff]
        %v446 = vld [vmem:[%s202 + $0x620] sm:$0xff]
        %v447 = vld [vmem:[%s202 + $0x628] sm:$0xff]
        %v448 = vld [vmem:[%s202 + $0x630] sm:$0xff]
        %v449 = vld [vmem:[%s202 + $0x638] sm:$0xff]
        %v450 = vld [vmem:[%s202 + $0x640] sm:$0xff]
        %v451 = vld [vmem:[%s202 + $0x648] sm:$0xff]
        %v452 = vld [vmem:[%s202 + $0x650] sm:$0xff]
        %v453 = vld [vmem:[%s202 + $0x658] sm:$0xff]
        %v454 = vld [vmem:[%s202 + $0x660] sm:$0xff]
        %v455 = vld [vmem:[%s202 + $0x668] sm:$0xff]
        %v456 = vld [vmem:[%s202 + $0x670] sm:$0xff]
        %v457 = vld [vmem:[%s202 + $0x678] sm:$0xff]
        %v458 = vld [vmem:[%s202 + $0x680] sm:$0xff]
        %v459 = vld [vmem:[%s202 + $0x688] sm:$0xff]
        %v460 = vld [vmem:[%s202 + $0x690] sm:$0xff]
        %v461 = vld [vmem:[%s202 + $0x698] sm:$0xff]
        %v462 = vld [vmem:[%s202 + $0x6a0] sm:$0xff]
        %v463 = vld [vmem:[%s202 + $0x6a8] sm:$0xff]
        %v464 = vld [vmem:[%s202 + $0x6b0] sm:$0xff]
        %v465 = vld [vmem:[%s202 + $0x6b8] sm:$0xff]
        %v466 = vld [vmem:[%s202 + $0x6c0] sm:$0xff]
        %v467 = vld [vmem:[%s202 + $0x6c8] sm:$0xff]
        %v468 = vld [vmem:[%s202 + $0x6d0] sm:$0xff]
        %v469 = vld [vmem:[%s202 + $0x6d8] sm:$0xff]
        %v470 = vld [vmem:[%s202 + $0x6e0] sm:$0xff]
        %v471 = vld [vmem:[%s202 + $0x6e8] sm:$0xff]
        %v472 = vld [vmem:[%s202 + $0x6f0] sm:$0xff]
        %v473 = vld [vmem:[%s202 + $0x6f8] sm:$0xff]
        %v474 = vld [vmem:[%s202 + $0x700] sm:$0xff]
        %v475 = vld [vmem:[%s202 + $0x708] sm:$0xff]
        %v476 = vld [vmem:[%s202 + $0x710] sm:$0xff]
        %v477 = vld [vmem:[%s202 + $0x718] sm:$0xff]
        %v478 = vld [vmem:[%s202 + $0x720] sm:$0xff]
        %v479 = vld [vmem:[%s202 + $0x728] sm:$0xff]
        %v480 = vld [vmem:[%s202 + $0x730] sm:$0xff]
        %v481 = vld [vmem:[%s202 + $0x738] sm:$0xff]
        %v482 = vld [vmem:[%s202 + $0x740] sm:$0xff]
        %v483 = vld [vmem:[%s202 + $0x748] sm:$0xff]
        %v484 = vld [vmem:[%s202 + $0x750] sm:$0xff]
        %v485 = vld [vmem:[%s202 + $0x758] sm:$0xff]
        %v486 = vld [vmem:[%s202 + $0x760] sm:$0xff]
        %v487 = vld [vmem:[%s202 + $0x768] sm:$0xff]
        %v488 = vld [vmem:[%s202 + $0x770] sm:$0xff]
        %v489 = vld [vmem:[%s202 + $0x778] sm:$0xff]
        %v490 = vld [vmem:[%s202 + $0x780] sm:$0xff]
        %v491 = vld [vmem:[%s202 + $0x788] sm:$0xff]
        %v492 = vld [vmem:[%s202 + $0x790] sm:$0xff]
        %v493 = vld [vmem:[%s202 + $0x798] sm:$0xff]
        %v494 = vld [vmem:[%s202 + $0x7a0] sm:$0xff]
        %v495 = vld [vmem:[%s202 + $0x7a8] sm:$0xff]
        %v496 = vld [vmem:[%s202 + $0x7b0] sm:$0xff]
        %v497 = vld [vmem:[%s202 + $0x7b8] sm:$0xff]
        %v498 = vld [vmem:[%s202 + $0x7c0] sm:$0xff]
        %v499 = vld [vmem:[%s202 + $0x7c8] sm:$0xff]
        %v500 = vld [vmem:[%s202 + $0x7d0] sm:$0xff]
        %v501 = vld [vmem:[%s202 + $0x7d8] sm:$0xff]
        %v502 = vld [vmem:[%s202 + $0x7e0] sm:$0xff]
        %v503 = vld [vmem:[%s202 + $0x7e8] sm:$0xff]
        %v504 = vld [vmem:[%s202 + $0x7f0] sm:$0xff]
        %v505 = vld [vmem:[%s202 + $0x7f8] sm:$0xff]
        %v506 = vld [vmem:[%s202 + $0x800] sm:$0xff]
        %v507 = vld [vmem:[%s202 + $0x808] sm:$0xff]
        %v508 = vld [vmem:[%s202 + $0x810] sm:$0xff]
        %v509 = vld [vmem:[%s202 + $0x818] sm:$0xff]
        %v510 = vld [vmem:[%s202 + $0x820] sm:$0xff]
        %v511 = vld [vmem:[%s202 + $0x828] sm:$0xff]
        %v512 = vld [vmem:[%s202 + $0x830] sm:$0xff]
        %v513 = vld [vmem:[%s202 + $0x838] sm:$0xff]
        %v514 = vld [vmem:[%s202 + $0x840] sm:$0xff]
        %v515 = vld [vmem:[%s202 + $0x848] sm:$0xff]
        %v516 = vld [vmem:[%s202 + $0x850] sm:$0xff]
        %v517 = vld [vmem:[%s202 + $0x858] sm:$0xff]
        %v518 = vld [vmem:[%s202 + $0x860] sm:$0xff]
        %v519 = vld [vmem:[%s202 + $0x868] sm:$0xff]
        %v520 = vld [vmem:[%s202 + $0x870] sm:$0xff]
        %v521 = vld [vmem:[%s202 + $0x878] sm:$0xff]
        %v522 = vld [vmem:[%s202 + $0x880] sm:$0xff]
        %v523 = vld [vmem:[%s202 + $0x888] sm:$0xff]
        %v524 = vld [vmem:[%s202 + $0x890] sm:$0xff]
        %v525 = vld [vmem:[%s202 + $0x898] sm:$0xff]
        %v526 = vld [vmem:[%s202 + $0x8a0] sm:$0xff]
        %v527 = vld [vmem:[%s202 + $0x8a8] sm:$0xff]
        %v528 = vld [vmem:[%s202 + $0x8b0] sm:$0xff]
        %v529 = vld [vmem:[%s202 + $0x8b8] sm:$0xff]
        %v530 = vld [vmem:[%s202 + $0x8c0] sm:$0xff]
        %v531 = vld [vmem:[%s202 + $0x8c8] sm:$0xff]
        %v532 = vld [vmem:[%s202 + $0x8d0] sm:$0xff]
        %v533 = vld [vmem:[%s202 + $0x8d8] sm:$0xff]
        %v534 = vld [vmem:[%s202 + $0x8e0] sm:$0xff]
        %v535 = vld [vmem:[%s202 + $0x8e8] sm:$0xff]
        %v536 = vld [vmem:[%s202 + $0x8f0] sm:$0xff]
        %v537 = vld [vmem:[%s202 + $0x8f8] sm:$0xff]
        %v538 = vld [vmem:[%s202 + $0x900] sm:$0xff]
        %v539 = vld [vmem:[%s202 + $0x908] sm:$0xff]
        %v540 = vld [vmem:[%s202 + $0x910] sm:$0xff]
        %v541 = vld [vmem:[%s202 + $0x918] sm:$0xff]
        %v542 = vld [vmem:[%s202 + $0x920] sm:$0xff]
        %v543 = vld [vmem:[%s202 + $0x928] sm:$0xff]
        %v544 = vld [vmem:[%s202 + $0x930] sm:$0xff]
        %v545 = vld [vmem:[%s202 + $0x938] sm:$0xff]
        %v546 = vld [vmem:[%s202 + $0x940] sm:$0xff]
        %v547 = vld [vmem:[%s202 + $0x948] sm:$0xff]
        %v548 = vld [vmem:[%s202 + $0x950] sm:$0xff]
        %v549 = vld [vmem:[%s202 + $0x958] sm:$0xff]
        %v550 = vld [vmem:[%s202 + $0x960] sm:$0xff]
        %v551 = vld [vmem:[%s202 + $0x968] sm:$0xff]
        %v552 = vld [vmem:[%s202 + $0x970] sm:$0xff]
        %v553 = vld [vmem:[%s202 + $0x978] sm:$0xff]
        %v554 = vld [vmem:[%s202 + $0x980] sm:$0xff]
        %v555 = vld [vmem:[%s202 + $0x988] sm:$0xff]
        %v556 = vld [vmem:[%s202 + $0x990] sm:$0xff]
        %v557 = vld [vmem:[%s202 + $0x998] sm:$0xff]
        %v558 = vld [vmem:[%s202 + $0x9a0] sm:$0xff]
        %v559 = vld [vmem:[%s202 + $0x9a8] sm:$0xff]
        %v560 = vld [vmem:[%s202 + $0x9b0] sm:$0xff]
        %v561 = vld [vmem:[%s202 + $0x9b8] sm:$0xff]
        %v562 = vld [vmem:[%s202 + $0x9c0] sm:$0xff]
        %v563 = vld [vmem:[%s202 + $0x9c8] sm:$0xff]
        %v564 = vld [vmem:[%s202 + $0x9d0] sm:$0xff]
        %v565 = vld [vmem:[%s202 + $0x9d8] sm:$0xff]
        %v566 = vld [vmem:[%s202 + $0x9e0] sm:$0xff]
        %v567 = vld [vmem:[%s202 + $0x9e8] sm:$0xff]
        %v568 = vld [vmem:[%s202 + $0x9f0] sm:$0xff]
        %v569 = vld [vmem:[%s202 + $0x9f8] sm:$0xff]
        %v570 = vld [vmem:[%s202 + $0xa00] sm:$0xff]
        %v571 = vld [vmem:[%s202 + $0xa08] sm:$0xff]
        %v572 = vld [vmem:[%s202 + $0xa10] sm:$0xff]
        %v573 = vld [vmem:[%s202 + $0xa18] sm:$0xff]
        %v574 = vld [vmem:[%s202 + $0xa20] sm:$0xff]
        %v575 = vld [vmem:[%s202 + $0xa28] sm:$0xff]
        %v576 = vld [vmem:[%s202 + $0xa30] sm:$0xff]
        %v577 = vld [vmem:[%s202 + $0xa38] sm:$0xff]
        %v578 = vld [vmem:[%s202 + $0xa40] sm:$0xff]
        %v579 = vld [vmem:[%s202 + $0xa48] sm:$0xff]
        %v580 = vld [vmem:[%s202 + $0xa50] sm:$0xff]
        %v581 = vld [vmem:[%s202 + $0xa58] sm:$0xff]
        %v582 = vld [vmem:[%s202 + $0xa60] sm:$0xff]
        %v583 = vld [vmem:[%s202 + $0xa68] sm:$0xff]
        %v584 = vld [vmem:[%s202 + $0xa70] sm:$0xff]
        %v585 = vld [vmem:[%s202 + $0xa78] sm:$0xff]
        %v586 = vld [vmem:[%s202 + $0xa80] sm:$0xff]
        %v587 = vld [vmem:[%s202 + $0xa88] sm:$0xff]
        %v588 = vld [vmem:[%s202 + $0xa90] sm:$0xff]
        %v589 = vld [vmem:[%s202 + $0xa98] sm:$0xff]
        %v590 = vld [vmem:[%s202 + $0xaa0] sm:$0xff]
        %v591 = vld [vmem:[%s202 + $0xaa8] sm:$0xff]
        %v592 = vld [vmem:[%s202 + $0xab0] sm:$0xff]
        %v593 = vld [vmem:[%s202 + $0xab8] sm:$0xff]
        %v594 = vld [vmem:[%s202 + $0xac0] sm:$0xff]
        %v595 = vld [vmem:[%s202 + $0xac8] sm:$0xff]
        %v596 = vld [vmem:[%s202 + $0xad0] sm:$0xff]
        %v597 = vld [vmem:[%s202 + $0xad8] sm:$0xff]
        %v598 = vld [vmem:[%s202 + $0xae0] sm:$0xff]
        %v599 = vld [vmem:[%s202 + $0xae8] sm:$0xff]
        %v600 = vld [vmem:[%s202 + $0xaf0] sm:$0xff]
        %v601 = vld [vmem:[%s202 + $0xaf8] sm:$0xff]
        %v602 = vld [vmem:[%s202 + $0xb00] sm:$0xff]
        %v603 = vld [vmem:[%s202 + $0xb08] sm:$0xff]
        %v604 = vld [vmem:[%s202 + $0xb10] sm:$0xff]
        %v605 = vld [vmem:[%s202 + $0xb18] sm:$0xff]
        %v606 = vld [vmem:[%s202 + $0xb20] sm:$0xff]
        %v607 = vld [vmem:[%s202 + $0xb28] sm:$0xff]
        %v608 = vld [vmem:[%s202 + $0xb30] sm:$0xff]
        %v609 = vld [vmem:[%s202 + $0xb38] sm:$0xff]
        %v610 = vld [vmem:[%s202 + $0xb40] sm:$0xff]
        %v611 = vld [vmem:[%s202 + $0xb48] sm:$0xff]
        %v612 = vld [vmem:[%s202 + $0xb50] sm:$0xff]
        %v613 = vld [vmem:[%s202 + $0xb58] sm:$0xff]
        %v614 = vld [vmem:[%s202 + $0xb60] sm:$0xff]
        %v615 = vld [vmem:[%s202 + $0xb68] sm:$0xff]
        %v616 = vld [vmem:[%s202 + $0xb70] sm:$0xff]
        %v617 = vld [vmem:[%s202 + $0xb78] sm:$0xff]
        %v618 = vld [vmem:[%s202 + $0xb80] sm:$0xff]
        %v619 = vld [vmem:[%s202 + $0xb88] sm:$0xff]
        %v620 = vld [vmem:[%s202 + $0xb90] sm:$0xff]
        %v621 = vld [vmem:[%s202 + $0xb98] sm:$0xff]
        %v622 = vld [vmem:[%s202 + $0xba0] sm:$0xff]
        %v623 = vld [vmem:[%s202 + $0xba8] sm:$0xff]
        %v624 = vld [vmem:[%s202 + $0xbb0] sm:$0xff]
        %v625 = vld [vmem:[%s202 + $0xbb8] sm:$0xff]
        %v626 = vld [vmem:[%s202 + $0xbc0] sm:$0xff]
        %v627 = vld [vmem:[%s202 + $0xbc8] sm:$0xff]
        %v628 = vld [vmem:[%s202 + $0xbd0] sm:$0xff]
        %v629 = vld [vmem:[%s202 + $0xbd8] sm:$0xff]
        %v630 = vld [vmem:[%s202 + $0xbe0] sm:$0xff]
        %v631 = vld [vmem:[%s202 + $0xbe8] sm:$0xff]
        %v632 = vld [vmem:[%s202 + $0xbf0] sm:$0xff]
        %v633 = vld [vmem:[%s202 + $0xbf8] sm:$0xff]
        %v634 = vld [vmem:[%s202 + $0xc00] sm:$0xff]
        %v635 = vld [vmem:[%s202 + $0xc08] sm:$0xff]
        %v636 = vld [vmem:[%s202 + $0xc10] sm:$0xff]
        %v637 = vld [vmem:[%s202 + $0xc18] sm:$0xff]
        %v638 = vld [vmem:[%s202 + $0xc20] sm:$0xff]
        %v639 = vld [vmem:[%s202 + $0xc28] sm:$0xff]
        %v640 = vld [vmem:[%s202 + $0xc30] sm:$0xff]
        %v641 = vld [vmem:[%s202 + $0xc38] sm:$0xff]
        %v642 = vld [vmem:[%s202 + $0xc40] sm:$0xff]
        %v643 = vld [vmem:[%s202 + $0xc48] sm:$0xff]
        %v644 = vld [vmem:[%s202 + $0xc50] sm:$0xff]
        %v645 = vld [vmem:[%s202 + $0xc58] sm:$0xff]
        %v646 = vld [vmem:[%s202 + $0xc60] sm:$0xff]
        %v647 = vld [vmem:[%s202 + $0xc68] sm:$0xff]
        %v648 = vld [vmem:[%s202 + $0xc70] sm:$0xff]
        %v649 = vld [vmem:[%s202 + $0xc78] sm:$0xff]
        %v650 = vld [vmem:[%s202 + $0xc80] sm:$0xff]
        %v651 = vld [vmem:[%s202 + $0xc88] sm:$0xff]
        %v652 = vld [vmem:[%s202 + $0xc90] sm:$0xff]
        %v653 = vld [vmem:[%s202 + $0xc98] sm:$0xff]
        %v654 = vld [vmem:[%s202 + $0xca0] sm:$0xff]
        %v655 = vld [vmem:[%s202 + $0xca8] sm:$0xff]
        %v656 = vld [vmem:[%s202 + $0xcb0] sm:$0xff]
        %v657 = vld [vmem:[%s202 + $0xcb8] sm:$0xff]
        %v658 = vld [vmem:[%s202 + $0xcc0] sm:$0xff]
        %v659 = vld [vmem:[%s202 + $0xcc8] sm:$0xff]
        %v660 = vld [vmem:[%s202 + $0xcd0] sm:$0xff]
        %v661 = vld [vmem:[%s202 + $0xcd8] sm:$0xff]
        %v662 = vld [vmem:[%s202 + $0xce0] sm:$0xff]
        %v663 = vld [vmem:[%s202 + $0xce8] sm:$0xff]
        %v664 = vld [vmem:[%s202 + $0xcf0] sm:$0xff]
        %v665 = vld [vmem:[%s202 + $0xcf8] sm:$0xff]
        %v666 = vld [vmem:[%s202 + $0xd00] sm:$0xff]
        %v667 = vld [vmem:[%s202 + $0xd08] sm:$0xff]
        %v668 = vld [vmem:[%s202 + $0xd10] sm:$0xff]
        %v669 = vld [vmem:[%s202 + $0xd18] sm:$0xff]
        %v670 = vld [vmem:[%s202 + $0xd20] sm:$0xff]
        %v671 = vld [vmem:[%s202 + $0xd28] sm:$0xff]
        %v672 = vld [vmem:[%s202 + $0xd30] sm:$0xff]
        %v673 = vld [vmem:[%s202 + $0xd38] sm:$0xff]
        %v674 = vld [vmem:[%s202 + $0xd40] sm:$0xff]
        %v675 = vld [vmem:[%s202 + $0xd48] sm:$0xff]
        %v676 = vld [vmem:[%s202 + $0xd50] sm:$0xff]
        %v677 = vld [vmem:[%s202 + $0xd58] sm:$0xff]
        %v678 = vld [vmem:[%s202 + $0xd60] sm:$0xff]
        %v679 = vld [vmem:[%s202 + $0xd68] sm:$0xff]
        %v680 = vld [vmem:[%s202 + $0xd70] sm:$0xff]
        %v681 = vld [vmem:[%s202 + $0xd78] sm:$0xff]
        %v682 = vld [vmem:[%s202 + $0xd80] sm:$0xff]
        %v683 = vld [vmem:[%s202 + $0xd88] sm:$0xff]
        %v684 = vld [vmem:[%s202 + $0xd90] sm:$0xff]
        %v685 = vld [vmem:[%s202 + $0xd98] sm:$0xff]
        %v686 = vld [vmem:[%s202 + $0xda0] sm:$0xff]
        %v687 = vld [vmem:[%s202 + $0xda8] sm:$0xff]
        %v688 = vld [vmem:[%s202 + $0xdb0] sm:$0xff]
        %v689 = vld [vmem:[%s202 + $0xdb8] sm:$0xff]
        %v690 = vld [vmem:[%s202 + $0xdc0] sm:$0xff]
        %v691 = vld [vmem:[%s202 + $0xdc8] sm:$0xff]
        %v692 = vld [vmem:[%s202 + $0xdd0] sm:$0xff]
        %v693 = vld [vmem:[%s202 + $0xdd8] sm:$0xff]
        %v694 = vld [vmem:[%s202 + $0xde0] sm:$0xff]
        %v695 = vld [vmem:[%s202 + $0xde8] sm:$0xff]
        %v696 = vld [vmem:[%s202 + $0xdf0] sm:$0xff]
        %v697 = vld [vmem:[%s202 + $0xdf8] sm:$0xff]
        %v698 = vld [vmem:[%s202 + $0xe00] sm:$0xff]
        %v699 = vld [vmem:[%s202 + $0xe08] sm:$0xff]
        %v700 = vld [vmem:[%s202 + $0xe10] sm:$0xff]
        %v701 = vld [vmem:[%s202 + $0xe18] sm:$0xff]
        %v702 = vld [vmem:[%s202 + $0xe20] sm:$0xff]
        %v703 = vld [vmem:[%s202 + $0xe28] sm:$0xff]
        %v704 = vld [vmem:[%s202 + $0xe30] sm:$0xff]
        %v705 = vld [vmem:[%s202 + $0xe38] sm:$0xff]
        %v706 = vld [vmem:[%s202 + $0xe40] sm:$0xff]
        %v707 = vld [vmem:[%s202 + $0xe48] sm:$0xff]
        %v708 = vld [vmem:[%s202 + $0xe50] sm:$0xff]
        %v709 = vld [vmem:[%s202 + $0xe58] sm:$0xff]
        %v710 = vld [vmem:[%s202 + $0xe60] sm:$0xff]
        %v711 = vld [vmem:[%s202 + $0xe68] sm:$0xff]
        %v712 = vld [vmem:[%s202 + $0xe70] sm:$0xff]
        %v713 = vld [vmem:[%s202 + $0xe78] sm:$0xff]
        %v714 = vld [vmem:[%s202 + $0xe80] sm:$0xff]
        %v715 = vld [vmem:[%s202 + $0xe88] sm:$0xff]
        %v716 = vld [vmem:[%s202 + $0xe90] sm:$0xff]
        %v717 = vld [vmem:[%s202 + $0xe98] sm:$0xff]
        %v718 = vld [vmem:[%s202 + $0xea0] sm:$0xff]
        %v719 = vld [vmem:[%s202 + $0xea8] sm:$0xff]
        %v720 = vld [vmem:[%s202 + $0xeb0] sm:$0xff]
        %v721 = vld [vmem:[%s202 + $0xeb8] sm:$0xff]
        %v722 = vld [vmem:[%s202 + $0xec0] sm:$0xff]
        %v723 = vld [vmem:[%s202 + $0xec8] sm:$0xff]
        %v724 = vld [vmem:[%s202 + $0xed0] sm:$0xff]
        %v725 = vld [vmem:[%s202 + $0xed8] sm:$0xff]
        %v726 = vld [vmem:[%s202 + $0xee0] sm:$0xff]
        %v727 = vld [vmem:[%s202 + $0xee8] sm:$0xff]
        %v728 = vld [vmem:[%s202 + $0xef0] sm:$0xff]
        %v729 = vld [vmem:[%s202 + $0xef8] sm:$0xff]
        %v730 = vld [vmem:[%s202 + $0xf00] sm:$0xff]
        %v731 = vld [vmem:[%s202 + $0xf08] sm:$0xff]
        %v732 = vld [vmem:[%s202 + $0xf10] sm:$0xff]
        %v733 = vld [vmem:[%s202 + $0xf18] sm:$0xff]
        %v734 = vld [vmem:[%s202 + $0xf20] sm:$0xff]
        %v735 = vld [vmem:[%s202 + $0xf28] sm:$0xff]
        %v736 = vld [vmem:[%s202 + $0xf30] sm:$0xff]
        %v737 = vld [vmem:[%s202 + $0xf38] sm:$0xff]
        %v738 = vld [vmem:[%s202 + $0xf40] sm:$0xff]
        %v739 = vld [vmem:[%s202 + $0xf48] sm:$0xff]
        %v740 = vld [vmem:[%s202 + $0xf50] sm:$0xff]
        %v741 = vld [vmem:[%s202 + $0xf58] sm:$0xff]
        %v742 = vld [vmem:[%s202 + $0xf60] sm:$0xff]
        %v743 = vld [vmem:[%s202 + $0xf68] sm:$0xff]
        %v744 = vld [vmem:[%s202 + $0xf70] sm:$0xff]
        %v745 = vld [vmem:[%s202 + $0xf78] sm:$0xff]
        %v746 = vld [vmem:[%s202 + $0xf80] sm:$0xff]
        %v747 = vld [vmem:[%s202 + $0xf88] sm:$0xff]
        %v748 = vld [vmem:[%s202 + $0xf90] sm:$0xff]
        %v749 = vld [vmem:[%s202 + $0xf98] sm:$0xff]
        %v750 = vld [vmem:[%s202 + $0xfa0] sm:$0xff]
        %v751 = vld [vmem:[%s202 + $0xfa8] sm:$0xff]
        %v752 = vld [vmem:[%s202 + $0xfb0] sm:$0xff]
        %v753 = vld [vmem:[%s202 + $0xfb8] sm:$0xff]
        %v754 = vld [vmem:[%s202 + $0xfc0] sm:$0xff]
        %v755 = vld [vmem:[%s202 + $0xfc8] sm:$0xff]
        %v756 = vld [vmem:[%s202 + $0xfd0] sm:$0xff]
        %v757 = vld [vmem:[%s202 + $0xfd8] sm:$0xff]
        %v758 = vld [vmem:[%s202 + $0xfe0] sm:$0xff]
        %v759 = vld [vmem:[%s202 + $0xfe8] sm:$0xff]
        %v760 = vld [vmem:[%s202 + $0xff0] sm:$0xff]
        %v761 = vld [vmem:[%s202 + $0xff8] sm:$0xff]
        %vm762 = vcmp.ge.f32.partialorder %v250, 0.0
        %vm763 = vcmp.ge.f32.partialorder %v251, 0.0
        %vm764 = vcmp.ge.f32.partialorder %v252, 0.0
        %vm765 = vcmp.ge.f32.partialorder %v253, 0.0
        %vm766 = vcmp.ge.f32.partialorder %v254, 0.0
        %vm767 = vcmp.ge.f32.partialorder %v255, 0.0
        %vm768 = vcmp.ge.f32.partialorder %v256, 0.0
        %vm769 = vcmp.ge.f32.partialorder %v257, 0.0
        %vm770 = vcmp.ge.f32.partialorder %v258, 0.0
        %vm771 = vcmp.ge.f32.partialorder %v259, 0.0
        %vm772 = vcmp.ge.f32.partialorder %v260, 0.0
        %vm773 = vcmp.ge.f32.partialorder %v261, 0.0
        %vm774 = vcmp.ge.f32.partialorder %v262, 0.0
        %vm775 = vcmp.ge.f32.partialorder %v263, 0.0
        %vm776 = vcmp.ge.f32.partialorder %v264, 0.0
        %vm777 = vcmp.ge.f32.partialorder %v265, 0.0
        %vm778 = vcmp.ge.f32.partialorder %v266, 0.0
        %vm779 = vcmp.ge.f32.partialorder %v267, 0.0
        %vm780 = vcmp.ge.f32.partialorder %v268, 0.0
        %vm781 = vcmp.ge.f32.partialorder %v269, 0.0
        %vm782 = vcmp.ge.f32.partialorder %v270, 0.0
        %vm783 = vcmp.ge.f32.partialorder %v271, 0.0
        %vm784 = vcmp.ge.f32.partialorder %v272, 0.0
        %vm785 = vcmp.ge.f32.partialorder %v273, 0.0
        %vm786 = vcmp.ge.f32.partialorder %v274, 0.0
        %vm787 = vcmp.ge.f32.partialorder %v275, 0.0
        %vm788 = vcmp.ge.f32.partialorder %v276, 0.0
        %vm789 = vcmp.ge.f32.partialorder %v277, 0.0
        %vm790 = vcmp.ge.f32.partialorder %v278, 0.0
        %vm791 = vcmp.ge.f32.partialorder %v279, 0.0
        %vm792 = vcmp.ge.f32.partialorder %v280, 0.0
        %vm793 = vcmp.ge.f32.partialorder %v281, 0.0
        %vm794 = vcmp.ge.f32.partialorder %v282, 0.0
        %vm795 = vcmp.ge.f32.partialorder %v283, 0.0
        %vm796 = vcmp.ge.f32.partialorder %v284, 0.0
        %vm797 = vcmp.ge.f32.partialorder %v285, 0.0
        %vm798 = vcmp.ge.f32.partialorder %v286, 0.0
        %vm799 = vcmp.ge.f32.partialorder %v287, 0.0
        %vm800 = vcmp.ge.f32.partialorder %v288, 0.0
        %vm801 = vcmp.ge.f32.partialorder %v289, 0.0
        %vm802 = vcmp.ge.f32.partialorder %v290, 0.0
        %vm803 = vcmp.ge.f32.partialorder %v291, 0.0
        %vm804 = vcmp.ge.f32.partialorder %v292, 0.0
        %vm805 = vcmp.ge.f32.partialorder %v293, 0.0
        %vm806 = vcmp.ge.f32.partialorder %v294, 0.0
        %vm807 = vcmp.ge.f32.partialorder %v295, 0.0
        %vm808 = vcmp.ge.f32.partialorder %v296, 0.0
        %vm809 = vcmp.ge.f32.partialorder %v297, 0.0
        %vm810 = vcmp.ge.f32.partialorder %v298, 0.0
        %vm811 = vcmp.ge.f32.partialorder %v299, 0.0
        %vm812 = vcmp.ge.f32.partialorder %v300, 0.0
        %vm813 = vcmp.ge.f32.partialorder %v301, 0.0
        %vm814 = vcmp.ge.f32.partialorder %v302, 0.0
        %vm815 = vcmp.ge.f32.partialorder %v303, 0.0
        %vm816 = vcmp.ge.f32.partialorder %v304, 0.0
        %vm817 = vcmp.ge.f32.partialorder %v305, 0.0
        %vm818 = vcmp.ge.f32.partialorder %v306, 0.0
        %vm819 = vcmp.ge.f32.partialorder %v307, 0.0
        %vm820 = vcmp.ge.f32.partialorder %v308, 0.0
        %vm821 = vcmp.ge.f32.partialorder %v309, 0.0
        %vm822 = vcmp.ge.f32.partialorder %v310, 0.0
        %vm823 = vcmp.ge.f32.partialorder %v311, 0.0
        %vm824 = vcmp.ge.f32.partialorder %v312, 0.0
        %vm825 = vcmp.ge.f32.partialorder %v313, 0.0
        %vm826 = vcmp.ge.f32.partialorder %v314, 0.0
        %vm827 = vcmp.ge.f32.partialorder %v315, 0.0
        %vm828 = vcmp.ge.f32.partialorder %v316, 0.0
        %vm829 = vcmp.ge.f32.partialorder %v317, 0.0
        %vm830 = vcmp.ge.f32.partialorder %v318, 0.0
        %vm831 = vcmp.ge.f32.partialorder %v319, 0.0
        %vm832 = vcmp.ge.f32.partialorder %v320, 0.0
        %vm833 = vcmp.ge.f32.partialorder %v321, 0.0
        %vm834 = vcmp.ge.f32.partialorder %v322, 0.0
        %vm835 = vcmp.ge.f32.partialorder %v323, 0.0
        %vm836 = vcmp.ge.f32.partialorder %v324, 0.0
        %vm837 = vcmp.ge.f32.partialorder %v325, 0.0
        %vm838 = vcmp.ge.f32.partialorder %v326, 0.0
        %vm839 = vcmp.ge.f32.partialorder %v327, 0.0
        %vm840 = vcmp.ge.f32.partialorder %v328, 0.0
        %vm841 = vcmp.ge.f32.partialorder %v329, 0.0
        %vm842 = vcmp.ge.f32.partialorder %v330, 0.0
        %vm843 = vcmp.ge.f32.partialorder %v331, 0.0
        %vm844 = vcmp.ge.f32.partialorder %v332, 0.0
        %vm845 = vcmp.ge.f32.partialorder %v333, 0.0
        %vm846 = vcmp.ge.f32.partialorder %v334, 0.0
        %vm847 = vcmp.ge.f32.partialorder %v335, 0.0
        %vm848 = vcmp.ge.f32.partialorder %v336, 0.0
        %vm849 = vcmp.ge.f32.partialorder %v337, 0.0
        %vm850 = vcmp.ge.f32.partialorder %v338, 0.0
        %vm851 = vcmp.ge.f32.partialorder %v339, 0.0
        %vm852 = vcmp.ge.f32.partialorder %v340, 0.0
        %vm853 = vcmp.ge.f32.partialorder %v341, 0.0
        %vm854 = vcmp.ge.f32.partialorder %v342, 0.0
        %vm855 = vcmp.ge.f32.partialorder %v343, 0.0
        %vm856 = vcmp.ge.f32.partialorder %v344, 0.0
        %vm857 = vcmp.ge.f32.partialorder %v345, 0.0
        %vm858 = vcmp.ge.f32.partialorder %v346, 0.0
        %vm859 = vcmp.ge.f32.partialorder %v347, 0.0
        %vm860 = vcmp.ge.f32.partialorder %v348, 0.0
        %vm861 = vcmp.ge.f32.partialorder %v349, 0.0
        %vm862 = vcmp.ge.f32.partialorder %v350, 0.0
        %vm863 = vcmp.ge.f32.partialorder %v351, 0.0
        %vm864 = vcmp.ge.f32.partialorder %v352, 0.0
        %vm865 = vcmp.ge.f32.partialorder %v353, 0.0
        %vm866 = vcmp.ge.f32.partialorder %v354, 0.0
        %vm867 = vcmp.ge.f32.partialorder %v355, 0.0
        %vm868 = vcmp.ge.f32.partialorder %v356, 0.0
        %vm869 = vcmp.ge.f32.partialorder %v357, 0.0
        %vm870 = vcmp.ge.f32.partialorder %v358, 0.0
        %vm871 = vcmp.ge.f32.partialorder %v359, 0.0
        %vm872 = vcmp.ge.f32.partialorder %v360, 0.0
        %vm873 = vcmp.ge.f32.partialorder %v361, 0.0
        %vm874 = vcmp.ge.f32.partialorder %v362, 0.0
        %vm875 = vcmp.ge.f32.partialorder %v363, 0.0
        %vm876 = vcmp.ge.f32.partialorder %v364, 0.0
        %vm877 = vcmp.ge.f32.partialorder %v365, 0.0
        %vm878 = vcmp.ge.f32.partialorder %v366, 0.0
        %vm879 = vcmp.ge.f32.partialorder %v367, 0.0
        %vm880 = vcmp.ge.f32.partialorder %v368, 0.0
        %vm881 = vcmp.ge.f32.partialorder %v369, 0.0
        %vm882 = vcmp.ge.f32.partialorder %v370, 0.0
        %vm883 = vcmp.ge.f32.partialorder %v371, 0.0
        %vm884 = vcmp.ge.f32.partialorder %v372, 0.0
        %vm885 = vcmp.ge.f32.partialorder %v373, 0.0
        %vm886 = vcmp.ge.f32.partialorder %v374, 0.0
        %vm887 = vcmp.ge.f32.partialorder %v375, 0.0
        %vm888 = vcmp.ge.f32.partialorder %v376, 0.0
        %vm889 = vcmp.ge.f32.partialorder %v377, 0.0
        %vm890 = vcmp.ge.f32.partialorder %v378, 0.0
        %vm891 = vcmp.ge.f32.partialorder %v379, 0.0
        %vm892 = vcmp.ge.f32.partialorder %v380, 0.0
        %vm893 = vcmp.ge.f32.partialorder %v381, 0.0
        %vm894 = vcmp.ge.f32.partialorder %v382, 0.0
        %vm895 = vcmp.ge.f32.partialorder %v383, 0.0
        %vm896 = vcmp.ge.f32.partialorder %v384, 0.0
        %vm897 = vcmp.ge.f32.partialorder %v385, 0.0
        %vm898 = vcmp.ge.f32.partialorder %v386, 0.0
        %vm899 = vcmp.ge.f32.partialorder %v387, 0.0
        %vm900 = vcmp.ge.f32.partialorder %v388, 0.0
        %vm901 = vcmp.ge.f32.partialorder %v389, 0.0
        %vm902 = vcmp.ge.f32.partialorder %v390, 0.0
        %vm903 = vcmp.ge.f32.partialorder %v391, 0.0
        %vm904 = vcmp.ge.f32.partialorder %v392, 0.0
        %vm905 = vcmp.ge.f32.partialorder %v393, 0.0
        %vm906 = vcmp.ge.f32.partialorder %v394, 0.0
        %vm907 = vcmp.ge.f32.partialorder %v395, 0.0
        %vm908 = vcmp.ge.f32.partialorder %v396, 0.0
        %vm909 = vcmp.ge.f32.partialorder %v397, 0.0
        %vm910 = vcmp.ge.f32.partialorder %v398, 0.0
        %vm911 = vcmp.ge.f32.partialorder %v399, 0.0
        %vm912 = vcmp.ge.f32.partialorder %v400, 0.0
        %vm913 = vcmp.ge.f32.partialorder %v401, 0.0
        %vm914 = vcmp.ge.f32.partialorder %v402, 0.0
        %vm915 = vcmp.ge.f32.partialorder %v403, 0.0
        %vm916 = vcmp.ge.f32.partialorder %v404, 0.0
        %vm917 = vcmp.ge.f32.partialorder %v405, 0.0
        %vm918 = vcmp.ge.f32.partialorder %v406, 0.0
        %vm919 = vcmp.ge.f32.partialorder %v407, 0.0
        %vm920 = vcmp.ge.f32.partialorder %v408, 0.0
        %vm921 = vcmp.ge.f32.partialorder %v409, 0.0
        %vm922 = vcmp.ge.f32.partialorder %v410, 0.0
        %vm923 = vcmp.ge.f32.partialorder %v411, 0.0
        %vm924 = vcmp.ge.f32.partialorder %v412, 0.0
        %vm925 = vcmp.ge.f32.partialorder %v413, 0.0
        %vm926 = vcmp.ge.f32.partialorder %v414, 0.0
        %vm927 = vcmp.ge.f32.partialorder %v415, 0.0
        %vm928 = vcmp.ge.f32.partialorder %v416, 0.0
        %vm929 = vcmp.ge.f32.partialorder %v417, 0.0
        %vm930 = vcmp.ge.f32.partialorder %v418, 0.0
        %vm931 = vcmp.ge.f32.partialorder %v419, 0.0
        %vm932 = vcmp.ge.f32.partialorder %v420, 0.0
        %vm933 = vcmp.ge.f32.partialorder %v421, 0.0
        %vm934 = vcmp.ge.f32.partialorder %v422, 0.0
        %vm935 = vcmp.ge.f32.partialorder %v423, 0.0
        %vm936 = vcmp.ge.f32.partialorder %v424, 0.0
        %vm937 = vcmp.ge.f32.partialorder %v425, 0.0
        %vm938 = vcmp.ge.f32.partialorder %v426, 0.0
        %vm939 = vcmp.ge.f32.partialorder %v427, 0.0
        %vm940 = vcmp.ge.f32.partialorder %v428, 0.0
        %vm941 = vcmp.ge.f32.partialorder %v429, 0.0
        %vm942 = vcmp.ge.f32.partialorder %v430, 0.0
        %vm943 = vcmp.ge.f32.partialorder %v431, 0.0
        %vm944 = vcmp.ge.f32.partialorder %v432, 0.0
        %vm945 = vcmp.ge.f32.partialorder %v433, 0.0
        %vm946 = vcmp.ge.f32.partialorder %v434, 0.0
        %vm947 = vcmp.ge.f32.partialorder %v435, 0.0
        %vm948 = vcmp.ge.f32.partialorder %v436, 0.0
        %vm949 = vcmp.ge.f32.partialorder %v437, 0.0
        %vm950 = vcmp.ge.f32.partialorder %v438, 0.0
        %vm951 = vcmp.ge.f32.partialorder %v439, 0.0
        %vm952 = vcmp.ge.f32.partialorder %v440, 0.0
        %vm953 = vcmp.ge.f32.partialorder %v441, 0.0
        %vm954 = vcmp.ge.f32.partialorder %v442, 0.0
        %vm955 = vcmp.ge.f32.partialorder %v443, 0.0
        %vm956 = vcmp.ge.f32.partialorder %v444, 0.0
        %vm957 = vcmp.ge.f32.partialorder %v445, 0.0
        %vm958 = vcmp.ge.f32.partialorder %v446, 0.0
        %vm959 = vcmp.ge.f32.partialorder %v447, 0.0
        %vm960 = vcmp.ge.f32.partialorder %v448, 0.0
        %vm961 = vcmp.ge.f32.partialorder %v449, 0.0
        %vm962 = vcmp.ge.f32.partialorder %v450, 0.0
        %vm963 = vcmp.ge.f32.partialorder %v451, 0.0
        %vm964 = vcmp.ge.f32.partialorder %v452, 0.0
        %vm965 = vcmp.ge.f32.partialorder %v453, 0.0
        %vm966 = vcmp.ge.f32.partialorder %v454, 0.0
        %vm967 = vcmp.ge.f32.partialorder %v455, 0.0
        %vm968 = vcmp.ge.f32.partialorder %v456, 0.0
        %vm969 = vcmp.ge.f32.partialorder %v457, 0.0
        %vm970 = vcmp.ge.f32.partialorder %v458, 0.0
        %vm971 = vcmp.ge.f32.partialorder %v459, 0.0
        %vm972 = vcmp.ge.f32.partialorder %v460, 0.0
        %vm973 = vcmp.ge.f32.partialorder %v461, 0.0
        %vm974 = vcmp.ge.f32.partialorder %v462, 0.0
        %vm975 = vcmp.ge.f32.partialorder %v463, 0.0
        %vm976 = vcmp.ge.f32.partialorder %v464, 0.0
        %vm977 = vcmp.ge.f32.partialorder %v465, 0.0
        %vm978 = vcmp.ge.f32.partialorder %v466, 0.0
        %vm979 = vcmp.ge.f32.partialorder %v467, 0.0
        %vm980 = vcmp.ge.f32.partialorder %v468, 0.0
        %vm981 = vcmp.ge.f32.partialorder %v469, 0.0
        %vm982 = vcmp.ge.f32.partialorder %v470, 0.0
        %vm983 = vcmp.ge.f32.partialorder %v471, 0.0
        %vm984 = vcmp.ge.f32.partialorder %v472, 0.0
        %vm985 = vcmp.ge.f32.partialorder %v473, 0.0
        %vm986 = vcmp.ge.f32.partialorder %v474, 0.0
        %vm987 = vcmp.ge.f32.partialorder %v475, 0.0
        %vm988 = vcmp.ge.f32.partialorder %v476, 0.0
        %vm989 = vcmp.ge.f32.partialorder %v477, 0.0
        %vm990 = vcmp.ge.f32.partialorder %v478, 0.0
        %vm991 = vcmp.ge.f32.partialorder %v479, 0.0
        %vm992 = vcmp.ge.f32.partialorder %v480, 0.0
        %vm993 = vcmp.ge.f32.partialorder %v481, 0.0
        %vm994 = vcmp.ge.f32.partialorder %v482, 0.0
        %vm995 = vcmp.ge.f32.partialorder %v483, 0.0
        %vm996 = vcmp.ge.f32.partialorder %v484, 0.0
        %vm997 = vcmp.ge.f32.partialorder %v485, 0.0
        %vm998 = vcmp.ge.f32.partialorder %v486, 0.0
        %vm999 = vcmp.ge.f32.partialorder %v487, 0.0
        %vm1000 = vcmp.ge.f32.partialorder %v488, 0.0
        %vm1001 = vcmp.ge.f32.partialorder %v489, 0.0
        %vm1002 = vcmp.ge.f32.partialorder %v490, 0.0
        %vm1003 = vcmp.ge.f32.partialorder %v491, 0.0
        %vm1004 = vcmp.ge.f32.partialorder %v492, 0.0
        %vm1005 = vcmp.ge.f32.partialorder %v493, 0.0
        %vm1006 = vcmp.ge.f32.partialorder %v494, 0.0
        %vm1007 = vcmp.ge.f32.partialorder %v495, 0.0
        %vm1008 = vcmp.ge.f32.partialorder %v496, 0.0
        %vm1009 = vcmp.ge.f32.partialorder %v497, 0.0
        %vm1010 = vcmp.ge.f32.partialorder %v498, 0.0
        %vm1011 = vcmp.ge.f32.partialorder %v499, 0.0
        %vm1012 = vcmp.ge.f32.partialorder %v500, 0.0
        %vm1013 = vcmp.ge.f32.partialorder %v501, 0.0
        %vm1014 = vcmp.ge.f32.partialorder %v502, 0.0
        %vm1015 = vcmp.ge.f32.partialorder %v503, 0.0
        %vm1016 = vcmp.ge.f32.partialorder %v504, 0.0
        %vm1017 = vcmp.ge.f32.partialorder %v505, 0.0
        %vm1018 = vcmp.ge.f32.partialorder %v506, 0.0
        %vm1019 = vcmp.ge.f32.partialorder %v507, 0.0
        %vm1020 = vcmp.ge.f32.partialorder %v508, 0.0
        %vm1021 = vcmp.ge.f32.partialorder %v509, 0.0
        %vm1022 = vcmp.ge.f32.partialorder %v510, 0.0
        %vm1023 = vcmp.ge.f32.partialorder %v511, 0.0
        %vm1024 = vcmp.ge.f32.partialorder %v512, 0.0
        %vm1025 = vcmp.ge.f32.partialorder %v513, 0.0
        %vm1026 = vcmp.ge.f32.partialorder %v514, 0.0
        %vm1027 = vcmp.ge.f32.partialorder %v515, 0.0
        %vm1028 = vcmp.ge.f32.partialorder %v516, 0.0
        %vm1029 = vcmp.ge.f32.partialorder %v517, 0.0
        %vm1030 = vcmp.ge.f32.partialorder %v518, 0.0
        %vm1031 = vcmp.ge.f32.partialorder %v519, 0.0
        %vm1032 = vcmp.ge.f32.partialorder %v520, 0.0
        %vm1033 = vcmp.ge.f32.partialorder %v521, 0.0
        %vm1034 = vcmp.ge.f32.partialorder %v522, 0.0
        %vm1035 = vcmp.ge.f32.partialorder %v523, 0.0
        %vm1036 = vcmp.ge.f32.partialorder %v524, 0.0
        %vm1037 = vcmp.ge.f32.partialorder %v525, 0.0
        %vm1038 = vcmp.ge.f32.partialorder %v526, 0.0
        %vm1039 = vcmp.ge.f32.partialorder %v527, 0.0
        %vm1040 = vcmp.ge.f32.partialorder %v528, 0.0
        %vm1041 = vcmp.ge.f32.partialorder %v529, 0.0
        %vm1042 = vcmp.ge.f32.partialorder %v530, 0.0
        %vm1043 = vcmp.ge.f32.partialorder %v531, 0.0
        %vm1044 = vcmp.ge.f32.partialorder %v532, 0.0
        %vm1045 = vcmp.ge.f32.partialorder %v533, 0.0
        %vm1046 = vcmp.ge.f32.partialorder %v534, 0.0
        %vm1047 = vcmp.ge.f32.partialorder %v535, 0.0
        %vm1048 = vcmp.ge.f32.partialorder %v536, 0.0
        %vm1049 = vcmp.ge.f32.partialorder %v537, 0.0
        %vm1050 = vcmp.ge.f32.partialorder %v538, 0.0
        %vm1051 = vcmp.ge.f32.partialorder %v539, 0.0
        %vm1052 = vcmp.ge.f32.partialorder %v540, 0.0
        %vm1053 = vcmp.ge.f32.partialorder %v541, 0.0
        %vm1054 = vcmp.ge.f32.partialorder %v542, 0.0
        %vm1055 = vcmp.ge.f32.partialorder %v543, 0.0
        %vm1056 = vcmp.ge.f32.partialorder %v544, 0.0
        %vm1057 = vcmp.ge.f32.partialorder %v545, 0.0
        %vm1058 = vcmp.ge.f32.partialorder %v546, 0.0
        %vm1059 = vcmp.ge.f32.partialorder %v547, 0.0
        %vm1060 = vcmp.ge.f32.partialorder %v548, 0.0
        %vm1061 = vcmp.ge.f32.partialorder %v549, 0.0
        %vm1062 = vcmp.ge.f32.partialorder %v550, 0.0
        %vm1063 = vcmp.ge.f32.partialorder %v551, 0.0
        %vm1064 = vcmp.ge.f32.partialorder %v552, 0.0
        %vm1065 = vcmp.ge.f32.partialorder %v553, 0.0
        %vm1066 = vcmp.ge.f32.partialorder %v554, 0.0
        %vm1067 = vcmp.ge.f32.partialorder %v555, 0.0
        %vm1068 = vcmp.ge.f32.partialorder %v556, 0.0
        %vm1069 = vcmp.ge.f32.partialorder %v557, 0.0
        %vm1070 = vcmp.ge.f32.partialorder %v558, 0.0
        %vm1071 = vcmp.ge.f32.partialorder %v559, 0.0
        %vm1072 = vcmp.ge.f32.partialorder %v560, 0.0
        %vm1073 = vcmp.ge.f32.partialorder %v561, 0.0
        %vm1074 = vcmp.ge.f32.partialorder %v562, 0.0
        %vm1075 = vcmp.ge.f32.partialorder %v563, 0.0
        %vm1076 = vcmp.ge.f32.partialorder %v564, 0.0
        %vm1077 = vcmp.ge.f32.partialorder %v565, 0.0
        %vm1078 = vcmp.ge.f32.partialorder %v566, 0.0
        %vm1079 = vcmp.ge.f32.partialorder %v567, 0.0
        %vm1080 = vcmp.ge.f32.partialorder %v568, 0.0
        %vm1081 = vcmp.ge.f32.partialorder %v569, 0.0
        %vm1082 = vcmp.ge.f32.partialorder %v570, 0.0
        %vm1083 = vcmp.ge.f32.partialorder %v571, 0.0
        %vm1084 = vcmp.ge.f32.partialorder %v572, 0.0
        %vm1085 = vcmp.ge.f32.partialorder %v573, 0.0
        %vm1086 = vcmp.ge.f32.partialorder %v574, 0.0
        %vm1087 = vcmp.ge.f32.partialorder %v575, 0.0
        %vm1088 = vcmp.ge.f32.partialorder %v576, 0.0
        %vm1089 = vcmp.ge.f32.partialorder %v577, 0.0
        %vm1090 = vcmp.ge.f32.partialorder %v578, 0.0
        %vm1091 = vcmp.ge.f32.partialorder %v579, 0.0
        %vm1092 = vcmp.ge.f32.partialorder %v580, 0.0
        %vm1093 = vcmp.ge.f32.partialorder %v581, 0.0
        %vm1094 = vcmp.ge.f32.partialorder %v582, 0.0
        %vm1095 = vcmp.ge.f32.partialorder %v583, 0.0
        %vm1096 = vcmp.ge.f32.partialorder %v584, 0.0
        %vm1097 = vcmp.ge.f32.partialorder %v585, 0.0
        %vm1098 = vcmp.ge.f32.partialorder %v586, 0.0
        %vm1099 = vcmp.ge.f32.partialorder %v587, 0.0
        %vm1100 = vcmp.ge.f32.partialorder %v588, 0.0
        %vm1101 = vcmp.ge.f32.partialorder %v589, 0.0
        %vm1102 = vcmp.ge.f32.partialorder %v590, 0.0
        %vm1103 = vcmp.ge.f32.partialorder %v591, 0.0
        %vm1104 = vcmp.ge.f32.partialorder %v592, 0.0
        %vm1105 = vcmp.ge.f32.partialorder %v593, 0.0
        %vm1106 = vcmp.ge.f32.partialorder %v594, 0.0
        %vm1107 = vcmp.ge.f32.partialorder %v595, 0.0
        %vm1108 = vcmp.ge.f32.partialorder %v596, 0.0
        %vm1109 = vcmp.ge.f32.partialorder %v597, 0.0
        %vm1110 = vcmp.ge.f32.partialorder %v598, 0.0
        %vm1111 = vcmp.ge.f32.partialorder %v599, 0.0
        %vm1112 = vcmp.ge.f32.partialorder %v600, 0.0
        %vm1113 = vcmp.ge.f32.partialorder %v601, 0.0
        %vm1114 = vcmp.ge.f32.partialorder %v602, 0.0
        %vm1115 = vcmp.ge.f32.partialorder %v603, 0.0
        %vm1116 = vcmp.ge.f32.partialorder %v604, 0.0
        %vm1117 = vcmp.ge.f32.partialorder %v605, 0.0
        %vm1118 = vcmp.ge.f32.partialorder %v606, 0.0
        %vm1119 = vcmp.ge.f32.partialorder %v607, 0.0
        %vm1120 = vcmp.ge.f32.partialorder %v608, 0.0
        %vm1121 = vcmp.ge.f32.partialorder %v609, 0.0
        %vm1122 = vcmp.ge.f32.partialorder %v610, 0.0
        %vm1123 = vcmp.ge.f32.partialorder %v611, 0.0
        %vm1124 = vcmp.ge.f32.partialorder %v612, 0.0
        %vm1125 = vcmp.ge.f32.partialorder %v613, 0.0
        %vm1126 = vcmp.ge.f32.partialorder %v614, 0.0
        %vm1127 = vcmp.ge.f32.partialorder %v615, 0.0
        %vm1128 = vcmp.ge.f32.partialorder %v616, 0.0
        %vm1129 = vcmp.ge.f32.partialorder %v617, 0.0
        %vm1130 = vcmp.ge.f32.partialorder %v618, 0.0
        %vm1131 = vcmp.ge.f32.partialorder %v619, 0.0
        %vm1132 = vcmp.ge.f32.partialorder %v620, 0.0
        %vm1133 = vcmp.ge.f32.partialorder %v621, 0.0
        %vm1134 = vcmp.ge.f32.partialorder %v622, 0.0
        %vm1135 = vcmp.ge.f32.partialorder %v623, 0.0
        %vm1136 = vcmp.ge.f32.partialorder %v624, 0.0
        %vm1137 = vcmp.ge.f32.partialorder %v625, 0.0
        %vm1138 = vcmp.ge.f32.partialorder %v626, 0.0
        %vm1139 = vcmp.ge.f32.partialorder %v627, 0.0
        %vm1140 = vcmp.ge.f32.partialorder %v628, 0.0
        %vm1141 = vcmp.ge.f32.partialorder %v629, 0.0
        %vm1142 = vcmp.ge.f32.partialorder %v630, 0.0
        %vm1143 = vcmp.ge.f32.partialorder %v631, 0.0
        %vm1144 = vcmp.ge.f32.partialorder %v632, 0.0
        %vm1145 = vcmp.ge.f32.partialorder %v633, 0.0
        %vm1146 = vcmp.ge.f32.partialorder %v634, 0.0
        %vm1147 = vcmp.ge.f32.partialorder %v635, 0.0
        %vm1148 = vcmp.ge.f32.partialorder %v636, 0.0
        %vm1149 = vcmp.ge.f32.partialorder %v637, 0.0
        %vm1150 = vcmp.ge.f32.partialorder %v638, 0.0
        %vm1151 = vcmp.ge.f32.partialorder %v639, 0.0
        %vm1152 = vcmp.ge.f32.partialorder %v640, 0.0
        %vm1153 = vcmp.ge.f32.partialorder %v641, 0.0
        %vm1154 = vcmp.ge.f32.partialorder %v642, 0.0
        %vm1155 = vcmp.ge.f32.partialorder %v643, 0.0
        %vm1156 = vcmp.ge.f32.partialorder %v644, 0.0
        %vm1157 = vcmp.ge.f32.partialorder %v645, 0.0
        %vm1158 = vcmp.ge.f32.partialorder %v646, 0.0
        %vm1159 = vcmp.ge.f32.partialorder %v647, 0.0
        %vm1160 = vcmp.ge.f32.partialorder %v648, 0.0
        %vm1161 = vcmp.ge.f32.partialorder %v649, 0.0
        %vm1162 = vcmp.ge.f32.partialorder %v650, 0.0
        %vm1163 = vcmp.ge.f32.partialorder %v651, 0.0
        %vm1164 = vcmp.ge.f32.partialorder %v652, 0.0
        %vm1165 = vcmp.ge.f32.partialorder %v653, 0.0
        %vm1166 = vcmp.ge.f32.partialorder %v654, 0.0
        %vm1167 = vcmp.ge.f32.partialorder %v655, 0.0
        %vm1168 = vcmp.ge.f32.partialorder %v656, 0.0
        %vm1169 = vcmp.ge.f32.partialorder %v657, 0.0
        %vm1170 = vcmp.ge.f32.partialorder %v658, 0.0
        %vm1171 = vcmp.ge.f32.partialorder %v659, 0.0
        %vm1172 = vcmp.ge.f32.partialorder %v660, 0.0
        %vm1173 = vcmp.ge.f32.partialorder %v661, 0.0
        %vm1174 = vcmp.ge.f32.partialorder %v662, 0.0
        %vm1175 = vcmp.ge.f32.partialorder %v663, 0.0
        %vm1176 = vcmp.ge.f32.partialorder %v664, 0.0
        %vm1177 = vcmp.ge.f32.partialorder %v665, 0.0
        %vm1178 = vcmp.ge.f32.partialorder %v666, 0.0
        %vm1179 = vcmp.ge.f32.partialorder %v667, 0.0
        %vm1180 = vcmp.ge.f32.partialorder %v668, 0.0
        %vm1181 = vcmp.ge.f32.partialorder %v669, 0.0
        %vm1182 = vcmp.ge.f32.partialorder %v670, 0.0
        %vm1183 = vcmp.ge.f32.partialorder %v671, 0.0
        %vm1184 = vcmp.ge.f32.partialorder %v672, 0.0
        %vm1185 = vcmp.ge.f32.partialorder %v673, 0.0
        %vm1186 = vcmp.ge.f32.partialorder %v674, 0.0
        %vm1187 = vcmp.ge.f32.partialorder %v675, 0.0
        %vm1188 = vcmp.ge.f32.partialorder %v676, 0.0
        %vm1189 = vcmp.ge.f32.partialorder %v677, 0.0
        %vm1190 = vcmp.ge.f32.partialorder %v678, 0.0
        %vm1191 = vcmp.ge.f32.partialorder %v679, 0.0
        %vm1192 = vcmp.ge.f32.partialorder %v680, 0.0
        %vm1193 = vcmp.ge.f32.partialorder %v681, 0.0
        %vm1194 = vcmp.ge.f32.partialorder %v682, 0.0
        %vm1195 = vcmp.ge.f32.partialorder %v683, 0.0
        %vm1196 = vcmp.ge.f32.partialorder %v684, 0.0
        %vm1197 = vcmp.ge.f32.partialorder %v685, 0.0
        %vm1198 = vcmp.ge.f32.partialorder %v686, 0.0
        %vm1199 = vcmp.ge.f32.partialorder %v687, 0.0
        %vm1200 = vcmp.ge.f32.partialorder %v688, 0.0
        %vm1201 = vcmp.ge.f32.partialorder %v689, 0.0
        %vm1202 = vcmp.ge.f32.partialorder %v690, 0.0
        %vm1203 = vcmp.ge.f32.partialorder %v691, 0.0
        %vm1204 = vcmp.ge.f32.partialorder %v692, 0.0
        %vm1205 = vcmp.ge.f32.partialorder %v693, 0.0
        %vm1206 = vcmp.ge.f32.partialorder %v694, 0.0
        %vm1207 = vcmp.ge.f32.partialorder %v695, 0.0
        %vm1208 = vcmp.ge.f32.partialorder %v696, 0.0
        %vm1209 = vcmp.ge.f32.partialorder %v697, 0.0
        %vm1210 = vcmp.ge.f32.partialorder %v698, 0.0
        %vm1211 = vcmp.ge.f32.partialorder %v699, 0.0
        %vm1212 = vcmp.ge.f32.partialorder %v700, 0.0
        %vm1213 = vcmp.ge.f32.partialorder %v701, 0.0
        %vm1214 = vcmp.ge.f32.partialorder %v702, 0.0
        %vm1215 = vcmp.ge.f32.partialorder %v703, 0.0
        %vm1216 = vcmp.ge.f32.partialorder %v704, 0.0
        %vm1217 = vcmp.ge.f32.partialorder %v705, 0.0
        %vm1218 = vcmp.ge.f32.partialorder %v706, 0.0
        %vm1219 = vcmp.ge.f32.partialorder %v707, 0.0
        %vm1220 = vcmp.ge.f32.partialorder %v708, 0.0
        %vm1221 = vcmp.ge.f32.partialorder %v709, 0.0
        %vm1222 = vcmp.ge.f32.partialorder %v710, 0.0
        %vm1223 = vcmp.ge.f32.partialorder %v711, 0.0
        %vm1224 = vcmp.ge.f32.partialorder %v712, 0.0
        %vm1225 = vcmp.ge.f32.partialorder %v713, 0.0
        %vm1226 = vcmp.ge.f32.partialorder %v714, 0.0
        %vm1227 = vcmp.ge.f32.partialorder %v715, 0.0
        %vm1228 = vcmp.ge.f32.partialorder %v716, 0.0
        %vm1229 = vcmp.ge.f32.partialorder %v717, 0.0
        %vm1230 = vcmp.ge.f32.partialorder %v718, 0.0
        %vm1231 = vcmp.ge.f32.partialorder %v719, 0.0
        %vm1232 = vcmp.ge.f32.partialorder %v720, 0.0
        %vm1233 = vcmp.ge.f32.partialorder %v721, 0.0
        %vm1234 = vcmp.ge.f32.partialorder %v722, 0.0
        %vm1235 = vcmp.ge.f32.partialorder %v723, 0.0
        %vm1236 = vcmp.ge.f32.partialorder %v724, 0.0
        %vm1237 = vcmp.ge.f32.partialorder %v725, 0.0
        %vm1238 = vcmp.ge.f32.partialorder %v726, 0.0
        %vm1239 = vcmp.ge.f32.partialorder %v727, 0.0
        %vm1240 = vcmp.ge.f32.partialorder %v728, 0.0
        %vm1241 = vcmp.ge.f32.partialorder %v729, 0.0
        %vm1242 = vcmp.ge.f32.partialorder %v730, 0.0
        %vm1243 = vcmp.ge.f32.partialorder %v731, 0.0
        %vm1244 = vcmp.ge.f32.partialorder %v732, 0.0
        %vm1245 = vcmp.ge.f32.partialorder %v733, 0.0
        %vm1246 = vcmp.ge.f32.partialorder %v734, 0.0
        %vm1247 = vcmp.ge.f32.partialorder %v735, 0.0
        %vm1248 = vcmp.ge.f32.partialorder %v736, 0.0
        %vm1249 = vcmp.ge.f32.partialorder %v737, 0.0
        %vm1250 = vcmp.ge.f32.partialorder %v738, 0.0
        %vm1251 = vcmp.ge.f32.partialorder %v739, 0.0
        %vm1252 = vcmp.ge.f32.partialorder %v740, 0.0
        %vm1253 = vcmp.ge.f32.partialorder %v741, 0.0
        %vm1254 = vcmp.ge.f32.partialorder %v742, 0.0
        %vm1255 = vcmp.ge.f32.partialorder %v743, 0.0
        %vm1256 = vcmp.ge.f32.partialorder %v744, 0.0
        %vm1257 = vcmp.ge.f32.partialorder %v745, 0.0
        %vm1258 = vcmp.ge.f32.partialorder %v746, 0.0
        %vm1259 = vcmp.ge.f32.partialorder %v747, 0.0
        %vm1260 = vcmp.ge.f32.partialorder %v748, 0.0
        %vm1261 = vcmp.ge.f32.partialorder %v749, 0.0
        %vm1262 = vcmp.ge.f32.partialorder %v750, 0.0
        %vm1263 = vcmp.ge.f32.partialorder %v751, 0.0
        %vm1264 = vcmp.ge.f32.partialorder %v752, 0.0
        %vm1265 = vcmp.ge.f32.partialorder %v753, 0.0
        %vm1266 = vcmp.ge.f32.partialorder %v754, 0.0
        %vm1267 = vcmp.ge.f32.partialorder %v755, 0.0
        %vm1268 = vcmp.ge.f32.partialorder %v756, 0.0
        %vm1269 = vcmp.ge.f32.partialorder %v757, 0.0
        %vm1270 = vcmp.ge.f32.partialorder %v758, 0.0
        %vm1271 = vcmp.ge.f32.partialorder %v759, 0.0
        %vm1272 = vcmp.ge.f32.partialorder %v760, 0.0
        %vm1273 = vcmp.ge.f32.partialorder %v761, 0.0
        %v1274 = vsub.f32 %v250, 1.0
        %v1275 = vsub.f32 %v251, 1.0
        %v1276 = vsub.f32 %v252, 1.0
        %v1277 = vsub.f32 %v253, 1.0
        %v1278 = vsub.f32 %v254, 1.0
        %v1279 = vsub.f32 %v255, 1.0
        %v1280 = vsub.f32 %v256, 1.0
        %v1281 = vsub.f32 %v257, 1.0
        %v1282 = vsub.f32 %v258, 1.0
        %v1283 = vsub.f32 %v259, 1.0
        %v1284 = vsub.f32 %v260, 1.0
        %v1285 = vsub.f32 %v261, 1.0
        %v1286 = vsub.f32 %v262, 1.0
        %v1287 = vsub.f32 %v263, 1.0
        %v1288 = vsub.f32 %v264, 1.0
        %v1289 = vsub.f32 %v265, 1.0
        %v1290 = vsub.f32 %v266, 1.0
        %v1291 = vsub.f32 %v267, 1.0
        %v1292 = vsub.f32 %v268, 1.0
        %v1293 = vsub.f32 %v269, 1.0
        %v1294 = vsub.f32 %v270, 1.0
        %v1295 = vsub.f32 %v271, 1.0
        %v1296 = vsub.f32 %v272, 1.0
        %v1297 = vsub.f32 %v273, 1.0
        %v1298 = vsub.f32 %v274, 1.0
        %v1299 = vsub.f32 %v275, 1.0
        %v1300 = vsub.f32 %v276, 1.0
        %v1301 = vsub.f32 %v277, 1.0
        %v1302 = vsub.f32 %v278, 1.0
        %v1303 = vsub.f32 %v279, 1.0
        %v1304 = vsub.f32 %v280, 1.0
        %v1305 = vsub.f32 %v281, 1.0
        %v1306 = vsub.f32 %v282, 1.0
        %v1307 = vsub.f32 %v283, 1.0
        %v1308 = vsub.f32 %v284, 1.0
        %v1309 = vsub.f32 %v285, 1.0
        %v1310 = vsub.f32 %v286, 1.0
        %v1311 = vsub.f32 %v287, 1.0
        %v1312 = vsub.f32 %v288, 1.0
        %v1313 = vsub.f32 %v289, 1.0
        %v1314 = vsub.f32 %v290, 1.0
        %v1315 = vsub.f32 %v291, 1.0
        %v1316 = vsub.f32 %v292, 1.0
        %v1317 = vsub.f32 %v293, 1.0
        %v1318 = vsub.f32 %v294, 1.0
        %v1319 = vsub.f32 %v295, 1.0
        %v1320 = vsub.f32 %v296, 1.0
        %v1321 = vsub.f32 %v297, 1.0
        %v1322 = vsub.f32 %v298, 1.0
        %v1323 = vsub.f32 %v299, 1.0
        %v1324 = vsub.f32 %v300, 1.0
        %v1325 = vsub.f32 %v301, 1.0
        %v1326 = vsub.f32 %v302, 1.0
        %v1327 = vsub.f32 %v303, 1.0
        %v1328 = vsub.f32 %v304, 1.0
        %v1329 = vsub.f32 %v305, 1.0
        %v1330 = vsub.f32 %v306, 1.0
        %v1331 = vsub.f32 %v307, 1.0
        %v1332 = vsub.f32 %v308, 1.0
        %v1333 = vsub.f32 %v309, 1.0
        %v1334 = vsub.f32 %v310, 1.0
        %v1335 = vsub.f32 %v311, 1.0
        %v1336 = vsub.f32 %v312, 1.0
        %v1337 = vsub.f32 %v313, 1.0
        %v1338 = vsub.f32 %v314, 1.0
        %v1339 = vsub.f32 %v315, 1.0
        %v1340 = vsub.f32 %v316, 1.0
        %v1341 = vsub.f32 %v317, 1.0
        %v1342 = vsub.f32 %v318, 1.0
        %v1343 = vsub.f32 %v319, 1.0
        %v1344 = vsub.f32 %v320, 1.0
        %v1345 = vsub.f32 %v321, 1.0
        %v1346 = vsub.f32 %v322, 1.0
        %v1347 = vsub.f32 %v323, 1.0
        %v1348 = vsub.f32 %v324, 1.0
        %v1349 = vsub.f32 %v325, 1.0
        %v1350 = vsub.f32 %v326, 1.0
        %v1351 = vsub.f32 %v327, 1.0
        %v1352 = vsub.f32 %v328, 1.0
        %v1353 = vsub.f32 %v329, 1.0
        %v1354 = vsub.f32 %v330, 1.0
        %v1355 = vsub.f32 %v331, 1.0
        %v1356 = vsub.f32 %v332, 1.0
        %v1357 = vsub.f32 %v333, 1.0
        %v1358 = vsub.f32 %v334, 1.0
        %v1359 = vsub.f32 %v335, 1.0
        %v1360 = vsub.f32 %v336, 1.0
        %v1361 = vsub.f32 %v337, 1.0
        %v1362 = vsub.f32 %v338, 1.0
        %v1363 = vsub.f32 %v339, 1.0
        %v1364 = vsub.f32 %v340, 1.0
        %v1365 = vsub.f32 %v341, 1.0
        %v1366 = vsub.f32 %v342, 1.0
        %v1367 = vsub.f32 %v343, 1.0
        %v1368 = vsub.f32 %v344, 1.0
        %v1369 = vsub.f32 %v345, 1.0
        %v1370 = vsub.f32 %v346, 1.0
        %v1371 = vsub.f32 %v347, 1.0
        %v1372 = vsub.f32 %v348, 1.0
        %v1373 = vsub.f32 %v349, 1.0
        %v1374 = vsub.f32 %v350, 1.0
        %v1375 = vsub.f32 %v351, 1.0
        %v1376 = vsub.f32 %v352, 1.0
        %v1377 = vsub.f32 %v353, 1.0
        %v1378 = vsub.f32 %v354, 1.0
        %v1379 = vsub.f32 %v355, 1.0
        %v1380 = vsub.f32 %v356, 1.0
        %v1381 = vsub.f32 %v357, 1.0
        %v1382 = vsub.f32 %v358, 1.0
        %v1383 = vsub.f32 %v359, 1.0
        %v1384 = vsub.f32 %v360, 1.0
        %v1385 = vsub.f32 %v361, 1.0
        %v1386 = vsub.f32 %v362, 1.0
        %v1387 = vsub.f32 %v363, 1.0
        %v1388 = vsub.f32 %v364, 1.0
        %v1389 = vsub.f32 %v365, 1.0
        %v1390 = vsub.f32 %v366, 1.0
        %v1391 = vsub.f32 %v367, 1.0
        %v1392 = vsub.f32 %v368, 1.0
        %v1393 = vsub.f32 %v369, 1.0
        %v1394 = vsub.f32 %v370, 1.0
        %v1395 = vsub.f32 %v371, 1.0
        %v1396 = vsub.f32 %v372, 1.0
        %v1397 = vsub.f32 %v373, 1.0
        %v1398 = vsub.f32 %v374, 1.0
        %v1399 = vsub.f32 %v375, 1.0
        %v1400 = vsub.f32 %v376, 1.0
        %v1401 = vsub.f32 %v377, 1.0
        %v1402 = vsub.f32 %v378, 1.0
        %v1403 = vsub.f32 %v379, 1.0
        %v1404 = vsub.f32 %v380, 1.0
        %v1405 = vsub.f32 %v381, 1.0
        %v1406 = vsub.f32 %v382, 1.0
        %v1407 = vsub.f32 %v383, 1.0
        %v1408 = vsub.f32 %v384, 1.0
        %v1409 = vsub.f32 %v385, 1.0
        %v1410 = vsub.f32 %v386, 1.0
        %v1411 = vsub.f32 %v387, 1.0
        %v1412 = vsub.f32 %v388, 1.0
        %v1413 = vsub.f32 %v389, 1.0
        %v1414 = vsub.f32 %v390, 1.0
        %v1415 = vsub.f32 %v391, 1.0
        %v1416 = vsub.f32 %v392, 1.0
        %v1417 = vsub.f32 %v393, 1.0
        %v1418 = vsub.f32 %v394, 1.0
        %v1419 = vsub.f32 %v395, 1.0
        %v1420 = vsub.f32 %v396, 1.0
        %v1421 = vsub.f32 %v397, 1.0
        %v1422 = vsub.f32 %v398, 1.0
        %v1423 = vsub.f32 %v399, 1.0
        %v1424 = vsub.f32 %v400, 1.0
        %v1425 = vsub.f32 %v401, 1.0
        %v1426 = vsub.f32 %v402, 1.0
        %v1427 = vsub.f32 %v403, 1.0
        %v1428 = vsub.f32 %v404, 1.0
        %v1429 = vsub.f32 %v405, 1.0
        %v1430 = vsub.f32 %v406, 1.0
        %v1431 = vsub.f32 %v407, 1.0
        %v1432 = vsub.f32 %v408, 1.0
        %v1433 = vsub.f32 %v409, 1.0
        %v1434 = vsub.f32 %v410, 1.0
        %v1435 = vsub.f32 %v411, 1.0
        %v1436 = vsub.f32 %v412, 1.0
        %v1437 = vsub.f32 %v413, 1.0
        %v1438 = vsub.f32 %v414, 1.0
        %v1439 = vsub.f32 %v415, 1.0
        %v1440 = vsub.f32 %v416, 1.0
        %v1441 = vsub.f32 %v417, 1.0
        %v1442 = vsub.f32 %v418, 1.0
        %v1443 = vsub.f32 %v419, 1.0
        %v1444 = vsub.f32 %v420, 1.0
        %v1445 = vsub.f32 %v421, 1.0
        %v1446 = vsub.f32 %v422, 1.0
        %v1447 = vsub.f32 %v423, 1.0
        %v1448 = vsub.f32 %v424, 1.0
        %v1449 = vsub.f32 %v425, 1.0
        %v1450 = vsub.f32 %v426, 1.0
        %v1451 = vsub.f32 %v427, 1.0
        %v1452 = vsub.f32 %v428, 1.0
        %v1453 = vsub.f32 %v429, 1.0
        %v1454 = vsub.f32 %v430, 1.0
        %v1455 = vsub.f32 %v431, 1.0
        %v1456 = vsub.f32 %v432, 1.0
        %v1457 = vsub.f32 %v433, 1.0
        %v1458 = vsub.f32 %v434, 1.0
        %v1459 = vsub.f32 %v435, 1.0
        %v1460 = vsub.f32 %v436, 1.0
        %v1461 = vsub.f32 %v437, 1.0
        %v1462 = vsub.f32 %v438, 1.0
        %v1463 = vsub.f32 %v439, 1.0
        %v1464 = vsub.f32 %v440, 1.0
        %v1465 = vsub.f32 %v441, 1.0
        %v1466 = vsub.f32 %v442, 1.0
        %v1467 = vsub.f32 %v443, 1.0
        %v1468 = vsub.f32 %v444, 1.0
        %v1469 = vsub.f32 %v445, 1.0
        %v1470 = vsub.f32 %v446, 1.0
        %v1471 = vsub.f32 %v447, 1.0
        %v1472 = vsub.f32 %v448, 1.0
        %v1473 = vsub.f32 %v449, 1.0
        %v1474 = vsub.f32 %v450, 1.0
        %v1475 = vsub.f32 %v451, 1.0
        %v1476 = vsub.f32 %v452, 1.0
        %v1477 = vsub.f32 %v453, 1.0
        %v1478 = vsub.f32 %v454, 1.0
        %v1479 = vsub.f32 %v455, 1.0
        %v1480 = vsub.f32 %v456, 1.0
        %v1481 = vsub.f32 %v457, 1.0
        %v1482 = vsub.f32 %v458, 1.0
        %v1483 = vsub.f32 %v459, 1.0
        %v1484 = vsub.f32 %v460, 1.0
        %v1485 = vsub.f32 %v461, 1.0
        %v1486 = vsub.f32 %v462, 1.0
        %v1487 = vsub.f32 %v463, 1.0
        %v1488 = vsub.f32 %v464, 1.0
        %v1489 = vsub.f32 %v465, 1.0
        %v1490 = vsub.f32 %v466, 1.0
        %v1491 = vsub.f32 %v467, 1.0
        %v1492 = vsub.f32 %v468, 1.0
        %v1493 = vsub.f32 %v469, 1.0
        %v1494 = vsub.f32 %v470, 1.0
        %v1495 = vsub.f32 %v471, 1.0
        %v1496 = vsub.f32 %v472, 1.0
        %v1497 = vsub.f32 %v473, 1.0
        %v1498 = vsub.f32 %v474, 1.0
        %v1499 = vsub.f32 %v475, 1.0
        %v1500 = vsub.f32 %v476, 1.0
        %v1501 = vsub.f32 %v477, 1.0
        %v1502 = vsub.f32 %v478, 1.0
        %v1503 = vsub.f32 %v479, 1.0
        %v1504 = vsub.f32 %v480, 1.0
        %v1505 = vsub.f32 %v481, 1.0
        %v1506 = vsub.f32 %v482, 1.0
        %v1507 = vsub.f32 %v483, 1.0
        %v1508 = vsub.f32 %v484, 1.0
        %v1509 = vsub.f32 %v485, 1.0
        %v1510 = vsub.f32 %v486, 1.0
        %v1511 = vsub.f32 %v487, 1.0
        %v1512 = vsub.f32 %v488, 1.0
        %v1513 = vsub.f32 %v489, 1.0
        %v1514 = vsub.f32 %v490, 1.0
        %v1515 = vsub.f32 %v491, 1.0
        %v1516 = vsub.f32 %v492, 1.0
        %v1517 = vsub.f32 %v493, 1.0
        %v1518 = vsub.f32 %v494, 1.0
        %v1519 = vsub.f32 %v495, 1.0
        %v1520 = vsub.f32 %v496, 1.0
        %v1521 = vsub.f32 %v497, 1.0
        %v1522 = vsub.f32 %v498, 1.0
        %v1523 = vsub.f32 %v499, 1.0
        %v1524 = vsub.f32 %v500, 1.0
        %v1525 = vsub.f32 %v501, 1.0
        %v1526 = vsub.f32 %v502, 1.0
        %v1527 = vsub.f32 %v503, 1.0
        %v1528 = vsub.f32 %v504, 1.0
        %v1529 = vsub.f32 %v505, 1.0
        %v1530 = vsub.f32 %v506, 1.0
        %v1531 = vsub.f32 %v507, 1.0
        %v1532 = vsub.f32 %v508, 1.0
        %v1533 = vsub.f32 %v509, 1.0
        %v1534 = vsub.f32 %v510, 1.0
        %v1535 = vsub.f32 %v511, 1.0
        %v1536 = vsub.f32 %v512, 1.0
        %v1537 = vsub.f32 %v513, 1.0
        %v1538 = vsub.f32 %v514, 1.0
        %v1539 = vsub.f32 %v515, 1.0
        %v1540 = vsub.f32 %v516, 1.0
        %v1541 = vsub.f32 %v517, 1.0
        %v1542 = vsub.f32 %v518, 1.0
        %v1543 = vsub.f32 %v519, 1.0
        %v1544 = vsub.f32 %v520, 1.0
        %v1545 = vsub.f32 %v521, 1.0
        %v1546 = vsub.f32 %v522, 1.0
        %v1547 = vsub.f32 %v523, 1.0
        %v1548 = vsub.f32 %v524, 1.0
        %v1549 = vsub.f32 %v525, 1.0
        %v1550 = vsub.f32 %v526, 1.0
        %v1551 = vsub.f32 %v527, 1.0
        %v1552 = vsub.f32 %v528, 1.0
        %v1553 = vsub.f32 %v529, 1.0
        %v1554 = vsub.f32 %v530, 1.0
        %v1555 = vsub.f32 %v531, 1.0
        %v1556 = vsub.f32 %v532, 1.0
        %v1557 = vsub.f32 %v533, 1.0
        %v1558 = vsub.f32 %v534, 1.0
        %v1559 = vsub.f32 %v535, 1.0
        %v1560 = vsub.f32 %v536, 1.0
        %v1561 = vsub.f32 %v537, 1.0
        %v1562 = vsub.f32 %v538, 1.0
        %v1563 = vsub.f32 %v539, 1.0
        %v1564 = vsub.f32 %v540, 1.0
        %v1565 = vsub.f32 %v541, 1.0
        %v1566 = vsub.f32 %v542, 1.0
        %v1567 = vsub.f32 %v543, 1.0
        %v1568 = vsub.f32 %v544, 1.0
        %v1569 = vsub.f32 %v545, 1.0
        %v1570 = vsub.f32 %v546, 1.0
        %v1571 = vsub.f32 %v547, 1.0
        %v1572 = vsub.f32 %v548, 1.0
        %v1573 = vsub.f32 %v549, 1.0
        %v1574 = vsub.f32 %v550, 1.0
        %v1575 = vsub.f32 %v551, 1.0
        %v1576 = vsub.f32 %v552, 1.0
        %v1577 = vsub.f32 %v553, 1.0
        %v1578 = vsub.f32 %v554, 1.0
        %v1579 = vsub.f32 %v555, 1.0
        %v1580 = vsub.f32 %v556, 1.0
        %v1581 = vsub.f32 %v557, 1.0
        %v1582 = vsub.f32 %v558, 1.0
        %v1583 = vsub.f32 %v559, 1.0
        %v1584 = vsub.f32 %v560, 1.0
        %v1585 = vsub.f32 %v561, 1.0
        %v1586 = vsub.f32 %v562, 1.0
        %v1587 = vsub.f32 %v563, 1.0
        %v1588 = vsub.f32 %v564, 1.0
        %v1589 = vsub.f32 %v565, 1.0
        %v1590 = vsub.f32 %v566, 1.0
        %v1591 = vsub.f32 %v567, 1.0
        %v1592 = vsub.f32 %v568, 1.0
        %v1593 = vsub.f32 %v569, 1.0
        %v1594 = vsub.f32 %v570, 1.0
        %v1595 = vsub.f32 %v571, 1.0
        %v1596 = vsub.f32 %v572, 1.0
        %v1597 = vsub.f32 %v573, 1.0
        %v1598 = vsub.f32 %v574, 1.0
        %v1599 = vsub.f32 %v575, 1.0
        %v1600 = vsub.f32 %v576, 1.0
        %v1601 = vsub.f32 %v577, 1.0
        %v1602 = vsub.f32 %v578, 1.0
        %v1603 = vsub.f32 %v579, 1.0
        %v1604 = vsub.f32 %v580, 1.0
        %v1605 = vsub.f32 %v581, 1.0
        %v1606 = vsub.f32 %v582, 1.0
        %v1607 = vsub.f32 %v583, 1.0
        %v1608 = vsub.f32 %v584, 1.0
        %v1609 = vsub.f32 %v585, 1.0
        %v1610 = vsub.f32 %v586, 1.0
        %v1611 = vsub.f32 %v587, 1.0
        %v1612 = vsub.f32 %v588, 1.0
        %v1613 = vsub.f32 %v589, 1.0
        %v1614 = vsub.f32 %v590, 1.0
        %v1615 = vsub.f32 %v591, 1.0
        %v1616 = vsub.f32 %v592, 1.0
        %v1617 = vsub.f32 %v593, 1.0
        %v1618 = vsub.f32 %v594, 1.0
        %v1619 = vsub.f32 %v595, 1.0
        %v1620 = vsub.f32 %v596, 1.0
        %v1621 = vsub.f32 %v597, 1.0
        %v1622 = vsub.f32 %v598, 1.0
        %v1623 = vsub.f32 %v599, 1.0
        %v1624 = vsub.f32 %v600, 1.0
        %v1625 = vsub.f32 %v601, 1.0
        %v1626 = vsub.f32 %v602, 1.0
        %v1627 = vsub.f32 %v603, 1.0
        %v1628 = vsub.f32 %v604, 1.0
        %v1629 = vsub.f32 %v605, 1.0
        %v1630 = vsub.f32 %v606, 1.0
        %v1631 = vsub.f32 %v607, 1.0
        %v1632 = vsub.f32 %v608, 1.0
        %v1633 = vsub.f32 %v609, 1.0
        %v1634 = vsub.f32 %v610, 1.0
        %v1635 = vsub.f32 %v611, 1.0
        %v1636 = vsub.f32 %v612, 1.0
        %v1637 = vsub.f32 %v613, 1.0
        %v1638 = vsub.f32 %v614, 1.0
        %v1639 = vsub.f32 %v615, 1.0
        %v1640 = vsub.f32 %v616, 1.0
        %v1641 = vsub.f32 %v617, 1.0
        %v1642 = vsub.f32 %v618, 1.0
        %v1643 = vsub.f32 %v619, 1.0
        %v1644 = vsub.f32 %v620, 1.0
        %v1645 = vsub.f32 %v621, 1.0
        %v1646 = vsub.f32 %v622, 1.0
        %v1647 = vsub.f32 %v623, 1.0
        %v1648 = vsub.f32 %v624, 1.0
        %v1649 = vsub.f32 %v625, 1.0
        %v1650 = vsub.f32 %v626, 1.0
        %v1651 = vsub.f32 %v627, 1.0
        %v1652 = vsub.f32 %v628, 1.0
        %v1653 = vsub.f32 %v629, 1.0
        %v1654 = vsub.f32 %v630, 1.0
        %v1655 = vsub.f32 %v631, 1.0
        %v1656 = vsub.f32 %v632, 1.0
        %v1657 = vsub.f32 %v633, 1.0
        %v1658 = vsub.f32 %v634, 1.0
        %v1659 = vsub.f32 %v635, 1.0
        %v1660 = vsub.f32 %v636, 1.0
        %v1661 = vsub.f32 %v637, 1.0
        %v1662 = vsub.f32 %v638, 1.0
        %v1663 = vsub.f32 %v639, 1.0
        %v1664 = vsub.f32 %v640, 1.0
        %v1665 = vsub.f32 %v641, 1.0
        %v1666 = vsub.f32 %v642, 1.0
        %v1667 = vsub.f32 %v643, 1.0
        %v1668 = vsub.f32 %v644, 1.0
        %v1669 = vsub.f32 %v645, 1.0
        %v1670 = vsub.f32 %v646, 1.0
        %v1671 = vsub.f32 %v647, 1.0
        %v1672 = vsub.f32 %v648, 1.0
        %v1673 = vsub.f32 %v649, 1.0
        %v1674 = vsub.f32 %v650, 1.0
        %v1675 = vsub.f32 %v651, 1.0
        %v1676 = vsub.f32 %v652, 1.0
        %v1677 = vsub.f32 %v653, 1.0
        %v1678 = vsub.f32 %v654, 1.0
        %v1679 = vsub.f32 %v655, 1.0
        %v1680 = vsub.f32 %v656, 1.0
        %v1681 = vsub.f32 %v657, 1.0
        %v1682 = vsub.f32 %v658, 1.0
        %v1683 = vsub.f32 %v659, 1.0
        %v1684 = vsub.f32 %v660, 1.0
        %v1685 = vsub.f32 %v661, 1.0
        %v1686 = vsub.f32 %v662, 1.0
        %v1687 = vsub.f32 %v663, 1.0
        %v1688 = vsub.f32 %v664, 1.0
        %v1689 = vsub.f32 %v665, 1.0
        %v1690 = vsub.f32 %v666, 1.0
        %v1691 = vsub.f32 %v667, 1.0
        %v1692 = vsub.f32 %v668, 1.0
        %v1693 = vsub.f32 %v669, 1.0
        %v1694 = vsub.f32 %v670, 1.0
        %v1695 = vsub.f32 %v671, 1.0
        %v1696 = vsub.f32 %v672, 1.0
        %v1697 = vsub.f32 %v673, 1.0
        %v1698 = vsub.f32 %v674, 1.0
        %v1699 = vsub.f32 %v675, 1.0
        %v1700 = vsub.f32 %v676, 1.0
        %v1701 = vsub.f32 %v677, 1.0
        %v1702 = vsub.f32 %v678, 1.0
        %v1703 = vsub.f32 %v679, 1.0
        %v1704 = vsub.f32 %v680, 1.0
        %v1705 = vsub.f32 %v681, 1.0
        %v1706 = vsub.f32 %v682, 1.0
        %v1707 = vsub.f32 %v683, 1.0
        %v1708 = vsub.f32 %v684, 1.0
        %v1709 = vsub.f32 %v685, 1.0
        %v1710 = vsub.f32 %v686, 1.0
        %v1711 = vsub.f32 %v687, 1.0
        %v1712 = vsub.f32 %v688, 1.0
        %v1713 = vsub.f32 %v689, 1.0
        %v1714 = vsub.f32 %v690, 1.0
        %v1715 = vsub.f32 %v691, 1.0
        %v1716 = vsub.f32 %v692, 1.0
        %v1717 = vsub.f32 %v693, 1.0
        %v1718 = vsub.f32 %v694, 1.0
        %v1719 = vsub.f32 %v695, 1.0
        %v1720 = vsub.f32 %v696, 1.0
        %v1721 = vsub.f32 %v697, 1.0
        %v1722 = vsub.f32 %v698, 1.0
        %v1723 = vsub.f32 %v699, 1.0
        %v1724 = vsub.f32 %v700, 1.0
        %v1725 = vsub.f32 %v701, 1.0
        %v1726 = vsub.f32 %v702, 1.0
        %v1727 = vsub.f32 %v703, 1.0
        %v1728 = vsub.f32 %v704, 1.0
        %v1729 = vsub.f32 %v705, 1.0
        %v1730 = vsub.f32 %v706, 1.0
        %v1731 = vsub.f32 %v707, 1.0
        %v1732 = vsub.f32 %v708, 1.0
        %v1733 = vsub.f32 %v709, 1.0
        %v1734 = vsub.f32 %v710, 1.0
        %v1735 = vsub.f32 %v711, 1.0
        %v1736 = vsub.f32 %v712, 1.0
        %v1737 = vsub.f32 %v713, 1.0
        %v1738 = vsub.f32 %v714, 1.0
        %v1739 = vsub.f32 %v715, 1.0
        %v1740 = vsub.f32 %v716, 1.0
        %v1741 = vsub.f32 %v717, 1.0
        %v1742 = vsub.f32 %v718, 1.0
        %v1743 = vsub.f32 %v719, 1.0
        %v1744 = vsub.f32 %v720, 1.0
        %v1745 = vsub.f32 %v721, 1.0
        %v1746 = vsub.f32 %v722, 1.0
        %v1747 = vsub.f32 %v723, 1.0
        %v1748 = vsub.f32 %v724, 1.0
        %v1749 = vsub.f32 %v725, 1.0
        %v1750 = vsub.f32 %v726, 1.0
        %v1751 = vsub.f32 %v727, 1.0
        %v1752 = vsub.f32 %v728, 1.0
        %v1753 = vsub.f32 %v729, 1.0
        %v1754 = vsub.f32 %v730, 1.0
        %v1755 = vsub.f32 %v731, 1.0
        %v1756 = vsub.f32 %v732, 1.0
        %v1757 = vsub.f32 %v733, 1.0
        %v1758 = vsub.f32 %v734, 1.0
        %v1759 = vsub.f32 %v735, 1.0
        %v1760 = vsub.f32 %v736, 1.0
        %v1761 = vsub.f32 %v737, 1.0
        %v1762 = vsub.f32 %v738, 1.0
        %v1763 = vsub.f32 %v739, 1.0
        %v1764 = vsub.f32 %v740, 1.0
        %v1765 = vsub.f32 %v741, 1.0
        %v1766 = vsub.f32 %v742, 1.0
        %v1767 = vsub.f32 %v743, 1.0
        %v1768 = vsub.f32 %v744, 1.0
        %v1769 = vsub.f32 %v745, 1.0
        %v1770 = vsub.f32 %v746, 1.0
        %v1771 = vsub.f32 %v747, 1.0
        %v1772 = vsub.f32 %v748, 1.0
        %v1773 = vsub.f32 %v749, 1.0
        %v1774 = vsub.f32 %v750, 1.0
        %v1775 = vsub.f32 %v751, 1.0
        %v1776 = vsub.f32 %v752, 1.0
        %v1777 = vsub.f32 %v753, 1.0
        %v1778 = vsub.f32 %v754, 1.0
        %v1779 = vsub.f32 %v755, 1.0
        %v1780 = vsub.f32 %v756, 1.0
        %v1781 = vsub.f32 %v757, 1.0
        %v1782 = vsub.f32 %v758, 1.0
        %v1783 = vsub.f32 %v759, 1.0
        %v1784 = vsub.f32 %v760, 1.0
        %v1785 = vsub.f32 %v761, 1.0
        %v1786 = vadd.f32 %v250, 1.0
        %v1787 = vadd.f32 %v251, 1.0
        %v1788 = vadd.f32 %v252, 1.0
        %v1789 = vadd.f32 %v253, 1.0
        %v1790 = vadd.f32 %v254, 1.0
        %v1791 = vadd.f32 %v255, 1.0
        %v1792 = vadd.f32 %v256, 1.0
        %v1793 = vadd.f32 %v257, 1.0
        %v1794 = vadd.f32 %v258, 1.0
        %v1795 = vadd.f32 %v259, 1.0
        %v1796 = vadd.f32 %v260, 1.0
        %v1797 = vadd.f32 %v261, 1.0
        %v1798 = vadd.f32 %v262, 1.0
        %v1799 = vadd.f32 %v263, 1.0
        %v1800 = vadd.f32 %v264, 1.0
        %v1801 = vadd.f32 %v265, 1.0
        %v1802 = vadd.f32 %v266, 1.0
        %v1803 = vadd.f32 %v267, 1.0
        %v1804 = vadd.f32 %v268, 1.0
        %v1805 = vadd.f32 %v269, 1.0
        %v1806 = vadd.f32 %v270, 1.0
        %v1807 = vadd.f32 %v271, 1.0
        %v1808 = vadd.f32 %v272, 1.0
        %v1809 = vadd.f32 %v273, 1.0
        %v1810 = vadd.f32 %v274, 1.0
        %v1811 = vadd.f32 %v275, 1.0
        %v1812 = vadd.f32 %v276, 1.0
        %v1813 = vadd.f32 %v277, 1.0
        %v1814 = vadd.f32 %v278, 1.0
        %v1815 = vadd.f32 %v279, 1.0
        %v1816 = vadd.f32 %v280, 1.0
        %v1817 = vadd.f32 %v281, 1.0
        %v1818 = vadd.f32 %v282, 1.0
        %v1819 = vadd.f32 %v283, 1.0
        %v1820 = vadd.f32 %v284, 1.0
        %v1821 = vadd.f32 %v285, 1.0
        %v1822 = vadd.f32 %v286, 1.0
        %v1823 = vadd.f32 %v287, 1.0
        %v1824 = vadd.f32 %v288, 1.0
        %v1825 = vadd.f32 %v289, 1.0
        %v1826 = vadd.f32 %v290, 1.0
        %v1827 = vadd.f32 %v291, 1.0
        %v1828 = vadd.f32 %v292, 1.0
        %v1829 = vadd.f32 %v293, 1.0
        %v1830 = vadd.f32 %v294, 1.0
        %v1831 = vadd.f32 %v295, 1.0
        %v1832 = vadd.f32 %v296, 1.0
        %v1833 = vadd.f32 %v297, 1.0
        %v1834 = vadd.f32 %v298, 1.0
        %v1835 = vadd.f32 %v299, 1.0
        %v1836 = vadd.f32 %v300, 1.0
        %v1837 = vadd.f32 %v301, 1.0
        %v1838 = vadd.f32 %v302, 1.0
        %v1839 = vadd.f32 %v303, 1.0
        %v1840 = vadd.f32 %v304, 1.0
        %v1841 = vadd.f32 %v305, 1.0
        %v1842 = vadd.f32 %v306, 1.0
        %v1843 = vadd.f32 %v307, 1.0
        %v1844 = vadd.f32 %v308, 1.0
        %v1845 = vadd.f32 %v309, 1.0
        %v1846 = vadd.f32 %v310, 1.0
        %v1847 = vadd.f32 %v311, 1.0
        %v1848 = vadd.f32 %v312, 1.0
        %v1849 = vadd.f32 %v313, 1.0
        %v1850 = vadd.f32 %v314, 1.0
        %v1851 = vadd.f32 %v315, 1.0
        %v1852 = vadd.f32 %v316, 1.0
        %v1853 = vadd.f32 %v317, 1.0
        %v1854 = vadd.f32 %v318, 1.0
        %v1855 = vadd.f32 %v319, 1.0
        %v1856 = vadd.f32 %v320, 1.0
        %v1857 = vadd.f32 %v321, 1.0
        %v1858 = vadd.f32 %v322, 1.0
        %v1859 = vadd.f32 %v323, 1.0
        %v1860 = vadd.f32 %v324, 1.0
        %v1861 = vadd.f32 %v325, 1.0
        %v1862 = vadd.f32 %v326, 1.0
        %v1863 = vadd.f32 %v327, 1.0
        %v1864 = vadd.f32 %v328, 1.0
        %v1865 = vadd.f32 %v329, 1.0
        %v1866 = vadd.f32 %v330, 1.0
        %v1867 = vadd.f32 %v331, 1.0
        %v1868 = vadd.f32 %v332, 1.0
        %v1869 = vadd.f32 %v333, 1.0
        %v1870 = vadd.f32 %v334, 1.0
        %v1871 = vadd.f32 %v335, 1.0
        %v1872 = vadd.f32 %v336, 1.0
        %v1873 = vadd.f32 %v337, 1.0
        %v1874 = vadd.f32 %v338, 1.0
        %v1875 = vadd.f32 %v339, 1.0
        %v1876 = vadd.f32 %v340, 1.0
        %v1877 = vadd.f32 %v341, 1.0
        %v1878 = vadd.f32 %v342, 1.0
        %v1879 = vadd.f32 %v343, 1.0
        %v1880 = vadd.f32 %v344, 1.0
        %v1881 = vadd.f32 %v345, 1.0
        %v1882 = vadd.f32 %v346, 1.0
        %v1883 = vadd.f32 %v347, 1.0
        %v1884 = vadd.f32 %v348, 1.0
        %v1885 = vadd.f32 %v349, 1.0
        %v1886 = vadd.f32 %v350, 1.0
        %v1887 = vadd.f32 %v351, 1.0
        %v1888 = vadd.f32 %v352, 1.0
        %v1889 = vadd.f32 %v353, 1.0
        %v1890 = vadd.f32 %v354, 1.0
        %v1891 = vadd.f32 %v355, 1.0
        %v1892 = vadd.f32 %v356, 1.0
        %v1893 = vadd.f32 %v357, 1.0
        %v1894 = vadd.f32 %v358, 1.0
        %v1895 = vadd.f32 %v359, 1.0
        %v1896 = vadd.f32 %v360, 1.0
        %v1897 = vadd.f32 %v361, 1.0
        %v1898 = vadd.f32 %v362, 1.0
        %v1899 = vadd.f32 %v363, 1.0
        %v1900 = vadd.f32 %v364, 1.0
        %v1901 = vadd.f32 %v365, 1.0
        %v1902 = vadd.f32 %v366, 1.0
        %v1903 = vadd.f32 %v367, 1.0
        %v1904 = vadd.f32 %v368, 1.0
        %v1905 = vadd.f32 %v369, 1.0
        %v1906 = vadd.f32 %v370, 1.0
        %v1907 = vadd.f32 %v371, 1.0
        %v1908 = vadd.f32 %v372, 1.0
        %v1909 = vadd.f32 %v373, 1.0
        %v1910 = vadd.f32 %v374, 1.0
        %v1911 = vadd.f32 %v375, 1.0
        %v1912 = vadd.f32 %v376, 1.0
        %v1913 = vadd.f32 %v377, 1.0
        %v1914 = vadd.f32 %v378, 1.0
        %v1915 = vadd.f32 %v379, 1.0
        %v1916 = vadd.f32 %v380, 1.0
        %v1917 = vadd.f32 %v381, 1.0
        %v1918 = vadd.f32 %v382, 1.0
        %v1919 = vadd.f32 %v383, 1.0
        %v1920 = vadd.f32 %v384, 1.0
        %v1921 = vadd.f32 %v385, 1.0
        %v1922 = vadd.f32 %v386, 1.0
        %v1923 = vadd.f32 %v387, 1.0
        %v1924 = vadd.f32 %v388, 1.0
        %v1925 = vadd.f32 %v389, 1.0
        %v1926 = vadd.f32 %v390, 1.0
        %v1927 = vadd.f32 %v391, 1.0
        %v1928 = vadd.f32 %v392, 1.0
        %v1929 = vadd.f32 %v393, 1.0
        %v1930 = vadd.f32 %v394, 1.0
        %v1931 = vadd.f32 %v395, 1.0
        %v1932 = vadd.f32 %v396, 1.0
        %v1933 = vadd.f32 %v397, 1.0
        %v1934 = vadd.f32 %v398, 1.0
        %v1935 = vadd.f32 %v399, 1.0
        %v1936 = vadd.f32 %v400, 1.0
        %v1937 = vadd.f32 %v401, 1.0
        %v1938 = vadd.f32 %v402, 1.0
        %v1939 = vadd.f32 %v403, 1.0
        %v1940 = vadd.f32 %v404, 1.0
        %v1941 = vadd.f32 %v405, 1.0
        %v1942 = vadd.f32 %v406, 1.0
        %v1943 = vadd.f32 %v407, 1.0
        %v1944 = vadd.f32 %v408, 1.0
        %v1945 = vadd.f32 %v409, 1.0
        %v1946 = vadd.f32 %v410, 1.0
        %v1947 = vadd.f32 %v411, 1.0
        %v1948 = vadd.f32 %v412, 1.0
        %v1949 = vadd.f32 %v413, 1.0
        %v1950 = vadd.f32 %v414, 1.0
        %v1951 = vadd.f32 %v415, 1.0
        %v1952 = vadd.f32 %v416, 1.0
        %v1953 = vadd.f32 %v417, 1.0
        %v1954 = vadd.f32 %v418, 1.0
        %v1955 = vadd.f32 %v419, 1.0
        %v1956 = vadd.f32 %v420, 1.0
        %v1957 = vadd.f32 %v421, 1.0
        %v1958 = vadd.f32 %v422, 1.0
        %v1959 = vadd.f32 %v423, 1.0
        %v1960 = vadd.f32 %v424, 1.0
        %v1961 = vadd.f32 %v425, 1.0
        %v1962 = vadd.f32 %v426, 1.0
        %v1963 = vadd.f32 %v427, 1.0
        %v1964 = vadd.f32 %v428, 1.0
        %v1965 = vadd.f32 %v429, 1.0
        %v1966 = vadd.f32 %v430, 1.0
        %v1967 = vadd.f32 %v431, 1.0
        %v1968 = vadd.f32 %v432, 1.0
        %v1969 = vadd.f32 %v433, 1.0
        %v1970 = vadd.f32 %v434, 1.0
        %v1971 = vadd.f32 %v435, 1.0
        %v1972 = vadd.f32 %v436, 1.0
        %v1973 = vadd.f32 %v437, 1.0
        %v1974 = vadd.f32 %v438, 1.0
        %v1975 = vadd.f32 %v439, 1.0
        %v1976 = vadd.f32 %v440, 1.0
        %v1977 = vadd.f32 %v441, 1.0
        %v1978 = vadd.f32 %v442, 1.0
        %v1979 = vadd.f32 %v443, 1.0
        %v1980 = vadd.f32 %v444, 1.0
        %v1981 = vadd.f32 %v445, 1.0
        %v1982 = vadd.f32 %v446, 1.0
        %v1983 = vadd.f32 %v447, 1.0
        %v1984 = vadd.f32 %v448, 1.0
        %v1985 = vadd.f32 %v449, 1.0
        %v1986 = vadd.f32 %v450, 1.0
        %v1987 = vadd.f32 %v451, 1.0
        %v1988 = vadd.f32 %v452, 1.0
        %v1989 = vadd.f32 %v453, 1.0
        %v1990 = vadd.f32 %v454, 1.0
        %v1991 = vadd.f32 %v455, 1.0
        %v1992 = vadd.f32 %v456, 1.0
        %v1993 = vadd.f32 %v457, 1.0
        %v1994 = vadd.f32 %v458, 1.0
        %v1995 = vadd.f32 %v459, 1.0
        %v1996 = vadd.f32 %v460, 1.0
        %v1997 = vadd.f32 %v461, 1.0
        %v1998 = vadd.f32 %v462, 1.0
        %v1999 = vadd.f32 %v463, 1.0
        %v2000 = vadd.f32 %v464, 1.0
        %v2001 = vadd.f32 %v465, 1.0
        %v2002 = vadd.f32 %v466, 1.0
        %v2003 = vadd.f32 %v467, 1.0
        %v2004 = vadd.f32 %v468, 1.0
        %v2005 = vadd.f32 %v469, 1.0
        %v2006 = vadd.f32 %v470, 1.0
        %v2007 = vadd.f32 %v471, 1.0
        %v2008 = vadd.f32 %v472, 1.0
        %v2009 = vadd.f32 %v473, 1.0
        %v2010 = vadd.f32 %v474, 1.0
        %v2011 = vadd.f32 %v475, 1.0
        %v2012 = vadd.f32 %v476, 1.0
        %v2013 = vadd.f32 %v477, 1.0
        %v2014 = vadd.f32 %v478, 1.0
        %v2015 = vadd.f32 %v479, 1.0
        %v2016 = vadd.f32 %v480, 1.0
        %v2017 = vadd.f32 %v481, 1.0
        %v2018 = vadd.f32 %v482, 1.0
        %v2019 = vadd.f32 %v483, 1.0
        %v2020 = vadd.f32 %v484, 1.0
        %v2021 = vadd.f32 %v485, 1.0
        %v2022 = vadd.f32 %v486, 1.0
        %v2023 = vadd.f32 %v487, 1.0
        %v2024 = vadd.f32 %v488, 1.0
        %v2025 = vadd.f32 %v489, 1.0
        %v2026 = vadd.f32 %v490, 1.0
        %v2027 = vadd.f32 %v491, 1.0
        %v2028 = vadd.f32 %v492, 1.0
        %v2029 = vadd.f32 %v493, 1.0
        %v2030 = vadd.f32 %v494, 1.0
        %v2031 = vadd.f32 %v495, 1.0
        %v2032 = vadd.f32 %v496, 1.0
        %v2033 = vadd.f32 %v497, 1.0
        %v2034 = vadd.f32 %v498, 1.0
        %v2035 = vadd.f32 %v499, 1.0
        %v2036 = vadd.f32 %v500, 1.0
        %v2037 = vadd.f32 %v501, 1.0
        %v2038 = vadd.f32 %v502, 1.0
        %v2039 = vadd.f32 %v503, 1.0
        %v2040 = vadd.f32 %v504, 1.0
        %v2041 = vadd.f32 %v505, 1.0
        %v2042 = vadd.f32 %v506, 1.0
        %v2043 = vadd.f32 %v507, 1.0
        %v2044 = vadd.f32 %v508, 1.0
        %v2045 = vadd.f32 %v509, 1.0
        %v2046 = vadd.f32 %v510, 1.0
        %v2047 = vadd.f32 %v511, 1.0
        %v2048 = vadd.f32 %v512, 1.0
        %v2049 = vadd.f32 %v513, 1.0
        %v2050 = vadd.f32 %v514, 1.0
        %v2051 = vadd.f32 %v515, 1.0
        %v2052 = vadd.f32 %v516, 1.0
        %v2053 = vadd.f32 %v517, 1.0
        %v2054 = vadd.f32 %v518, 1.0
        %v2055 = vadd.f32 %v519, 1.0
        %v2056 = vadd.f32 %v520, 1.0
        %v2057 = vadd.f32 %v521, 1.0
        %v2058 = vadd.f32 %v522, 1.0
        %v2059 = vadd.f32 %v523, 1.0
        %v2060 = vadd.f32 %v524, 1.0
        %v2061 = vadd.f32 %v525, 1.0
        %v2062 = vadd.f32 %v526, 1.0
        %v2063 = vadd.f32 %v527, 1.0
        %v2064 = vadd.f32 %v528, 1.0
        %v2065 = vadd.f32 %v529, 1.0
        %v2066 = vadd.f32 %v530, 1.0
        %v2067 = vadd.f32 %v531, 1.0
        %v2068 = vadd.f32 %v532, 1.0
        %v2069 = vadd.f32 %v533, 1.0
        %v2070 = vadd.f32 %v534, 1.0
        %v2071 = vadd.f32 %v535, 1.0
        %v2072 = vadd.f32 %v536, 1.0
        %v2073 = vadd.f32 %v537, 1.0
        %v2074 = vadd.f32 %v538, 1.0
        %v2075 = vadd.f32 %v539, 1.0
        %v2076 = vadd.f32 %v540, 1.0
        %v2077 = vadd.f32 %v541, 1.0
        %v2078 = vadd.f32 %v542, 1.0
        %v2079 = vadd.f32 %v543, 1.0
        %v2080 = vadd.f32 %v544, 1.0
        %v2081 = vadd.f32 %v545, 1.0
        %v2082 = vadd.f32 %v546, 1.0
        %v2083 = vadd.f32 %v547, 1.0
        %v2084 = vadd.f32 %v548, 1.0
        %v2085 = vadd.f32 %v549, 1.0
        %v2086 = vadd.f32 %v550, 1.0
        %v2087 = vadd.f32 %v551, 1.0
        %v2088 = vadd.f32 %v552, 1.0
        %v2089 = vadd.f32 %v553, 1.0
        %v2090 = vadd.f32 %v554, 1.0
        %v2091 = vadd.f32 %v555, 1.0
        %v2092 = vadd.f32 %v556, 1.0
        %v2093 = vadd.f32 %v557, 1.0
        %v2094 = vadd.f32 %v558, 1.0
        %v2095 = vadd.f32 %v559, 1.0
        %v2096 = vadd.f32 %v560, 1.0
        %v2097 = vadd.f32 %v561, 1.0
        %v2098 = vadd.f32 %v562, 1.0
        %v2099 = vadd.f32 %v563, 1.0
        %v2100 = vadd.f32 %v564, 1.0
        %v2101 = vadd.f32 %v565, 1.0
        %v2102 = vadd.f32 %v566, 1.0
        %v2103 = vadd.f32 %v567, 1.0
        %v2104 = vadd.f32 %v568, 1.0
        %v2105 = vadd.f32 %v569, 1.0
        %v2106 = vadd.f32 %v570, 1.0
        %v2107 = vadd.f32 %v571, 1.0
        %v2108 = vadd.f32 %v572, 1.0
        %v2109 = vadd.f32 %v573, 1.0
        %v2110 = vadd.f32 %v574, 1.0
        %v2111 = vadd.f32 %v575, 1.0
        %v2112 = vadd.f32 %v576, 1.0
        %v2113 = vadd.f32 %v577, 1.0
        %v2114 = vadd.f32 %v578, 1.0
        %v2115 = vadd.f32 %v579, 1.0
        %v2116 = vadd.f32 %v580, 1.0
        %v2117 = vadd.f32 %v581, 1.0
        %v2118 = vadd.f32 %v582, 1.0
        %v2119 = vadd.f32 %v583, 1.0
        %v2120 = vadd.f32 %v584, 1.0
        %v2121 = vadd.f32 %v585, 1.0
        %v2122 = vadd.f32 %v586, 1.0
        %v2123 = vadd.f32 %v587, 1.0
        %v2124 = vadd.f32 %v588, 1.0
        %v2125 = vadd.f32 %v589, 1.0
        %v2126 = vadd.f32 %v590, 1.0
        %v2127 = vadd.f32 %v591, 1.0
        %v2128 = vadd.f32 %v592, 1.0
        %v2129 = vadd.f32 %v593, 1.0
        %v2130 = vadd.f32 %v594, 1.0
        %v2131 = vadd.f32 %v595, 1.0
        %v2132 = vadd.f32 %v596, 1.0
        %v2133 = vadd.f32 %v597, 1.0
        %v2134 = vadd.f32 %v598, 1.0
        %v2135 = vadd.f32 %v599, 1.0
        %v2136 = vadd.f32 %v600, 1.0
        %v2137 = vadd.f32 %v601, 1.0
        %v2138 = vadd.f32 %v602, 1.0
        %v2139 = vadd.f32 %v603, 1.0
        %v2140 = vadd.f32 %v604, 1.0
        %v2141 = vadd.f32 %v605, 1.0
        %v2142 = vadd.f32 %v606, 1.0
        %v2143 = vadd.f32 %v607, 1.0
        %v2144 = vadd.f32 %v608, 1.0
        %v2145 = vadd.f32 %v609, 1.0
        %v2146 = vadd.f32 %v610, 1.0
        %v2147 = vadd.f32 %v611, 1.0
        %v2148 = vadd.f32 %v612, 1.0
        %v2149 = vadd.f32 %v613, 1.0
        %v2150 = vadd.f32 %v614, 1.0
        %v2151 = vadd.f32 %v615, 1.0
        %v2152 = vadd.f32 %v616, 1.0
        %v2153 = vadd.f32 %v617, 1.0
        %v2154 = vadd.f32 %v618, 1.0
        %v2155 = vadd.f32 %v619, 1.0
        %v2156 = vadd.f32 %v620, 1.0
        %v2157 = vadd.f32 %v621, 1.0
        %v2158 = vadd.f32 %v622, 1.0
        %v2159 = vadd.f32 %v623, 1.0
        %v2160 = vadd.f32 %v624, 1.0
        %v2161 = vadd.f32 %v625, 1.0
        %v2162 = vadd.f32 %v626, 1.0
        %v2163 = vadd.f32 %v627, 1.0
        %v2164 = vadd.f32 %v628, 1.0
        %v2165 = vadd.f32 %v629, 1.0
        %v2166 = vadd.f32 %v630, 1.0
        %v2167 = vadd.f32 %v631, 1.0
        %v2168 = vadd.f32 %v632, 1.0
        %v2169 = vadd.f32 %v633, 1.0
        %v2170 = vadd.f32 %v634, 1.0
        %v2171 = vadd.f32 %v635, 1.0
        %v2172 = vadd.f32 %v636, 1.0
        %v2173 = vadd.f32 %v637, 1.0
        %v2174 = vadd.f32 %v638, 1.0
        %v2175 = vadd.f32 %v639, 1.0
        %v2176 = vadd.f32 %v640, 1.0
        %v2177 = vadd.f32 %v641, 1.0
        %v2178 = vadd.f32 %v642, 1.0
        %v2179 = vadd.f32 %v643, 1.0
        %v2180 = vadd.f32 %v644, 1.0
        %v2181 = vadd.f32 %v645, 1.0
        %v2182 = vadd.f32 %v646, 1.0
        %v2183 = vadd.f32 %v647, 1.0
        %v2184 = vadd.f32 %v648, 1.0
        %v2185 = vadd.f32 %v649, 1.0
        %v2186 = vadd.f32 %v650, 1.0
        %v2187 = vadd.f32 %v651, 1.0
        %v2188 = vadd.f32 %v652, 1.0
        %v2189 = vadd.f32 %v653, 1.0
        %v2190 = vadd.f32 %v654, 1.0
        %v2191 = vadd.f32 %v655, 1.0
        %v2192 = vadd.f32 %v656, 1.0
        %v2193 = vadd.f32 %v657, 1.0
        %v2194 = vadd.f32 %v658, 1.0
        %v2195 = vadd.f32 %v659, 1.0
        %v2196 = vadd.f32 %v660, 1.0
        %v2197 = vadd.f32 %v661, 1.0
        %v2198 = vadd.f32 %v662, 1.0
        %v2199 = vadd.f32 %v663, 1.0
        %v2200 = vadd.f32 %v664, 1.0
        %v2201 = vadd.f32 %v665, 1.0
        %v2202 = vadd.f32 %v666, 1.0
        %v2203 = vadd.f32 %v667, 1.0
        %v2204 = vadd.f32 %v668, 1.0
        %v2205 = vadd.f32 %v669, 1.0
        %v2206 = vadd.f32 %v670, 1.0
        %v2207 = vadd.f32 %v671, 1.0
        %v2208 = vadd.f32 %v672, 1.0
        %v2209 = vadd.f32 %v673, 1.0
        %v2210 = vadd.f32 %v674, 1.0
        %v2211 = vadd.f32 %v675, 1.0
        %v2212 = vadd.f32 %v676, 1.0
        %v2213 = vadd.f32 %v677, 1.0
        %v2214 = vadd.f32 %v678, 1.0
        %v2215 = vadd.f32 %v679, 1.0
        %v2216 = vadd.f32 %v680, 1.0
        %v2217 = vadd.f32 %v681, 1.0
        %v2218 = vadd.f32 %v682, 1.0
        %v2219 = vadd.f32 %v683, 1.0
        %v2220 = vadd.f32 %v684, 1.0
        %v2221 = vadd.f32 %v685, 1.0
        %v2222 = vadd.f32 %v686, 1.0
        %v2223 = vadd.f32 %v687, 1.0
        %v2224 = vadd.f32 %v688, 1.0
        %v2225 = vadd.f32 %v689, 1.0
        %v2226 = vadd.f32 %v690, 1.0
        %v2227 = vadd.f32 %v691, 1.0
        %v2228 = vadd.f32 %v692, 1.0
        %v2229 = vadd.f32 %v693, 1.0
        %v2230 = vadd.f32 %v694, 1.0
        %v2231 = vadd.f32 %v695, 1.0
        %v2232 = vadd.f32 %v696, 1.0
        %v2233 = vadd.f32 %v697, 1.0
        %v2234 = vadd.f32 %v698, 1.0
        %v2235 = vadd.f32 %v699, 1.0
        %v2236 = vadd.f32 %v700, 1.0
        %v2237 = vadd.f32 %v701, 1.0
        %v2238 = vadd.f32 %v702, 1.0
        %v2239 = vadd.f32 %v703, 1.0
        %v2240 = vadd.f32 %v704, 1.0
        %v2241 = vadd.f32 %v705, 1.0
        %v2242 = vadd.f32 %v706, 1.0
        %v2243 = vadd.f32 %v707, 1.0
        %v2244 = vadd.f32 %v708, 1.0
        %v2245 = vadd.f32 %v709, 1.0
        %v2246 = vadd.f32 %v710, 1.0
        %v2247 = vadd.f32 %v711, 1.0
        %v2248 = vadd.f32 %v712, 1.0
        %v2249 = vadd.f32 %v713, 1.0
        %v2250 = vadd.f32 %v714, 1.0
        %v2251 = vadd.f32 %v715, 1.0
        %v2252 = vadd.f32 %v716, 1.0
        %v2253 = vadd.f32 %v717, 1.0
        %v2254 = vadd.f32 %v718, 1.0
        %v2255 = vadd.f32 %v719, 1.0
        %v2256 = vadd.f32 %v720, 1.0
        %v2257 = vadd.f32 %v721, 1.0
        %v2258 = vadd.f32 %v722, 1.0
        %v2259 = vadd.f32 %v723, 1.0
        %v2260 = vadd.f32 %v724, 1.0
        %v2261 = vadd.f32 %v725, 1.0
        %v2262 = vadd.f32 %v726, 1.0
        %v2263 = vadd.f32 %v727, 1.0
        %v2264 = vadd.f32 %v728, 1.0
        %v2265 = vadd.f32 %v729, 1.0
        %v2266 = vadd.f32 %v730, 1.0
        %v2267 = vadd.f32 %v731, 1.0
        %v2268 = vadd.f32 %v732, 1.0
        %v2269 = vadd.f32 %v733, 1.0
        %v2270 = vadd.f32 %v734, 1.0
        %v2271 = vadd.f32 %v735, 1.0
        %v2272 = vadd.f32 %v736, 1.0
        %v2273 = vadd.f32 %v737, 1.0
        %v2274 = vadd.f32 %v738, 1.0
        %v2275 = vadd.f32 %v739, 1.0
        %v2276 = vadd.f32 %v740, 1.0
        %v2277 = vadd.f32 %v741, 1.0
        %v2278 = vadd.f32 %v742, 1.0
        %v2279 = vadd.f32 %v743, 1.0
        %v2280 = vadd.f32 %v744, 1.0
        %v2281 = vadd.f32 %v745, 1.0
        %v2282 = vadd.f32 %v746, 1.0
        %v2283 = vadd.f32 %v747, 1.0
        %v2284 = vadd.f32 %v748, 1.0
        %v2285 = vadd.f32 %v749, 1.0
        %v2286 = vadd.f32 %v750, 1.0
        %v2287 = vadd.f32 %v751, 1.0
        %v2288 = vadd.f32 %v752, 1.0
        %v2289 = vadd.f32 %v753, 1.0
        %v2290 = vadd.f32 %v754, 1.0
        %v2291 = vadd.f32 %v755, 1.0
        %v2292 = vadd.f32 %v756, 1.0
        %v2293 = vadd.f32 %v757, 1.0
        %v2294 = vadd.f32 %v758, 1.0
        %v2295 = vadd.f32 %v759, 1.0
        %v2296 = vadd.f32 %v760, 1.0
        %v2297 = vadd.f32 %v761, 1.0
        %v2298 = vsel %vm762, %v1274, %v1786
        %v2299 = vsel %vm763, %v1275, %v1787
        %v2300 = vsel %vm764, %v1276, %v1788
        %v2301 = vsel %vm765, %v1277, %v1789
        %v2302 = vsel %vm766, %v1278, %v1790
        %v2303 = vsel %vm767, %v1279, %v1791
        %v2304 = vsel %vm768, %v1280, %v1792
        %v2305 = vsel %vm769, %v1281, %v1793
        %v2306 = vsel %vm770, %v1282, %v1794
        %v2307 = vsel %vm771, %v1283, %v1795
        %v2308 = vsel %vm772, %v1284, %v1796
        %v2309 = vsel %vm773, %v1285, %v1797
        %v2310 = vsel %vm774, %v1286, %v1798
        %v2311 = vsel %vm775, %v1287, %v1799
        %v2312 = vsel %vm776, %v1288, %v1800
        %v2313 = vsel %vm777, %v1289, %v1801
        %v2314 = vsel %vm778, %v1290, %v1802
        %v2315 = vsel %vm779, %v1291, %v1803
        %v2316 = vsel %vm780, %v1292, %v1804
        %v2317 = vsel %vm781, %v1293, %v1805
        %v2318 = vsel %vm782, %v1294, %v1806
        %v2319 = vsel %vm783, %v1295, %v1807
        %v2320 = vsel %vm784, %v1296, %v1808
        %v2321 = vsel %vm785, %v1297, %v1809
        %v2322 = vsel %vm786, %v1298, %v1810
        %v2323 = vsel %vm787, %v1299, %v1811
        %v2324 = vsel %vm788, %v1300, %v1812
        %v2325 = vsel %vm789, %v1301, %v1813
        %v2326 = vsel %vm790, %v1302, %v1814
        %v2327 = vsel %vm791, %v1303, %v1815
        %v2328 = vsel %vm792, %v1304, %v1816
        %v2329 = vsel %vm793, %v1305, %v1817
        %v2330 = vsel %vm794, %v1306, %v1818
        %v2331 = vsel %vm795, %v1307, %v1819
        %v2332 = vsel %vm796, %v1308, %v1820
        %v2333 = vsel %vm797, %v1309, %v1821
        %v2334 = vsel %vm798, %v1310, %v1822
        %v2335 = vsel %vm799, %v1311, %v1823
        %v2336 = vsel %vm800, %v1312, %v1824
        %v2337 = vsel %vm801, %v1313, %v1825
        %v2338 = vsel %vm802, %v1314, %v1826
        %v2339 = vsel %vm803, %v1315, %v1827
        %v2340 = vsel %vm804, %v1316, %v1828
        %v2341 = vsel %vm805, %v1317, %v1829
        %v2342 = vsel %vm806, %v1318, %v1830
        %v2343 = vsel %vm807, %v1319, %v1831
        %v2344 = vsel %vm808, %v1320, %v1832
        %v2345 = vsel %vm809, %v1321, %v1833
        %v2346 = vsel %vm810, %v1322, %v1834
        %v2347 = vsel %vm811, %v1323, %v1835
        %v2348 = vsel %vm812, %v1324, %v1836
        %v2349 = vsel %vm813, %v1325, %v1837
        %v2350 = vsel %vm814, %v1326, %v1838
        %v2351 = vsel %vm815, %v1327, %v1839
        %v2352 = vsel %vm816, %v1328, %v1840
        %v2353 = vsel %vm817, %v1329, %v1841
        %v2354 = vsel %vm818, %v1330, %v1842
        %v2355 = vsel %vm819, %v1331, %v1843
        %v2356 = vsel %vm820, %v1332, %v1844
        %v2357 = vsel %vm821, %v1333, %v1845
        %v2358 = vsel %vm822, %v1334, %v1846
        %v2359 = vsel %vm823, %v1335, %v1847
        %v2360 = vsel %vm824, %v1336, %v1848
        %v2361 = vsel %vm825, %v1337, %v1849
        %v2362 = vsel %vm826, %v1338, %v1850
        %v2363 = vsel %vm827, %v1339, %v1851
        %v2364 = vsel %vm828, %v1340, %v1852
        %v2365 = vsel %vm829, %v1341, %v1853
        %v2366 = vsel %vm830, %v1342, %v1854
        %v2367 = vsel %vm831, %v1343, %v1855
        %v2368 = vsel %vm832, %v1344, %v1856
        %v2369 = vsel %vm833, %v1345, %v1857
        %v2370 = vsel %vm834, %v1346, %v1858
        %v2371 = vsel %vm835, %v1347, %v1859
        %v2372 = vsel %vm836, %v1348, %v1860
        %v2373 = vsel %vm837, %v1349, %v1861
        %v2374 = vsel %vm838, %v1350, %v1862
        %v2375 = vsel %vm839, %v1351, %v1863
        %v2376 = vsel %vm840, %v1352, %v1864
        %v2377 = vsel %vm841, %v1353, %v1865
        %v2378 = vsel %vm842, %v1354, %v1866
        %v2379 = vsel %vm843, %v1355, %v1867
        %v2380 = vsel %vm844, %v1356, %v1868
        %v2381 = vsel %vm845, %v1357, %v1869
        %v2382 = vsel %vm846, %v1358, %v1870
        %v2383 = vsel %vm847, %v1359, %v1871
        %v2384 = vsel %vm848, %v1360, %v1872
        %v2385 = vsel %vm849, %v1361, %v1873
        %v2386 = vsel %vm850, %v1362, %v1874
        %v2387 = vsel %vm851, %v1363, %v1875
        %v2388 = vsel %vm852, %v1364, %v1876
        %v2389 = vsel %vm853, %v1365, %v1877
        %v2390 = vsel %vm854, %v1366, %v1878
        %v2391 = vsel %vm855, %v1367, %v1879
        %v2392 = vsel %vm856, %v1368, %v1880
        %v2393 = vsel %vm857, %v1369, %v1881
        %v2394 = vsel %vm858, %v1370, %v1882
        %v2395 = vsel %vm859, %v1371, %v1883
        %v2396 = vsel %vm860, %v1372, %v1884
        %v2397 = vsel %vm861, %v1373, %v1885
        %v2398 = vsel %vm862, %v1374, %v1886
        %v2399 = vsel %vm863, %v1375, %v1887
        %v2400 = vsel %vm864, %v1376, %v1888
        %v2401 = vsel %vm865, %v1377, %v1889
        %v2402 = vsel %vm866, %v1378, %v1890
        %v2403 = vsel %vm867, %v1379, %v1891
        %v2404 = vsel %vm868, %v1380, %v1892
        %v2405 = vsel %vm869, %v1381, %v1893
        %v2406 = vsel %vm870, %v1382, %v1894
        %v2407 = vsel %vm871, %v1383, %v1895
        %v2408 = vsel %vm872, %v1384, %v1896
        %v2409 = vsel %vm873, %v1385, %v1897
        %v2410 = vsel %vm874, %v1386, %v1898
        %v2411 = vsel %vm875, %v1387, %v1899
        %v2412 = vsel %vm876, %v1388, %v1900
        %v2413 = vsel %vm877, %v1389, %v1901
        %v2414 = vsel %vm878, %v1390, %v1902
        %v2415 = vsel %vm879, %v1391, %v1903
        %v2416 = vsel %vm880, %v1392, %v1904
        %v2417 = vsel %vm881, %v1393, %v1905
        %v2418 = vsel %vm882, %v1394, %v1906
        %v2419 = vsel %vm883, %v1395, %v1907
        %v2420 = vsel %vm884, %v1396, %v1908
        %v2421 = vsel %vm885, %v1397, %v1909
        %v2422 = vsel %vm886, %v1398, %v1910
        %v2423 = vsel %vm887, %v1399, %v1911
        %v2424 = vsel %vm888, %v1400, %v1912
        %v2425 = vsel %vm889, %v1401, %v1913
        %v2426 = vsel %vm890, %v1402, %v1914
        %v2427 = vsel %vm891, %v1403, %v1915
        %v2428 = vsel %vm892, %v1404, %v1916
        %v2429 = vsel %vm893, %v1405, %v1917
        %v2430 = vsel %vm894, %v1406, %v1918
        %v2431 = vsel %vm895, %v1407, %v1919
        %v2432 = vsel %vm896, %v1408, %v1920
        %v2433 = vsel %vm897, %v1409, %v1921
        %v2434 = vsel %vm898, %v1410, %v1922
        %v2435 = vsel %vm899, %v1411, %v1923
        %v2436 = vsel %vm900, %v1412, %v1924
        %v2437 = vsel %vm901, %v1413, %v1925
        %v2438 = vsel %vm902, %v1414, %v1926
        %v2439 = vsel %vm903, %v1415, %v1927
        %v2440 = vsel %vm904, %v1416, %v1928
        %v2441 = vsel %vm905, %v1417, %v1929
        %v2442 = vsel %vm906, %v1418, %v1930
        %v2443 = vsel %vm907, %v1419, %v1931
        %v2444 = vsel %vm908, %v1420, %v1932
        %v2445 = vsel %vm909, %v1421, %v1933
        %v2446 = vsel %vm910, %v1422, %v1934
        %v2447 = vsel %vm911, %v1423, %v1935
        %v2448 = vsel %vm912, %v1424, %v1936
        %v2449 = vsel %vm913, %v1425, %v1937
        %v2450 = vsel %vm914, %v1426, %v1938
        %v2451 = vsel %vm915, %v1427, %v1939
        %v2452 = vsel %vm916, %v1428, %v1940
        %v2453 = vsel %vm917, %v1429, %v1941
        %v2454 = vsel %vm918, %v1430, %v1942
        %v2455 = vsel %vm919, %v1431, %v1943
        %v2456 = vsel %vm920, %v1432, %v1944
        %v2457 = vsel %vm921, %v1433, %v1945
        %v2458 = vsel %vm922, %v1434, %v1946
        %v2459 = vsel %vm923, %v1435, %v1947
        %v2460 = vsel %vm924, %v1436, %v1948
        %v2461 = vsel %vm925, %v1437, %v1949
        %v2462 = vsel %vm926, %v1438, %v1950
        %v2463 = vsel %vm927, %v1439, %v1951
        %v2464 = vsel %vm928, %v1440, %v1952
        %v2465 = vsel %vm929, %v1441, %v1953
        %v2466 = vsel %vm930, %v1442, %v1954
        %v2467 = vsel %vm931, %v1443, %v1955
        %v2468 = vsel %vm932, %v1444, %v1956
        %v2469 = vsel %vm933, %v1445, %v1957
        %v2470 = vsel %vm934, %v1446, %v1958
        %v2471 = vsel %vm935, %v1447, %v1959
        %v2472 = vsel %vm936, %v1448, %v1960
        %v2473 = vsel %vm937, %v1449, %v1961
        %v2474 = vsel %vm938, %v1450, %v1962
        %v2475 = vsel %vm939, %v1451, %v1963
        %v2476 = vsel %vm940, %v1452, %v1964
        %v2477 = vsel %vm941, %v1453, %v1965
        %v2478 = vsel %vm942, %v1454, %v1966
        %v2479 = vsel %vm943, %v1455, %v1967
        %v2480 = vsel %vm944, %v1456, %v1968
        %v2481 = vsel %vm945, %v1457, %v1969
        %v2482 = vsel %vm946, %v1458, %v1970
        %v2483 = vsel %vm947, %v1459, %v1971
        %v2484 = vsel %vm948, %v1460, %v1972
        %v2485 = vsel %vm949, %v1461, %v1973
        %v2486 = vsel %vm950, %v1462, %v1974
        %v2487 = vsel %vm951, %v1463, %v1975
        %v2488 = vsel %vm952, %v1464, %v1976
        %v2489 = vsel %vm953, %v1465, %v1977
        %v2490 = vsel %vm954, %v1466, %v1978
        %v2491 = vsel %vm955, %v1467, %v1979
        %v2492 = vsel %vm956, %v1468, %v1980
        %v2493 = vsel %vm957, %v1469, %v1981
        %v2494 = vsel %vm958, %v1470, %v1982
        %v2495 = vsel %vm959, %v1471, %v1983
        %v2496 = vsel %vm960, %v1472, %v1984
        %v2497 = vsel %vm961, %v1473, %v1985
        %v2498 = vsel %vm962, %v1474, %v1986
        %v2499 = vsel %vm963, %v1475, %v1987
        %v2500 = vsel %vm964, %v1476, %v1988
        %v2501 = vsel %vm965, %v1477, %v1989
        %v2502 = vsel %vm966, %v1478, %v1990
        %v2503 = vsel %vm967, %v1479, %v1991
        %v2504 = vsel %vm968, %v1480, %v1992
        %v2505 = vsel %vm969, %v1481, %v1993
        %v2506 = vsel %vm970, %v1482, %v1994
        %v2507 = vsel %vm971, %v1483, %v1995
        %v2508 = vsel %vm972, %v1484, %v1996
        %v2509 = vsel %vm973, %v1485, %v1997
        %v2510 = vsel %vm974, %v1486, %v1998
        %v2511 = vsel %vm975, %v1487, %v1999
        %v2512 = vsel %vm976, %v1488, %v2000
        %v2513 = vsel %vm977, %v1489, %v2001
        %v2514 = vsel %vm978, %v1490, %v2002
        %v2515 = vsel %vm979, %v1491, %v2003
        %v2516 = vsel %vm980, %v1492, %v2004
        %v2517 = vsel %vm981, %v1493, %v2005
        %v2518 = vsel %vm982, %v1494, %v2006
        %v2519 = vsel %vm983, %v1495, %v2007
        %v2520 = vsel %vm984, %v1496, %v2008
        %v2521 = vsel %vm985, %v1497, %v2009
        %v2522 = vsel %vm986, %v1498, %v2010
        %v2523 = vsel %vm987, %v1499, %v2011
        %v2524 = vsel %vm988, %v1500, %v2012
        %v2525 = vsel %vm989, %v1501, %v2013
        %v2526 = vsel %vm990, %v1502, %v2014
        %v2527 = vsel %vm991, %v1503, %v2015
        %v2528 = vsel %vm992, %v1504, %v2016
        %v2529 = vsel %vm993, %v1505, %v2017
        %v2530 = vsel %vm994, %v1506, %v2018
        %v2531 = vsel %vm995, %v1507, %v2019
        %v2532 = vsel %vm996, %v1508, %v2020
        %v2533 = vsel %vm997, %v1509, %v2021
        %v2534 = vsel %vm998, %v1510, %v2022
        %v2535 = vsel %vm999, %v1511, %v2023
        %v2536 = vsel %vm1000, %v1512, %v2024
        %v2537 = vsel %vm1001, %v1513, %v2025
        %v2538 = vsel %vm1002, %v1514, %v2026
        %v2539 = vsel %vm1003, %v1515, %v2027
        %v2540 = vsel %vm1004, %v1516, %v2028
        %v2541 = vsel %vm1005, %v1517, %v2029
        %v2542 = vsel %vm1006, %v1518, %v2030
        %v2543 = vsel %vm1007, %v1519, %v2031
        %v2544 = vsel %vm1008, %v1520, %v2032
        %v2545 = vsel %vm1009, %v1521, %v2033
        %v2546 = vsel %vm1010, %v1522, %v2034
        %v2547 = vsel %vm1011, %v1523, %v2035
        %v2548 = vsel %vm1012, %v1524, %v2036
        %v2549 = vsel %vm1013, %v1525, %v2037
        %v2550 = vsel %vm1014, %v1526, %v2038
        %v2551 = vsel %vm1015, %v1527, %v2039
        %v2552 = vsel %vm1016, %v1528, %v2040
        %v2553 = vsel %vm1017, %v1529, %v2041
        %v2554 = vsel %vm1018, %v1530, %v2042
        %v2555 = vsel %vm1019, %v1531, %v2043
        %v2556 = vsel %vm1020, %v1532, %v2044
        %v2557 = vsel %vm1021, %v1533, %v2045
        %v2558 = vsel %vm1022, %v1534, %v2046
        %v2559 = vsel %vm1023, %v1535, %v2047
        %v2560 = vsel %vm1024, %v1536, %v2048
        %v2561 = vsel %vm1025, %v1537, %v2049
        %v2562 = vsel %vm1026, %v1538, %v2050
        %v2563 = vsel %vm1027, %v1539, %v2051
        %v2564 = vsel %vm1028, %v1540, %v2052
        %v2565 = vsel %vm1029, %v1541, %v2053
        %v2566 = vsel %vm1030, %v1542, %v2054
        %v2567 = vsel %vm1031, %v1543, %v2055
        %v2568 = vsel %vm1032, %v1544, %v2056
        %v2569 = vsel %vm1033, %v1545, %v2057
        %v2570 = vsel %vm1034, %v1546, %v2058
        %v2571 = vsel %vm1035, %v1547, %v2059
        %v2572 = vsel %vm1036, %v1548, %v2060
        %v2573 = vsel %vm1037, %v1549, %v2061
        %v2574 = vsel %vm1038, %v1550, %v2062
        %v2575 = vsel %vm1039, %v1551, %v2063
        %v2576 = vsel %vm1040, %v1552, %v2064
        %v2577 = vsel %vm1041, %v1553, %v2065
        %v2578 = vsel %vm1042, %v1554, %v2066
        %v2579 = vsel %vm1043, %v1555, %v2067
        %v2580 = vsel %vm1044, %v1556, %v2068
        %v2581 = vsel %vm1045, %v1557, %v2069
        %v2582 = vsel %vm1046, %v1558, %v2070
        %v2583 = vsel %vm1047, %v1559, %v2071
        %v2584 = vsel %vm1048, %v1560, %v2072
        %v2585 = vsel %vm1049, %v1561, %v2073
        %v2586 = vsel %vm1050, %v1562, %v2074
        %v2587 = vsel %vm1051, %v1563, %v2075
        %v2588 = vsel %vm1052, %v1564, %v2076
        %v2589 = vsel %vm1053, %v1565, %v2077
        %v2590 = vsel %vm1054, %v1566, %v2078
        %v2591 = vsel %vm1055, %v1567, %v2079
        %v2592 = vsel %vm1056, %v1568, %v2080
        %v2593 = vsel %vm1057, %v1569, %v2081
        %v2594 = vsel %vm1058, %v1570, %v2082
        %v2595 = vsel %vm1059, %v1571, %v2083
        %v2596 = vsel %vm1060, %v1572, %v2084
        %v2597 = vsel %vm1061, %v1573, %v2085
        %v2598 = vsel %vm1062, %v1574, %v2086
        %v2599 = vsel %vm1063, %v1575, %v2087
        %v2600 = vsel %vm1064, %v1576, %v2088
        %v2601 = vsel %vm1065, %v1577, %v2089
        %v2602 = vsel %vm1066, %v1578, %v2090
        %v2603 = vsel %vm1067, %v1579, %v2091
        %v2604 = vsel %vm1068, %v1580, %v2092
        %v2605 = vsel %vm1069, %v1581, %v2093
        %v2606 = vsel %vm1070, %v1582, %v2094
        %v2607 = vsel %vm1071, %v1583, %v2095
        %v2608 = vsel %vm1072, %v1584, %v2096
        %v2609 = vsel %vm1073, %v1585, %v2097
        %v2610 = vsel %vm1074, %v1586, %v2098
        %v2611 = vsel %vm1075, %v1587, %v2099
        %v2612 = vsel %vm1076, %v1588, %v2100
        %v2613 = vsel %vm1077, %v1589, %v2101
        %v2614 = vsel %vm1078, %v1590, %v2102
        %v2615 = vsel %vm1079, %v1591, %v2103
        %v2616 = vsel %vm1080, %v1592, %v2104
        %v2617 = vsel %vm1081, %v1593, %v2105
        %v2618 = vsel %vm1082, %v1594, %v2106
        %v2619 = vsel %vm1083, %v1595, %v2107
        %v2620 = vsel %vm1084, %v1596, %v2108
        %v2621 = vsel %vm1085, %v1597, %v2109
        %v2622 = vsel %vm1086, %v1598, %v2110
        %v2623 = vsel %vm1087, %v1599, %v2111
        %v2624 = vsel %vm1088, %v1600, %v2112
        %v2625 = vsel %vm1089, %v1601, %v2113
        %v2626 = vsel %vm1090, %v1602, %v2114
        %v2627 = vsel %vm1091, %v1603, %v2115
        %v2628 = vsel %vm1092, %v1604, %v2116
        %v2629 = vsel %vm1093, %v1605, %v2117
        %v2630 = vsel %vm1094, %v1606, %v2118
        %v2631 = vsel %vm1095, %v1607, %v2119
        %v2632 = vsel %vm1096, %v1608, %v2120
        %v2633 = vsel %vm1097, %v1609, %v2121
        %v2634 = vsel %vm1098, %v1610, %v2122
        %v2635 = vsel %vm1099, %v1611, %v2123
        %v2636 = vsel %vm1100, %v1612, %v2124
        %v2637 = vsel %vm1101, %v1613, %v2125
        %v2638 = vsel %vm1102, %v1614, %v2126
        %v2639 = vsel %vm1103, %v1615, %v2127
        %v2640 = vsel %vm1104, %v1616, %v2128
        %v2641 = vsel %vm1105, %v1617, %v2129
        %v2642 = vsel %vm1106, %v1618, %v2130
        %v2643 = vsel %vm1107, %v1619, %v2131
        %v2644 = vsel %vm1108, %v1620, %v2132
        %v2645 = vsel %vm1109, %v1621, %v2133
        %v2646 = vsel %vm1110, %v1622, %v2134
        %v2647 = vsel %vm1111, %v1623, %v2135
        %v2648 = vsel %vm1112, %v1624, %v2136
        %v2649 = vsel %vm1113, %v1625, %v2137
        %v2650 = vsel %vm1114, %v1626, %v2138
        %v2651 = vsel %vm1115, %v1627, %v2139
        %v2652 = vsel %vm1116, %v1628, %v2140
        %v2653 = vsel %vm1117, %v1629, %v2141
        %v2654 = vsel %vm1118, %v1630, %v2142
        %v2655 = vsel %vm1119, %v1631, %v2143
        %v2656 = vsel %vm1120, %v1632, %v2144
        %v2657 = vsel %vm1121, %v1633, %v2145
        %v2658 = vsel %vm1122, %v1634, %v2146
        %v2659 = vsel %vm1123, %v1635, %v2147
        %v2660 = vsel %vm1124, %v1636, %v2148
        %v2661 = vsel %vm1125, %v1637, %v2149
        %v2662 = vsel %vm1126, %v1638, %v2150
        %v2663 = vsel %vm1127, %v1639, %v2151
        %v2664 = vsel %vm1128, %v1640, %v2152
        %v2665 = vsel %vm1129, %v1641, %v2153
        %v2666 = vsel %vm1130, %v1642, %v2154
        %v2667 = vsel %vm1131, %v1643, %v2155
        %v2668 = vsel %vm1132, %v1644, %v2156
        %v2669 = vsel %vm1133, %v1645, %v2157
        %v2670 = vsel %vm1134, %v1646, %v2158
        %v2671 = vsel %vm1135, %v1647, %v2159
        %v2672 = vsel %vm1136, %v1648, %v2160
        %v2673 = vsel %vm1137, %v1649, %v2161
        %v2674 = vsel %vm1138, %v1650, %v2162
        %v2675 = vsel %vm1139, %v1651, %v2163
        %v2676 = vsel %vm1140, %v1652, %v2164
        %v2677 = vsel %vm1141, %v1653, %v2165
        %v2678 = vsel %vm1142, %v1654, %v2166
        %v2679 = vsel %vm1143, %v1655, %v2167
        %v2680 = vsel %vm1144, %v1656, %v2168
        %v2681 = vsel %vm1145, %v1657, %v2169
        %v2682 = vsel %vm1146, %v1658, %v2170
        %v2683 = vsel %vm1147, %v1659, %v2171
        %v2684 = vsel %vm1148, %v1660, %v2172
        %v2685 = vsel %vm1149, %v1661, %v2173
        %v2686 = vsel %vm1150, %v1662, %v2174
        %v2687 = vsel %vm1151, %v1663, %v2175
        %v2688 = vsel %vm1152, %v1664, %v2176
        %v2689 = vsel %vm1153, %v1665, %v2177
        %v2690 = vsel %vm1154, %v1666, %v2178
        %v2691 = vsel %vm1155, %v1667, %v2179
        %v2692 = vsel %vm1156, %v1668, %v2180
        %v2693 = vsel %vm1157, %v1669, %v2181
        %v2694 = vsel %vm1158, %v1670, %v2182
        %v2695 = vsel %vm1159, %v1671, %v2183
        %v2696 = vsel %vm1160, %v1672, %v2184
        %v2697 = vsel %vm1161, %v1673, %v2185
        %v2698 = vsel %vm1162, %v1674, %v2186
        %v2699 = vsel %vm1163, %v1675, %v2187
        %v2700 = vsel %vm1164, %v1676, %v2188
        %v2701 = vsel %vm1165, %v1677, %v2189
        %v2702 = vsel %vm1166, %v1678, %v2190
        %v2703 = vsel %vm1167, %v1679, %v2191
        %v2704 = vsel %vm1168, %v1680, %v2192
        %v2705 = vsel %vm1169, %v1681, %v2193
        %v2706 = vsel %vm1170, %v1682, %v2194
        %v2707 = vsel %vm1171, %v1683, %v2195
        %v2708 = vsel %vm1172, %v1684, %v2196
        %v2709 = vsel %vm1173, %v1685, %v2197
        %v2710 = vsel %vm1174, %v1686, %v2198
        %v2711 = vsel %vm1175, %v1687, %v2199
        %v2712 = vsel %vm1176, %v1688, %v2200
        %v2713 = vsel %vm1177, %v1689, %v2201
        %v2714 = vsel %vm1178, %v1690, %v2202
        %v2715 = vsel %vm1179, %v1691, %v2203
        %v2716 = vsel %vm1180, %v1692, %v2204
        %v2717 = vsel %vm1181, %v1693, %v2205
        %v2718 = vsel %vm1182, %v1694, %v2206
        %v2719 = vsel %vm1183, %v1695, %v2207
        %v2720 = vsel %vm1184, %v1696, %v2208
        %v2721 = vsel %vm1185, %v1697, %v2209
        %v2722 = vsel %vm1186, %v1698, %v2210
        %v2723 = vsel %vm1187, %v1699, %v2211
        %v2724 = vsel %vm1188, %v1700, %v2212
        %v2725 = vsel %vm1189, %v1701, %v2213
        %v2726 = vsel %vm1190, %v1702, %v2214
        %v2727 = vsel %vm1191, %v1703, %v2215
        %v2728 = vsel %vm1192, %v1704, %v2216
        %v2729 = vsel %vm1193, %v1705, %v2217
        %v2730 = vsel %vm1194, %v1706, %v2218
        %v2731 = vsel %vm1195, %v1707, %v2219
        %v2732 = vsel %vm1196, %v1708, %v2220
        %v2733 = vsel %vm1197, %v1709, %v2221
        %v2734 = vsel %vm1198, %v1710, %v2222
        %v2735 = vsel %vm1199, %v1711, %v2223
        %v2736 = vsel %vm1200, %v1712, %v2224
        %v2737 = vsel %vm1201, %v1713, %v2225
        %v2738 = vsel %vm1202, %v1714, %v2226
        %v2739 = vsel %vm1203, %v1715, %v2227
        %v2740 = vsel %vm1204, %v1716, %v2228
        %v2741 = vsel %vm1205, %v1717, %v2229
        %v2742 = vsel %vm1206, %v1718, %v2230
        %v2743 = vsel %vm1207, %v1719, %v2231
        %v2744 = vsel %vm1208, %v1720, %v2232
        %v2745 = vsel %vm1209, %v1721, %v2233
        %v2746 = vsel %vm1210, %v1722, %v2234
        %v2747 = vsel %vm1211, %v1723, %v2235
        %v2748 = vsel %vm1212, %v1724, %v2236
        %v2749 = vsel %vm1213, %v1725, %v2237
        %v2750 = vsel %vm1214, %v1726, %v2238
        %v2751 = vsel %vm1215, %v1727, %v2239
        %v2752 = vsel %vm1216, %v1728, %v2240
        %v2753 = vsel %vm1217, %v1729, %v2241
        %v2754 = vsel %vm1218, %v1730, %v2242
        %v2755 = vsel %vm1219, %v1731, %v2243
        %v2756 = vsel %vm1220, %v1732, %v2244
        %v2757 = vsel %vm1221, %v1733, %v2245
        %v2758 = vsel %vm1222, %v1734, %v2246
        %v2759 = vsel %vm1223, %v1735, %v2247
        %v2760 = vsel %vm1224, %v1736, %v2248
        %v2761 = vsel %vm1225, %v1737, %v2249
        %v2762 = vsel %vm1226, %v1738, %v2250
        %v2763 = vsel %vm1227, %v1739, %v2251
        %v2764 = vsel %vm1228, %v1740, %v2252
        %v2765 = vsel %vm1229, %v1741, %v2253
        %v2766 = vsel %vm1230, %v1742, %v2254
        %v2767 = vsel %vm1231, %v1743, %v2255
        %v2768 = vsel %vm1232, %v1744, %v2256
        %v2769 = vsel %vm1233, %v1745, %v2257
        %v2770 = vsel %vm1234, %v1746, %v2258
        %v2771 = vsel %vm1235, %v1747, %v2259
        %v2772 = vsel %vm1236, %v1748, %v2260
        %v2773 = vsel %vm1237, %v1749, %v2261
        %v2774 = vsel %vm1238, %v1750, %v2262
        %v2775 = vsel %vm1239, %v1751, %v2263
        %v2776 = vsel %vm1240, %v1752, %v2264
        %v2777 = vsel %vm1241, %v1753, %v2265
        %v2778 = vsel %vm1242, %v1754, %v2266
        %v2779 = vsel %vm1243, %v1755, %v2267
        %v2780 = vsel %vm1244, %v1756, %v2268
        %v2781 = vsel %vm1245, %v1757, %v2269
        %v2782 = vsel %vm1246, %v1758, %v2270
        %v2783 = vsel %vm1247, %v1759, %v2271
        %v2784 = vsel %vm1248, %v1760, %v2272
        %v2785 = vsel %vm1249, %v1761, %v2273
        %v2786 = vsel %vm1250, %v1762, %v2274
        %v2787 = vsel %vm1251, %v1763, %v2275
        %v2788 = vsel %vm1252, %v1764, %v2276
        %v2789 = vsel %vm1253, %v1765, %v2277
        %v2790 = vsel %vm1254, %v1766, %v2278
        %v2791 = vsel %vm1255, %v1767, %v2279
        %v2792 = vsel %vm1256, %v1768, %v2280
        %v2793 = vsel %vm1257, %v1769, %v2281
        %v2794 = vsel %vm1258, %v1770, %v2282
        %v2795 = vsel %vm1259, %v1771, %v2283
        %v2796 = vsel %vm1260, %v1772, %v2284
        %v2797 = vsel %vm1261, %v1773, %v2285
        %v2798 = vsel %vm1262, %v1774, %v2286
        %v2799 = vsel %vm1263, %v1775, %v2287
        %v2800 = vsel %vm1264, %v1776, %v2288
        %v2801 = vsel %vm1265, %v1777, %v2289
        %v2802 = vsel %vm1266, %v1778, %v2290
        %v2803 = vsel %vm1267, %v1779, %v2291
        %v2804 = vsel %vm1268, %v1780, %v2292
        %v2805 = vsel %vm1269, %v1781, %v2293
        %v2806 = vsel %vm1270, %v1782, %v2294
        %v2807 = vsel %vm1271, %v1783, %v2295
        %v2808 = vsel %vm1272, %v1784, %v2296
        %v2809 = vsel %vm1273, %v1785, %v2297
        %2810 = vst [vmem:[%s238] sm:$0xff] %v2298
        %2811 = vst [vmem:[%s238 + $0x8] sm:$0xff] %v2299
        %2812 = vst [vmem:[%s238 + $0x10] sm:$0xff] %v2300
        %2813 = vst [vmem:[%s238 + $0x18] sm:$0xff] %v2301
        %2814 = vst [vmem:[%s238 + $0x20] sm:$0xff] %v2302
        %2815 = vst [vmem:[%s238 + $0x28] sm:$0xff] %v2303
        %2816 = vst [vmem:[%s238 + $0x30] sm:$0xff] %v2304
        %2817 = vst [vmem:[%s238 + $0x38] sm:$0xff] %v2305
        %2818 = vst [vmem:[%s238 + $0x40] sm:$0xff] %v2306
        %2819 = vst [vmem:[%s238 + $0x48] sm:$0xff] %v2307
        %2820 = vst [vmem:[%s238 + $0x50] sm:$0xff] %v2308
        %2821 = vst [vmem:[%s238 + $0x58] sm:$0xff] %v2309
        %2822 = vst [vmem:[%s238 + $0x60] sm:$0xff] %v2310
        %2823 = vst [vmem:[%s238 + $0x68] sm:$0xff] %v2311
        %2824 = vst [vmem:[%s238 + $0x70] sm:$0xff] %v2312
        %2825 = vst [vmem:[%s238 + $0x78] sm:$0xff] %v2313
        %2826 = vst [vmem:[%s238 + $0x80] sm:$0xff] %v2314
        %2827 = vst [vmem:[%s238 + $0x88] sm:$0xff] %v2315
        %2828 = vst [vmem:[%s238 + $0x90] sm:$0xff] %v2316
        %2829 = vst [vmem:[%s238 + $0x98] sm:$0xff] %v2317
        %2830 = vst [vmem:[%s238 + $0xa0] sm:$0xff] %v2318
        %2831 = vst [vmem:[%s238 + $0xa8] sm:$0xff] %v2319
        %2832 = vst [vmem:[%s238 + $0xb0] sm:$0xff] %v2320
        %2833 = vst [vmem:[%s238 + $0xb8] sm:$0xff] %v2321
        %2834 = vst [vmem:[%s238 + $0xc0] sm:$0xff] %v2322
        %2835 = vst [vmem:[%s238 + $0xc8] sm:$0xff] %v2323
        %2836 = vst [vmem:[%s238 + $0xd0] sm:$0xff] %v2324
        %2837 = vst [vmem:[%s238 + $0xd8] sm:$0xff] %v2325
        %2838 = vst [vmem:[%s238 + $0xe0] sm:$0xff] %v2326
        %2839 = vst [vmem:[%s238 + $0xe8] sm:$0xff] %v2327
        %2840 = vst [vmem:[%s238 + $0xf0] sm:$0xff] %v2328
        %2841 = vst [vmem:[%s238 + $0xf8] sm:$0xff] %v2329
        %2842 = vst [vmem:[%s238 + $0x100] sm:$0xff] %v2330
        %2843 = vst [vmem:[%s238 + $0x108] sm:$0xff] %v2331
        %2844 = vst [vmem:[%s238 + $0x110] sm:$0xff] %v2332
        %2845 = vst [vmem:[%s238 + $0x118] sm:$0xff] %v2333
        %2846 = vst [vmem:[%s238 + $0x120] sm:$0xff] %v2334
        %2847 = vst [vmem:[%s238 + $0x128] sm:$0xff] %v2335
        %2848 = vst [vmem:[%s238 + $0x130] sm:$0xff] %v2336
        %2849 = vst [vmem:[%s238 + $0x138] sm:$0xff] %v2337
        %2850 = vst [vmem:[%s238 + $0x140] sm:$0xff] %v2338
        %2851 = vst [vmem:[%s238 + $0x148] sm:$0xff] %v2339
        %2852 = vst [vmem:[%s238 + $0x150] sm:$0xff] %v2340
        %2853 = vst [vmem:[%s238 + $0x158] sm:$0xff] %v2341
        %2854 = vst [vmem:[%s238 + $0x160] sm:$0xff] %v2342
        %2855 = vst [vmem:[%s238 + $0x168] sm:$0xff] %v2343
        %2856 = vst [vmem:[%s238 + $0x170] sm:$0xff] %v2344
        %2857 = vst [vmem:[%s238 + $0x178] sm:$0xff] %v2345
        %2858 = vst [vmem:[%s238 + $0x180] sm:$0xff] %v2346
        %2859 = vst [vmem:[%s238 + $0x188] sm:$0xff] %v2347
        %2860 = vst [vmem:[%s238 + $0x190] sm:$0xff] %v2348
        %2861 = vst [vmem:[%s238 + $0x198] sm:$0xff] %v2349
        %2862 = vst [vmem:[%s238 + $0x1a0] sm:$0xff] %v2350
        %2863 = vst [vmem:[%s238 + $0x1a8] sm:$0xff] %v2351
        %2864 = vst [vmem:[%s238 + $0x1b0] sm:$0xff] %v2352
        %2865 = vst [vmem:[%s238 + $0x1b8] sm:$0xff] %v2353
        %2866 = vst [vmem:[%s238 + $0x1c0] sm:$0xff] %v2354
        %2867 = vst [vmem:[%s238 + $0x1c8] sm:$0xff] %v2355
        %2868 = vst [vmem:[%s238 + $0x1d0] sm:$0xff] %v2356
        %2869 = vst [vmem:[%s238 + $0x1d8] sm:$0xff] %v2357
        %2870 = vst [vmem:[%s238 + $0x1e0] sm:$0xff] %v2358
        %2871 = vst [vmem:[%s238 + $0x1e8] sm:$0xff] %v2359
        %2872 = vst [vmem:[%s238 + $0x1f0] sm:$0xff] %v2360
        %2873 = vst [vmem:[%s238 + $0x1f8] sm:$0xff] %v2361
        %2874 = vst [vmem:[%s238 + $0x200] sm:$0xff] %v2362
        %2875 = vst [vmem:[%s238 + $0x208] sm:$0xff] %v2363
        %2876 = vst [vmem:[%s238 + $0x210] sm:$0xff] %v2364
        %2877 = vst [vmem:[%s238 + $0x218] sm:$0xff] %v2365
        %2878 = vst [vmem:[%s238 + $0x220] sm:$0xff] %v2366
        %2879 = vst [vmem:[%s238 + $0x228] sm:$0xff] %v2367
        %2880 = vst [vmem:[%s238 + $0x230] sm:$0xff] %v2368
        %2881 = vst [vmem:[%s238 + $0x238] sm:$0xff] %v2369
        %2882 = vst [vmem:[%s238 + $0x240] sm:$0xff] %v2370
        %2883 = vst [vmem:[%s238 + $0x248] sm:$0xff] %v2371
        %2884 = vst [vmem:[%s238 + $0x250] sm:$0xff] %v2372
        %2885 = vst [vmem:[%s238 + $0x258] sm:$0xff] %v2373
        %2886 = vst [vmem:[%s238 + $0x260] sm:$0xff] %v2374
        %2887 = vst [vmem:[%s238 + $0x268] sm:$0xff] %v2375
        %2888 = vst [vmem:[%s238 + $0x270] sm:$0xff] %v2376
        %2889 = vst [vmem:[%s238 + $0x278] sm:$0xff] %v2377
        %2890 = vst [vmem:[%s238 + $0x280] sm:$0xff] %v2378
        %2891 = vst [vmem:[%s238 + $0x288] sm:$0xff] %v2379
        %2892 = vst [vmem:[%s238 + $0x290] sm:$0xff] %v2380
        %2893 = vst [vmem:[%s238 + $0x298] sm:$0xff] %v2381
        %2894 = vst [vmem:[%s238 + $0x2a0] sm:$0xff] %v2382
        %2895 = vst [vmem:[%s238 + $0x2a8] sm:$0xff] %v2383
        %2896 = vst [vmem:[%s238 + $0x2b0] sm:$0xff] %v2384
        %2897 = vst [vmem:[%s238 + $0x2b8] sm:$0xff] %v2385
        %2898 = vst [vmem:[%s238 + $0x2c0] sm:$0xff] %v2386
        %2899 = vst [vmem:[%s238 + $0x2c8] sm:$0xff] %v2387
        %2900 = vst [vmem:[%s238 + $0x2d0] sm:$0xff] %v2388
        %2901 = vst [vmem:[%s238 + $0x2d8] sm:$0xff] %v2389
        %2902 = vst [vmem:[%s238 + $0x2e0] sm:$0xff] %v2390
        %2903 = vst [vmem:[%s238 + $0x2e8] sm:$0xff] %v2391
        %2904 = vst [vmem:[%s238 + $0x2f0] sm:$0xff] %v2392
        %2905 = vst [vmem:[%s238 + $0x2f8] sm:$0xff] %v2393
        %2906 = vst [vmem:[%s238 + $0x300] sm:$0xff] %v2394
        %2907 = vst [vmem:[%s238 + $0x308] sm:$0xff] %v2395
        %2908 = vst [vmem:[%s238 + $0x310] sm:$0xff] %v2396
        %2909 = vst [vmem:[%s238 + $0x318] sm:$0xff] %v2397
        %2910 = vst [vmem:[%s238 + $0x320] sm:$0xff] %v2398
        %2911 = vst [vmem:[%s238 + $0x328] sm:$0xff] %v2399
        %2912 = vst [vmem:[%s238 + $0x330] sm:$0xff] %v2400
        %2913 = vst [vmem:[%s238 + $0x338] sm:$0xff] %v2401
        %2914 = vst [vmem:[%s238 + $0x340] sm:$0xff] %v2402
        %2915 = vst [vmem:[%s238 + $0x348] sm:$0xff] %v2403
        %2916 = vst [vmem:[%s238 + $0x350] sm:$0xff] %v2404
        %2917 = vst [vmem:[%s238 + $0x358] sm:$0xff] %v2405
        %2918 = vst [vmem:[%s238 + $0x360] sm:$0xff] %v2406
        %2919 = vst [vmem:[%s238 + $0x368] sm:$0xff] %v2407
        %2920 = vst [vmem:[%s238 + $0x370] sm:$0xff] %v2408
        %2921 = vst [vmem:[%s238 + $0x378] sm:$0xff] %v2409
        %2922 = vst [vmem:[%s238 + $0x380] sm:$0xff] %v2410
        %2923 = vst [vmem:[%s238 + $0x388] sm:$0xff] %v2411
        %2924 = vst [vmem:[%s238 + $0x390] sm:$0xff] %v2412
        %2925 = vst [vmem:[%s238 + $0x398] sm:$0xff] %v2413
        %2926 = vst [vmem:[%s238 + $0x3a0] sm:$0xff] %v2414
        %2927 = vst [vmem:[%s238 + $0x3a8] sm:$0xff] %v2415
        %2928 = vst [vmem:[%s238 + $0x3b0] sm:$0xff] %v2416
        %2929 = vst [vmem:[%s238 + $0x3b8] sm:$0xff] %v2417
        %2930 = vst [vmem:[%s238 + $0x3c0] sm:$0xff] %v2418
        %2931 = vst [vmem:[%s238 + $0x3c8] sm:$0xff] %v2419
        %2932 = vst [vmem:[%s238 + $0x3d0] sm:$0xff] %v2420
        %2933 = vst [vmem:[%s238 + $0x3d8] sm:$0xff] %v2421
        %2934 = vst [vmem:[%s238 + $0x3e0] sm:$0xff] %v2422
        %2935 = vst [vmem:[%s238 + $0x3e8] sm:$0xff] %v2423
        %2936 = vst [vmem:[%s238 + $0x3f0] sm:$0xff] %v2424
        %2937 = vst [vmem:[%s238 + $0x3f8] sm:$0xff] %v2425
        %2938 = vst [vmem:[%s238 + $0x400] sm:$0xff] %v2426
        %2939 = vst [vmem:[%s238 + $0x408] sm:$0xff] %v2427
        %2940 = vst [vmem:[%s238 + $0x410] sm:$0xff] %v2428
        %2941 = vst [vmem:[%s238 + $0x418] sm:$0xff] %v2429
        %2942 = vst [vmem:[%s238 + $0x420] sm:$0xff] %v2430
        %2943 = vst [vmem:[%s238 + $0x428] sm:$0xff] %v2431
        %2944 = vst [vmem:[%s238 + $0x430] sm:$0xff] %v2432
        %2945 = vst [vmem:[%s238 + $0x438] sm:$0xff] %v2433
        %2946 = vst [vmem:[%s238 + $0x440] sm:$0xff] %v2434
        %2947 = vst [vmem:[%s238 + $0x448] sm:$0xff] %v2435
        %2948 = vst [vmem:[%s238 + $0x450] sm:$0xff] %v2436
        %2949 = vst [vmem:[%s238 + $0x458] sm:$0xff] %v2437
        %2950 = vst [vmem:[%s238 + $0x460] sm:$0xff] %v2438
        %2951 = vst [vmem:[%s238 + $0x468] sm:$0xff] %v2439
        %2952 = vst [vmem:[%s238 + $0x470] sm:$0xff] %v2440
        %2953 = vst [vmem:[%s238 + $0x478] sm:$0xff] %v2441
        %2954 = vst [vmem:[%s238 + $0x480] sm:$0xff] %v2442
        %2955 = vst [vmem:[%s238 + $0x488] sm:$0xff] %v2443
        %2956 = vst [vmem:[%s238 + $0x490] sm:$0xff] %v2444
        %2957 = vst [vmem:[%s238 + $0x498] sm:$0xff] %v2445
        %2958 = vst [vmem:[%s238 + $0x4a0] sm:$0xff] %v2446
        %2959 = vst [vmem:[%s238 + $0x4a8] sm:$0xff] %v2447
        %2960 = vst [vmem:[%s238 + $0x4b0] sm:$0xff] %v2448
        %2961 = vst [vmem:[%s238 + $0x4b8] sm:$0xff] %v2449
        %2962 = vst [vmem:[%s238 + $0x4c0] sm:$0xff] %v2450
        %2963 = vst [vmem:[%s238 + $0x4c8] sm:$0xff] %v2451
        %2964 = vst [vmem:[%s238 + $0x4d0] sm:$0xff] %v2452
        %2965 = vst [vmem:[%s238 + $0x4d8] sm:$0xff] %v2453
        %2966 = vst [vmem:[%s238 + $0x4e0] sm:$0xff] %v2454
        %2967 = vst [vmem:[%s238 + $0x4e8] sm:$0xff] %v2455
        %2968 = vst [vmem:[%s238 + $0x4f0] sm:$0xff] %v2456
        %2969 = vst [vmem:[%s238 + $0x4f8] sm:$0xff] %v2457
        %2970 = vst [vmem:[%s238 + $0x500] sm:$0xff] %v2458
        %2971 = vst [vmem:[%s238 + $0x508] sm:$0xff] %v2459
        %2972 = vst [vmem:[%s238 + $0x510] sm:$0xff] %v2460
        %2973 = vst [vmem:[%s238 + $0x518] sm:$0xff] %v2461
        %2974 = vst [vmem:[%s238 + $0x520] sm:$0xff] %v2462
        %2975 = vst [vmem:[%s238 + $0x528] sm:$0xff] %v2463
        %2976 = vst [vmem:[%s238 + $0x530] sm:$0xff] %v2464
        %2977 = vst [vmem:[%s238 + $0x538] sm:$0xff] %v2465
        %2978 = vst [vmem:[%s238 + $0x540] sm:$0xff] %v2466
        %2979 = vst [vmem:[%s238 + $0x548] sm:$0xff] %v2467
        %2980 = vst [vmem:[%s238 + $0x550] sm:$0xff] %v2468
        %2981 = vst [vmem:[%s238 + $0x558] sm:$0xff] %v2469
        %2982 = vst [vmem:[%s238 + $0x560] sm:$0xff] %v2470
        %2983 = vst [vmem:[%s238 + $0x568] sm:$0xff] %v2471
        %2984 = vst [vmem:[%s238 + $0x570] sm:$0xff] %v2472
        %2985 = vst [vmem:[%s238 + $0x578] sm:$0xff] %v2473
        %2986 = vst [vmem:[%s238 + $0x580] sm:$0xff] %v2474
        %2987 = vst [vmem:[%s238 + $0x588] sm:$0xff] %v2475
        %2988 = vst [vmem:[%s238 + $0x590] sm:$0xff] %v2476
        %2989 = vst [vmem:[%s238 + $0x598] sm:$0xff] %v2477
        %2990 = vst [vmem:[%s238 + $0x5a0] sm:$0xff] %v2478
        %2991 = vst [vmem:[%s238 + $0x5a8] sm:$0xff] %v2479
        %2992 = vst [vmem:[%s238 + $0x5b0] sm:$0xff] %v2480
        %2993 = vst [vmem:[%s238 + $0x5b8] sm:$0xff] %v2481
        %2994 = vst [vmem:[%s238 + $0x5c0] sm:$0xff] %v2482
        %2995 = vst [vmem:[%s238 + $0x5c8] sm:$0xff] %v2483
        %2996 = vst [vmem:[%s238 + $0x5d0] sm:$0xff] %v2484
        %2997 = vst [vmem:[%s238 + $0x5d8] sm:$0xff] %v2485
        %2998 = vst [vmem:[%s238 + $0x5e0] sm:$0xff] %v2486
        %2999 = vst [vmem:[%s238 + $0x5e8] sm:$0xff] %v2487
        %3000 = vst [vmem:[%s238 + $0x5f0] sm:$0xff] %v2488
        %3001 = vst [vmem:[%s238 + $0x5f8] sm:$0xff] %v2489
        %3002 = vst [vmem:[%s238 + $0x600] sm:$0xff] %v2490
        %3003 = vst [vmem:[%s238 + $0x608] sm:$0xff] %v2491
        %3004 = vst [vmem:[%s238 + $0x610] sm:$0xff] %v2492
        %3005 = vst [vmem:[%s238 + $0x618] sm:$0xff] %v2493
        %3006 = vst [vmem:[%s238 + $0x620] sm:$0xff] %v2494
        %3007 = vst [vmem:[%s238 + $0x628] sm:$0xff] %v2495
        %3008 = vst [vmem:[%s238 + $0x630] sm:$0xff] %v2496
        %3009 = vst [vmem:[%s238 + $0x638] sm:$0xff] %v2497
        %3010 = vst [vmem:[%s238 + $0x640] sm:$0xff] %v2498
        %3011 = vst [vmem:[%s238 + $0x648] sm:$0xff] %v2499
        %3012 = vst [vmem:[%s238 + $0x650] sm:$0xff] %v2500
        %3013 = vst [vmem:[%s238 + $0x658] sm:$0xff] %v2501
        %3014 = vst [vmem:[%s238 + $0x660] sm:$0xff] %v2502
        %3015 = vst [vmem:[%s238 + $0x668] sm:$0xff] %v2503
        %3016 = vst [vmem:[%s238 + $0x670] sm:$0xff] %v2504
        %3017 = vst [vmem:[%s238 + $0x678] sm:$0xff] %v2505
        %3018 = vst [vmem:[%s238 + $0x680] sm:$0xff] %v2506
        %3019 = vst [vmem:[%s238 + $0x688] sm:$0xff] %v2507
        %3020 = vst [vmem:[%s238 + $0x690] sm:$0xff] %v2508
        %3021 = vst [vmem:[%s238 + $0x698] sm:$0xff] %v2509
        %3022 = vst [vmem:[%s238 + $0x6a0] sm:$0xff] %v2510
        %3023 = vst [vmem:[%s238 + $0x6a8] sm:$0xff] %v2511
        %3024 = vst [vmem:[%s238 + $0x6b0] sm:$0xff] %v2512
        %3025 = vst [vmem:[%s238 + $0x6b8] sm:$0xff] %v2513
        %3026 = vst [vmem:[%s238 + $0x6c0] sm:$0xff] %v2514
        %3027 = vst [vmem:[%s238 + $0x6c8] sm:$0xff] %v2515
        %3028 = vst [vmem:[%s238 + $0x6d0] sm:$0xff] %v2516
        %3029 = vst [vmem:[%s238 + $0x6d8] sm:$0xff] %v2517
        %3030 = vst [vmem:[%s238 + $0x6e0] sm:$0xff] %v2518
        %3031 = vst [vmem:[%s238 + $0x6e8] sm:$0xff] %v2519
        %3032 = vst [vmem:[%s238 + $0x6f0] sm:$0xff] %v2520
        %3033 = vst [vmem:[%s238 + $0x6f8] sm:$0xff] %v2521
        %3034 = vst [vmem:[%s238 + $0x700] sm:$0xff] %v2522
        %3035 = vst [vmem:[%s238 + $0x708] sm:$0xff] %v2523
        %3036 = vst [vmem:[%s238 + $0x710] sm:$0xff] %v2524
        %3037 = vst [vmem:[%s238 + $0x718] sm:$0xff] %v2525
        %3038 = vst [vmem:[%s238 + $0x720] sm:$0xff] %v2526
        %3039 = vst [vmem:[%s238 + $0x728] sm:$0xff] %v2527
        %3040 = vst [vmem:[%s238 + $0x730] sm:$0xff] %v2528
        %3041 = vst [vmem:[%s238 + $0x738] sm:$0xff] %v2529
        %3042 = vst [vmem:[%s238 + $0x740] sm:$0xff] %v2530
        %3043 = vst [vmem:[%s238 + $0x748] sm:$0xff] %v2531
        %3044 = vst [vmem:[%s238 + $0x750] sm:$0xff] %v2532
        %3045 = vst [vmem:[%s238 + $0x758] sm:$0xff] %v2533
        %3046 = vst [vmem:[%s238 + $0x760] sm:$0xff] %v2534
        %3047 = vst [vmem:[%s238 + $0x768] sm:$0xff] %v2535
        %3048 = vst [vmem:[%s238 + $0x770] sm:$0xff] %v2536
        %3049 = vst [vmem:[%s238 + $0x778] sm:$0xff] %v2537
        %3050 = vst [vmem:[%s238 + $0x780] sm:$0xff] %v2538
        %3051 = vst [vmem:[%s238 + $0x788] sm:$0xff] %v2539
        %3052 = vst [vmem:[%s238 + $0x790] sm:$0xff] %v2540
        %3053 = vst [vmem:[%s238 + $0x798] sm:$0xff] %v2541
        %3054 = vst [vmem:[%s238 + $0x7a0] sm:$0xff] %v2542
        %3055 = vst [vmem:[%s238 + $0x7a8] sm:$0xff] %v2543
        %3056 = vst [vmem:[%s238 + $0x7b0] sm:$0xff] %v2544
        %3057 = vst [vmem:[%s238 + $0x7b8] sm:$0xff] %v2545
        %3058 = vst [vmem:[%s238 + $0x7c0] sm:$0xff] %v2546
        %3059 = vst [vmem:[%s238 + $0x7c8] sm:$0xff] %v2547
        %3060 = vst [vmem:[%s238 + $0x7d0] sm:$0xff] %v2548
        %3061 = vst [vmem:[%s238 + $0x7d8] sm:$0xff] %v2549
        %3062 = vst [vmem:[%s238 + $0x7e0] sm:$0xff] %v2550
        %3063 = vst [vmem:[%s238 + $0x7e8] sm:$0xff] %v2551
        %3064 = vst [vmem:[%s238 + $0x7f0] sm:$0xff] %v2552
        %3065 = vst [vmem:[%s238 + $0x7f8] sm:$0xff] %v2553
        %3066 = vst [vmem:[%s238 + $0x800] sm:$0xff] %v2554
        %3067 = vst [vmem:[%s238 + $0x808] sm:$0xff] %v2555
        %3068 = vst [vmem:[%s238 + $0x810] sm:$0xff] %v2556
        %3069 = vst [vmem:[%s238 + $0x818] sm:$0xff] %v2557
        %3070 = vst [vmem:[%s238 + $0x820] sm:$0xff] %v2558
        %3071 = vst [vmem:[%s238 + $0x828] sm:$0xff] %v2559
        %3072 = vst [vmem:[%s238 + $0x830] sm:$0xff] %v2560
        %3073 = vst [vmem:[%s238 + $0x838] sm:$0xff] %v2561
        %3074 = vst [vmem:[%s238 + $0x840] sm:$0xff] %v2562
        %3075 = vst [vmem:[%s238 + $0x848] sm:$0xff] %v2563
        %3076 = vst [vmem:[%s238 + $0x850] sm:$0xff] %v2564
        %3077 = vst [vmem:[%s238 + $0x858] sm:$0xff] %v2565
        %3078 = vst [vmem:[%s238 + $0x860] sm:$0xff] %v2566
        %3079 = vst [vmem:[%s238 + $0x868] sm:$0xff] %v2567
        %3080 = vst [vmem:[%s238 + $0x870] sm:$0xff] %v2568
        %3081 = vst [vmem:[%s238 + $0x878] sm:$0xff] %v2569
        %3082 = vst [vmem:[%s238 + $0x880] sm:$0xff] %v2570
        %3083 = vst [vmem:[%s238 + $0x888] sm:$0xff] %v2571
        %3084 = vst [vmem:[%s238 + $0x890] sm:$0xff] %v2572
        %3085 = vst [vmem:[%s238 + $0x898] sm:$0xff] %v2573
        %3086 = vst [vmem:[%s238 + $0x8a0] sm:$0xff] %v2574
        %3087 = vst [vmem:[%s238 + $0x8a8] sm:$0xff] %v2575
        %3088 = vst [vmem:[%s238 + $0x8b0] sm:$0xff] %v2576
        %3089 = vst [vmem:[%s238 + $0x8b8] sm:$0xff] %v2577
        %3090 = vst [vmem:[%s238 + $0x8c0] sm:$0xff] %v2578
        %3091 = vst [vmem:[%s238 + $0x8c8] sm:$0xff] %v2579
        %3092 = vst [vmem:[%s238 + $0x8d0] sm:$0xff] %v2580
        %3093 = vst [vmem:[%s238 + $0x8d8] sm:$0xff] %v2581
        %3094 = vst [vmem:[%s238 + $0x8e0] sm:$0xff] %v2582
        %3095 = vst [vmem:[%s238 + $0x8e8] sm:$0xff] %v2583
        %3096 = vst [vmem:[%s238 + $0x8f0] sm:$0xff] %v2584
        %3097 = vst [vmem:[%s238 + $0x8f8] sm:$0xff] %v2585
        %3098 = vst [vmem:[%s238 + $0x900] sm:$0xff] %v2586
        %3099 = vst [vmem:[%s238 + $0x908] sm:$0xff] %v2587
        %3100 = vst [vmem:[%s238 + $0x910] sm:$0xff] %v2588
        %3101 = vst [vmem:[%s238 + $0x918] sm:$0xff] %v2589
        %3102 = vst [vmem:[%s238 + $0x920] sm:$0xff] %v2590
        %3103 = vst [vmem:[%s238 + $0x928] sm:$0xff] %v2591
        %3104 = vst [vmem:[%s238 + $0x930] sm:$0xff] %v2592
        %3105 = vst [vmem:[%s238 + $0x938] sm:$0xff] %v2593
        %3106 = vst [vmem:[%s238 + $0x940] sm:$0xff] %v2594
        %3107 = vst [vmem:[%s238 + $0x948] sm:$0xff] %v2595
        %3108 = vst [vmem:[%s238 + $0x950] sm:$0xff] %v2596
        %3109 = vst [vmem:[%s238 + $0x958] sm:$0xff] %v2597
        %3110 = vst [vmem:[%s238 + $0x960] sm:$0xff] %v2598
        %3111 = vst [vmem:[%s238 + $0x968] sm:$0xff] %v2599
        %3112 = vst [vmem:[%s238 + $0x970] sm:$0xff] %v2600
        %3113 = vst [vmem:[%s238 + $0x978] sm:$0xff] %v2601
        %3114 = vst [vmem:[%s238 + $0x980] sm:$0xff] %v2602
        %3115 = vst [vmem:[%s238 + $0x988] sm:$0xff] %v2603
        %3116 = vst [vmem:[%s238 + $0x990] sm:$0xff] %v2604
        %3117 = vst [vmem:[%s238 + $0x998] sm:$0xff] %v2605
        %3118 = vst [vmem:[%s238 + $0x9a0] sm:$0xff] %v2606
        %3119 = vst [vmem:[%s238 + $0x9a8] sm:$0xff] %v2607
        %3120 = vst [vmem:[%s238 + $0x9b0] sm:$0xff] %v2608
        %3121 = vst [vmem:[%s238 + $0x9b8] sm:$0xff] %v2609
        %3122 = vst [vmem:[%s238 + $0x9c0] sm:$0xff] %v2610
        %3123 = vst [vmem:[%s238 + $0x9c8] sm:$0xff] %v2611
        %3124 = vst [vmem:[%s238 + $0x9d0] sm:$0xff] %v2612
        %3125 = vst [vmem:[%s238 + $0x9d8] sm:$0xff] %v2613
        %3126 = vst [vmem:[%s238 + $0x9e0] sm:$0xff] %v2614
        %3127 = vst [vmem:[%s238 + $0x9e8] sm:$0xff] %v2615
        %3128 = vst [vmem:[%s238 + $0x9f0] sm:$0xff] %v2616
        %3129 = vst [vmem:[%s238 + $0x9f8] sm:$0xff] %v2617
        %3130 = vst [vmem:[%s238 + $0xa00] sm:$0xff] %v2618
        %3131 = vst [vmem:[%s238 + $0xa08] sm:$0xff] %v2619
        %3132 = vst [vmem:[%s238 + $0xa10] sm:$0xff] %v2620
        %3133 = vst [vmem:[%s238 + $0xa18] sm:$0xff] %v2621
        %3134 = vst [vmem:[%s238 + $0xa20] sm:$0xff] %v2622
        %3135 = vst [vmem:[%s238 + $0xa28] sm:$0xff] %v2623
        %3136 = vst [vmem:[%s238 + $0xa30] sm:$0xff] %v2624
        %3137 = vst [vmem:[%s238 + $0xa38] sm:$0xff] %v2625
        %3138 = vst [vmem:[%s238 + $0xa40] sm:$0xff] %v2626
        %3139 = vst [vmem:[%s238 + $0xa48] sm:$0xff] %v2627
        %3140 = vst [vmem:[%s238 + $0xa50] sm:$0xff] %v2628
        %3141 = vst [vmem:[%s238 + $0xa58] sm:$0xff] %v2629
        %3142 = vst [vmem:[%s238 + $0xa60] sm:$0xff] %v2630
        %3143 = vst [vmem:[%s238 + $0xa68] sm:$0xff] %v2631
        %3144 = vst [vmem:[%s238 + $0xa70] sm:$0xff] %v2632
        %3145 = vst [vmem:[%s238 + $0xa78] sm:$0xff] %v2633
        %3146 = vst [vmem:[%s238 + $0xa80] sm:$0xff] %v2634
        %3147 = vst [vmem:[%s238 + $0xa88] sm:$0xff] %v2635
        %3148 = vst [vmem:[%s238 + $0xa90] sm:$0xff] %v2636
        %3149 = vst [vmem:[%s238 + $0xa98] sm:$0xff] %v2637
        %3150 = vst [vmem:[%s238 + $0xaa0] sm:$0xff] %v2638
        %3151 = vst [vmem:[%s238 + $0xaa8] sm:$0xff] %v2639
        %3152 = vst [vmem:[%s238 + $0xab0] sm:$0xff] %v2640
        %3153 = vst [vmem:[%s238 + $0xab8] sm:$0xff] %v2641
        %3154 = vst [vmem:[%s238 + $0xac0] sm:$0xff] %v2642
        %3155 = vst [vmem:[%s238 + $0xac8] sm:$0xff] %v2643
        %3156 = vst [vmem:[%s238 + $0xad0] sm:$0xff] %v2644
        %3157 = vst [vmem:[%s238 + $0xad8] sm:$0xff] %v2645
        %3158 = vst [vmem:[%s238 + $0xae0] sm:$0xff] %v2646
        %3159 = vst [vmem:[%s238 + $0xae8] sm:$0xff] %v2647
        %3160 = vst [vmem:[%s238 + $0xaf0] sm:$0xff] %v2648
        %3161 = vst [vmem:[%s238 + $0xaf8] sm:$0xff] %v2649
        %3162 = vst [vmem:[%s238 + $0xb00] sm:$0xff] %v2650
        %3163 = vst [vmem:[%s238 + $0xb08] sm:$0xff] %v2651
        %3164 = vst [vmem:[%s238 + $0xb10] sm:$0xff] %v2652
        %3165 = vst [vmem:[%s238 + $0xb18] sm:$0xff] %v2653
        %3166 = vst [vmem:[%s238 + $0xb20] sm:$0xff] %v2654
        %3167 = vst [vmem:[%s238 + $0xb28] sm:$0xff] %v2655
        %3168 = vst [vmem:[%s238 + $0xb30] sm:$0xff] %v2656
        %3169 = vst [vmem:[%s238 + $0xb38] sm:$0xff] %v2657
        %3170 = vst [vmem:[%s238 + $0xb40] sm:$0xff] %v2658
        %3171 = vst [vmem:[%s238 + $0xb48] sm:$0xff] %v2659
        %3172 = vst [vmem:[%s238 + $0xb50] sm:$0xff] %v2660
        %3173 = vst [vmem:[%s238 + $0xb58] sm:$0xff] %v2661
        %3174 = vst [vmem:[%s238 + $0xb60] sm:$0xff] %v2662
        %3175 = vst [vmem:[%s238 + $0xb68] sm:$0xff] %v2663
        %3176 = vst [vmem:[%s238 + $0xb70] sm:$0xff] %v2664
        %3177 = vst [vmem:[%s238 + $0xb78] sm:$0xff] %v2665
        %3178 = vst [vmem:[%s238 + $0xb80] sm:$0xff] %v2666
        %3179 = vst [vmem:[%s238 + $0xb88] sm:$0xff] %v2667
        %3180 = vst [vmem:[%s238 + $0xb90] sm:$0xff] %v2668
        %3181 = vst [vmem:[%s238 + $0xb98] sm:$0xff] %v2669
        %3182 = vst [vmem:[%s238 + $0xba0] sm:$0xff] %v2670
        %3183 = vst [vmem:[%s238 + $0xba8] sm:$0xff] %v2671
        %3184 = vst [vmem:[%s238 + $0xbb0] sm:$0xff] %v2672
        %3185 = vst [vmem:[%s238 + $0xbb8] sm:$0xff] %v2673
        %3186 = vst [vmem:[%s238 + $0xbc0] sm:$0xff] %v2674
        %3187 = vst [vmem:[%s238 + $0xbc8] sm:$0xff] %v2675
        %3188 = vst [vmem:[%s238 + $0xbd0] sm:$0xff] %v2676
        %3189 = vst [vmem:[%s238 + $0xbd8] sm:$0xff] %v2677
        %3190 = vst [vmem:[%s238 + $0xbe0] sm:$0xff] %v2678
        %3191 = vst [vmem:[%s238 + $0xbe8] sm:$0xff] %v2679
        %3192 = vst [vmem:[%s238 + $0xbf0] sm:$0xff] %v2680
        %3193 = vst [vmem:[%s238 + $0xbf8] sm:$0xff] %v2681
        %3194 = vst [vmem:[%s238 + $0xc00] sm:$0xff] %v2682
        %3195 = vst [vmem:[%s238 + $0xc08] sm:$0xff] %v2683
        %3196 = vst [vmem:[%s238 + $0xc10] sm:$0xff] %v2684
        %3197 = vst [vmem:[%s238 + $0xc18] sm:$0xff] %v2685
        %3198 = vst [vmem:[%s238 + $0xc20] sm:$0xff] %v2686
        %3199 = vst [vmem:[%s238 + $0xc28] sm:$0xff] %v2687
        %3200 = vst [vmem:[%s238 + $0xc30] sm:$0xff] %v2688
        %3201 = vst [vmem:[%s238 + $0xc38] sm:$0xff] %v2689
        %3202 = vst [vmem:[%s238 + $0xc40] sm:$0xff] %v2690
        %3203 = vst [vmem:[%s238 + $0xc48] sm:$0xff] %v2691
        %3204 = vst [vmem:[%s238 + $0xc50] sm:$0xff] %v2692
        %3205 = vst [vmem:[%s238 + $0xc58] sm:$0xff] %v2693
        %3206 = vst [vmem:[%s238 + $0xc60] sm:$0xff] %v2694
        %3207 = vst [vmem:[%s238 + $0xc68] sm:$0xff] %v2695
        %3208 = vst [vmem:[%s238 + $0xc70] sm:$0xff] %v2696
        %3209 = vst [vmem:[%s238 + $0xc78] sm:$0xff] %v2697
        %3210 = vst [vmem:[%s238 + $0xc80] sm:$0xff] %v2698
        %3211 = vst [vmem:[%s238 + $0xc88] sm:$0xff] %v2699
        %3212 = vst [vmem:[%s238 + $0xc90] sm:$0xff] %v2700
        %3213 = vst [vmem:[%s238 + $0xc98] sm:$0xff] %v2701
        %3214 = vst [vmem:[%s238 + $0xca0] sm:$0xff] %v2702
        %3215 = vst [vmem:[%s238 + $0xca8] sm:$0xff] %v2703
        %3216 = vst [vmem:[%s238 + $0xcb0] sm:$0xff] %v2704
        %3217 = vst [vmem:[%s238 + $0xcb8] sm:$0xff] %v2705
        %3218 = vst [vmem:[%s238 + $0xcc0] sm:$0xff] %v2706
        %3219 = vst [vmem:[%s238 + $0xcc8] sm:$0xff] %v2707
        %3220 = vst [vmem:[%s238 + $0xcd0] sm:$0xff] %v2708
        %3221 = vst [vmem:[%s238 + $0xcd8] sm:$0xff] %v2709
        %3222 = vst [vmem:[%s238 + $0xce0] sm:$0xff] %v2710
        %3223 = vst [vmem:[%s238 + $0xce8] sm:$0xff] %v2711
        %3224 = vst [vmem:[%s238 + $0xcf0] sm:$0xff] %v2712
        %3225 = vst [vmem:[%s238 + $0xcf8] sm:$0xff] %v2713
        %3226 = vst [vmem:[%s238 + $0xd00] sm:$0xff] %v2714
        %3227 = vst [vmem:[%s238 + $0xd08] sm:$0xff] %v2715
        %3228 = vst [vmem:[%s238 + $0xd10] sm:$0xff] %v2716
        %3229 = vst [vmem:[%s238 + $0xd18] sm:$0xff] %v2717
        %3230 = vst [vmem:[%s238 + $0xd20] sm:$0xff] %v2718
        %3231 = vst [vmem:[%s238 + $0xd28] sm:$0xff] %v2719
        %3232 = vst [vmem:[%s238 + $0xd30] sm:$0xff] %v2720
        %3233 = vst [vmem:[%s238 + $0xd38] sm:$0xff] %v2721
        %3234 = vst [vmem:[%s238 + $0xd40] sm:$0xff] %v2722
        %3235 = vst [vmem:[%s238 + $0xd48] sm:$0xff] %v2723
        %3236 = vst [vmem:[%s238 + $0xd50] sm:$0xff] %v2724
        %3237 = vst [vmem:[%s238 + $0xd58] sm:$0xff] %v2725
        %3238 = vst [vmem:[%s238 + $0xd60] sm:$0xff] %v2726
        %3239 = vst [vmem:[%s238 + $0xd68] sm:$0xff] %v2727
        %3240 = vst [vmem:[%s238 + $0xd70] sm:$0xff] %v2728
        %3241 = vst [vmem:[%s238 + $0xd78] sm:$0xff] %v2729
        %3242 = vst [vmem:[%s238 + $0xd80] sm:$0xff] %v2730
        %3243 = vst [vmem:[%s238 + $0xd88] sm:$0xff] %v2731
        %3244 = vst [vmem:[%s238 + $0xd90] sm:$0xff] %v2732
        %3245 = vst [vmem:[%s238 + $0xd98] sm:$0xff] %v2733
        %3246 = vst [vmem:[%s238 + $0xda0] sm:$0xff] %v2734
        %3247 = vst [vmem:[%s238 + $0xda8] sm:$0xff] %v2735
        %3248 = vst [vmem:[%s238 + $0xdb0] sm:$0xff] %v2736
        %3249 = vst [vmem:[%s238 + $0xdb8] sm:$0xff] %v2737
        %3250 = vst [vmem:[%s238 + $0xdc0] sm:$0xff] %v2738
        %3251 = vst [vmem:[%s238 + $0xdc8] sm:$0xff] %v2739
        %3252 = vst [vmem:[%s238 + $0xdd0] sm:$0xff] %v2740
        %3253 = vst [vmem:[%s238 + $0xdd8] sm:$0xff] %v2741
        %3254 = vst [vmem:[%s238 + $0xde0] sm:$0xff] %v2742
        %3255 = vst [vmem:[%s238 + $0xde8] sm:$0xff] %v2743
        %3256 = vst [vmem:[%s238 + $0xdf0] sm:$0xff] %v2744
        %3257 = vst [vmem:[%s238 + $0xdf8] sm:$0xff] %v2745
        %3258 = vst [vmem:[%s238 + $0xe00] sm:$0xff] %v2746
        %3259 = vst [vmem:[%s238 + $0xe08] sm:$0xff] %v2747
        %3260 = vst [vmem:[%s238 + $0xe10] sm:$0xff] %v2748
        %3261 = vst [vmem:[%s238 + $0xe18] sm:$0xff] %v2749
        %3262 = vst [vmem:[%s238 + $0xe20] sm:$0xff] %v2750
        %3263 = vst [vmem:[%s238 + $0xe28] sm:$0xff] %v2751
        %3264 = vst [vmem:[%s238 + $0xe30] sm:$0xff] %v2752
        %3265 = vst [vmem:[%s238 + $0xe38] sm:$0xff] %v2753
        %3266 = vst [vmem:[%s238 + $0xe40] sm:$0xff] %v2754
        %3267 = vst [vmem:[%s238 + $0xe48] sm:$0xff] %v2755
        %3268 = vst [vmem:[%s238 + $0xe50] sm:$0xff] %v2756
        %3269 = vst [vmem:[%s238 + $0xe58] sm:$0xff] %v2757
        %3270 = vst [vmem:[%s238 + $0xe60] sm:$0xff] %v2758
        %3271 = vst [vmem:[%s238 + $0xe68] sm:$0xff] %v2759
        %3272 = vst [vmem:[%s238 + $0xe70] sm:$0xff] %v2760
        %3273 = vst [vmem:[%s238 + $0xe78] sm:$0xff] %v2761
        %3274 = vst [vmem:[%s238 + $0xe80] sm:$0xff] %v2762
        %3275 = vst [vmem:[%s238 + $0xe88] sm:$0xff] %v2763
        %3276 = vst [vmem:[%s238 + $0xe90] sm:$0xff] %v2764
        %3277 = vst [vmem:[%s238 + $0xe98] sm:$0xff] %v2765
        %3278 = vst [vmem:[%s238 + $0xea0] sm:$0xff] %v2766
        %3279 = vst [vmem:[%s238 + $0xea8] sm:$0xff] %v2767
        %3280 = vst [vmem:[%s238 + $0xeb0] sm:$0xff] %v2768
        %3281 = vst [vmem:[%s238 + $0xeb8] sm:$0xff] %v2769
        %3282 = vst [vmem:[%s238 + $0xec0] sm:$0xff] %v2770
        %3283 = vst [vmem:[%s238 + $0xec8] sm:$0xff] %v2771
        %3284 = vst [vmem:[%s238 + $0xed0] sm:$0xff] %v2772
        %3285 = vst [vmem:[%s238 + $0xed8] sm:$0xff] %v2773
        %3286 = vst [vmem:[%s238 + $0xee0] sm:$0xff] %v2774
        %3287 = vst [vmem:[%s238 + $0xee8] sm:$0xff] %v2775
        %3288 = vst [vmem:[%s238 + $0xef0] sm:$0xff] %v2776
        %3289 = vst [vmem:[%s238 + $0xef8] sm:$0xff] %v2777
        %3290 = vst [vmem:[%s238 + $0xf00] sm:$0xff] %v2778
        %3291 = vst [vmem:[%s238 + $0xf08] sm:$0xff] %v2779
        %3292 = vst [vmem:[%s238 + $0xf10] sm:$0xff] %v2780
        %3293 = vst [vmem:[%s238 + $0xf18] sm:$0xff] %v2781
        %3294 = vst [vmem:[%s238 + $0xf20] sm:$0xff] %v2782
        %3295 = vst [vmem:[%s238 + $0xf28] sm:$0xff] %v2783
        %3296 = vst [vmem:[%s238 + $0xf30] sm:$0xff] %v2784
        %3297 = vst [vmem:[%s238 + $0xf38] sm:$0xff] %v2785
        %3298 = vst [vmem:[%s238 + $0xf40] sm:$0xff] %v2786
        %3299 = vst [vmem:[%s238 + $0xf48] sm:$0xff] %v2787
        %3300 = vst [vmem:[%s238 + $0xf50] sm:$0xff] %v2788
        %3301 = vst [vmem:[%s238 + $0xf58] sm:$0xff] %v2789
        %3302 = vst [vmem:[%s238 + $0xf60] sm:$0xff] %v2790
        %3303 = vst [vmem:[%s238 + $0xf68] sm:$0xff] %v2791
        %3304 = vst [vmem:[%s238 + $0xf70] sm:$0xff] %v2792
        %3305 = vst [vmem:[%s238 + $0xf78] sm:$0xff] %v2793
        %3306 = vst [vmem:[%s238 + $0xf80] sm:$0xff] %v2794
        %3307 = vst [vmem:[%s238 + $0xf88] sm:$0xff] %v2795
        %3308 = vst [vmem:[%s238 + $0xf90] sm:$0xff] %v2796
        %3309 = vst [vmem:[%s238 + $0xf98] sm:$0xff] %v2797
        %3310 = vst [vmem:[%s238 + $0xfa0] sm:$0xff] %v2798
        %3311 = vst [vmem:[%s238 + $0xfa8] sm:$0xff] %v2799
        %3312 = vst [vmem:[%s238 + $0xfb0] sm:$0xff] %v2800
        %3313 = vst [vmem:[%s238 + $0xfb8] sm:$0xff] %v2801
        %3314 = vst [vmem:[%s238 + $0xfc0] sm:$0xff] %v2802
        %3315 = vst [vmem:[%s238 + $0xfc8] sm:$0xff] %v2803
        %3316 = vst [vmem:[%s238 + $0xfd0] sm:$0xff] %v2804
        %3317 = vst [vmem:[%s238 + $0xfd8] sm:$0xff] %v2805
        %3318 = vst [vmem:[%s238 + $0xfe0] sm:$0xff] %v2806
        %3319 = vst [vmem:[%s238 + $0xfe8] sm:$0xff] %v2807
        %3320 = vst [vmem:[%s238 + $0xff0] sm:$0xff] %v2808
        %3321 = vst [vmem:[%s238 + $0xff8] sm:$0xff] %v2809
        %v3322 = vld [vmem:[%s212] sm:$0xff]
        %v3323 = vld [vmem:[%s212 + $0x8] sm:$0xff]
        %v3324 = vld [vmem:[%s212 + $0x10] sm:$0xff]
        %v3325 = vld [vmem:[%s212 + $0x18] sm:$0xff]
        %v3326 = vld [vmem:[%s212 + $0x20] sm:$0xff]
        %v3327 = vld [vmem:[%s212 + $0x28] sm:$0xff]
        %v3328 = vld [vmem:[%s212 + $0x30] sm:$0xff]
        %v3329 = vld [vmem:[%s212 + $0x38] sm:$0xff]
        %v3330 = vld [vmem:[%s212 + $0x40] sm:$0xff]
        %v3331 = vld [vmem:[%s212 + $0x48] sm:$0xff]
        %v3332 = vld [vmem:[%s212 + $0x50] sm:$0xff]
        %v3333 = vld [vmem:[%s212 + $0x58] sm:$0xff]
        %v3334 = vld [vmem:[%s212 + $0x60] sm:$0xff]
        %v3335 = vld [vmem:[%s212 + $0x68] sm:$0xff]
        %v3336 = vld [vmem:[%s212 + $0x70] sm:$0xff]
        %v3337 = vld [vmem:[%s212 + $0x78] sm:$0xff]
        %v3338 = vld [vmem:[%s212 + $0x80] sm:$0xff]
        %v3339 = vld [vmem:[%s212 + $0x88] sm:$0xff]
        %v3340 = vld [vmem:[%s212 + $0x90] sm:$0xff]
        %v3341 = vld [vmem:[%s212 + $0x98] sm:$0xff]
        %v3342 = vld [vmem:[%s212 + $0xa0] sm:$0xff]
        %v3343 = vld [vmem:[%s212 + $0xa8] sm:$0xff]
        %v3344 = vld [vmem:[%s212 + $0xb0] sm:$0xff]
        %v3345 = vld [vmem:[%s212 + $0xb8] sm:$0xff]
        %v3346 = vld [vmem:[%s212 + $0xc0] sm:$0xff]
        %v3347 = vld [vmem:[%s212 + $0xc8] sm:$0xff]
        %v3348 = vld [vmem:[%s212 + $0xd0] sm:$0xff]
        %v3349 = vld [vmem:[%s212 + $0xd8] sm:$0xff]
        %v3350 = vld [vmem:[%s212 + $0xe0] sm:$0xff]
        %v3351 = vld [vmem:[%s212 + $0xe8] sm:$0xff]
        %v3352 = vld [vmem:[%s212 + $0xf0] sm:$0xff]
        %v3353 = vld [vmem:[%s212 + $0xf8] sm:$0xff]
        %v3354 = vld [vmem:[%s212 + $0x100] sm:$0xff]
        %v3355 = vld [vmem:[%s212 + $0x108] sm:$0xff]
        %v3356 = vld [vmem:[%s212 + $0x110] sm:$0xff]
        %v3357 = vld [vmem:[%s212 + $0x118] sm:$0xff]
        %v3358 = vld [vmem:[%s212 + $0x120] sm:$0xff]
        %v3359 = vld [vmem:[%s212 + $0x128] sm:$0xff]
        %v3360 = vld [vmem:[%s212 + $0x130] sm:$0xff]
        %v3361 = vld [vmem:[%s212 + $0x138] sm:$0xff]
        %v3362 = vld [vmem:[%s212 + $0x140] sm:$0xff]
        %v3363 = vld [vmem:[%s212 + $0x148] sm:$0xff]
        %v3364 = vld [vmem:[%s212 + $0x150] sm:$0xff]
        %v3365 = vld [vmem:[%s212 + $0x158] sm:$0xff]
        %v3366 = vld [vmem:[%s212 + $0x160] sm:$0xff]
        %v3367 = vld [vmem:[%s212 + $0x168] sm:$0xff]
        %v3368 = vld [vmem:[%s212 + $0x170] sm:$0xff]
        %v3369 = vld [vmem:[%s212 + $0x178] sm:$0xff]
        %v3370 = vld [vmem:[%s212 + $0x180] sm:$0xff]
        %v3371 = vld [vmem:[%s212 + $0x188] sm:$0xff]
        %v3372 = vld [vmem:[%s212 + $0x190] sm:$0xff]
        %v3373 = vld [vmem:[%s212 + $0x198] sm:$0xff]
        %v3374 = vld [vmem:[%s212 + $0x1a0] sm:$0xff]
        %v3375 = vld [vmem:[%s212 + $0x1a8] sm:$0xff]
        %v3376 = vld [vmem:[%s212 + $0x1b0] sm:$0xff]
        %v3377 = vld [vmem:[%s212 + $0x1b8] sm:$0xff]
        %v3378 = vld [vmem:[%s212 + $0x1c0] sm:$0xff]
        %v3379 = vld [vmem:[%s212 + $0x1c8] sm:$0xff]
        %v3380 = vld [vmem:[%s212 + $0x1d0] sm:$0xff]
        %v3381 = vld [vmem:[%s212 + $0x1d8] sm:$0xff]
        %v3382 = vld [vmem:[%s212 + $0x1e0] sm:$0xff]
        %v3383 = vld [vmem:[%s212 + $0x1e8] sm:$0xff]
        %v3384 = vld [vmem:[%s212 + $0x1f0] sm:$0xff]
        %v3385 = vld [vmem:[%s212 + $0x1f8] sm:$0xff]
        %v3386 = vld [vmem:[%s212 + $0x200] sm:$0xff]
        %v3387 = vld [vmem:[%s212 + $0x208] sm:$0xff]
        %v3388 = vld [vmem:[%s212 + $0x210] sm:$0xff]
        %v3389 = vld [vmem:[%s212 + $0x218] sm:$0xff]
        %v3390 = vld [vmem:[%s212 + $0x220] sm:$0xff]
        %v3391 = vld [vmem:[%s212 + $0x228] sm:$0xff]
        %v3392 = vld [vmem:[%s212 + $0x230] sm:$0xff]
        %v3393 = vld [vmem:[%s212 + $0x238] sm:$0xff]
        %v3394 = vld [vmem:[%s212 + $0x240] sm:$0xff]
        %v3395 = vld [vmem:[%s212 + $0x248] sm:$0xff]
        %v3396 = vld [vmem:[%s212 + $0x250] sm:$0xff]
        %v3397 = vld [vmem:[%s212 + $0x258] sm:$0xff]
        %v3398 = vld [vmem:[%s212 + $0x260] sm:$0xff]
        %v3399 = vld [vmem:[%s212 + $0x268] sm:$0xff]
        %v3400 = vld [vmem:[%s212 + $0x270] sm:$0xff]
        %v3401 = vld [vmem:[%s212 + $0x278] sm:$0xff]
        %v3402 = vld [vmem:[%s212 + $0x280] sm:$0xff]
        %v3403 = vld [vmem:[%s212 + $0x288] sm:$0xff]
        %v3404 = vld [vmem:[%s212 + $0x290] sm:$0xff]
        %v3405 = vld [vmem:[%s212 + $0x298] sm:$0xff]
        %v3406 = vld [vmem:[%s212 + $0x2a0] sm:$0xff]
        %v3407 = vld [vmem:[%s212 + $0x2a8] sm:$0xff]
        %v3408 = vld [vmem:[%s212 + $0x2b0] sm:$0xff]
        %v3409 = vld [vmem:[%s212 + $0x2b8] sm:$0xff]
        %v3410 = vld [vmem:[%s212 + $0x2c0] sm:$0xff]
        %v3411 = vld [vmem:[%s212 + $0x2c8] sm:$0xff]
        %v3412 = vld [vmem:[%s212 + $0x2d0] sm:$0xff]
        %v3413 = vld [vmem:[%s212 + $0x2d8] sm:$0xff]
        %v3414 = vld [vmem:[%s212 + $0x2e0] sm:$0xff]
        %v3415 = vld [vmem:[%s212 + $0x2e8] sm:$0xff]
        %v3416 = vld [vmem:[%s212 + $0x2f0] sm:$0xff]
        %v3417 = vld [vmem:[%s212 + $0x2f8] sm:$0xff]
        %v3418 = vld [vmem:[%s212 + $0x300] sm:$0xff]
        %v3419 = vld [vmem:[%s212 + $0x308] sm:$0xff]
        %v3420 = vld [vmem:[%s212 + $0x310] sm:$0xff]
        %v3421 = vld [vmem:[%s212 + $0x318] sm:$0xff]
        %v3422 = vld [vmem:[%s212 + $0x320] sm:$0xff]
        %v3423 = vld [vmem:[%s212 + $0x328] sm:$0xff]
        %v3424 = vld [vmem:[%s212 + $0x330] sm:$0xff]
        %v3425 = vld [vmem:[%s212 + $0x338] sm:$0xff]
        %v3426 = vld [vmem:[%s212 + $0x340] sm:$0xff]
        %v3427 = vld [vmem:[%s212 + $0x348] sm:$0xff]
        %v3428 = vld [vmem:[%s212 + $0x350] sm:$0xff]
        %v3429 = vld [vmem:[%s212 + $0x358] sm:$0xff]
        %v3430 = vld [vmem:[%s212 + $0x360] sm:$0xff]
        %v3431 = vld [vmem:[%s212 + $0x368] sm:$0xff]
        %v3432 = vld [vmem:[%s212 + $0x370] sm:$0xff]
        %v3433 = vld [vmem:[%s212 + $0x378] sm:$0xff]
        %v3434 = vld [vmem:[%s212 + $0x380] sm:$0xff]
        %v3435 = vld [vmem:[%s212 + $0x388] sm:$0xff]
        %v3436 = vld [vmem:[%s212 + $0x390] sm:$0xff]
        %v3437 = vld [vmem:[%s212 + $0x398] sm:$0xff]
        %v3438 = vld [vmem:[%s212 + $0x3a0] sm:$0xff]
        %v3439 = vld [vmem:[%s212 + $0x3a8] sm:$0xff]
        %v3440 = vld [vmem:[%s212 + $0x3b0] sm:$0xff]
        %v3441 = vld [vmem:[%s212 + $0x3b8] sm:$0xff]
        %v3442 = vld [vmem:[%s212 + $0x3c0] sm:$0xff]
        %v3443 = vld [vmem:[%s212 + $0x3c8] sm:$0xff]
        %v3444 = vld [vmem:[%s212 + $0x3d0] sm:$0xff]
        %v3445 = vld [vmem:[%s212 + $0x3d8] sm:$0xff]
        %v3446 = vld [vmem:[%s212 + $0x3e0] sm:$0xff]
        %v3447 = vld [vmem:[%s212 + $0x3e8] sm:$0xff]
        %v3448 = vld [vmem:[%s212 + $0x3f0] sm:$0xff]
        %v3449 = vld [vmem:[%s212 + $0x3f8] sm:$0xff]
        %v3450 = vld [vmem:[%s212 + $0x400] sm:$0xff]
        %v3451 = vld [vmem:[%s212 + $0x408] sm:$0xff]
        %v3452 = vld [vmem:[%s212 + $0x410] sm:$0xff]
        %v3453 = vld [vmem:[%s212 + $0x418] sm:$0xff]
        %v3454 = vld [vmem:[%s212 + $0x420] sm:$0xff]
        %v3455 = vld [vmem:[%s212 + $0x428] sm:$0xff]
        %v3456 = vld [vmem:[%s212 + $0x430] sm:$0xff]
        %v3457 = vld [vmem:[%s212 + $0x438] sm:$0xff]
        %v3458 = vld [vmem:[%s212 + $0x440] sm:$0xff]
        %v3459 = vld [vmem:[%s212 + $0x448] sm:$0xff]
        %v3460 = vld [vmem:[%s212 + $0x450] sm:$0xff]
        %v3461 = vld [vmem:[%s212 + $0x458] sm:$0xff]
        %v3462 = vld [vmem:[%s212 + $0x460] sm:$0xff]
        %v3463 = vld [vmem:[%s212 + $0x468] sm:$0xff]
        %v3464 = vld [vmem:[%s212 + $0x470] sm:$0xff]
        %v3465 = vld [vmem:[%s212 + $0x478] sm:$0xff]
        %v3466 = vld [vmem:[%s212 + $0x480] sm:$0xff]
        %v3467 = vld [vmem:[%s212 + $0x488] sm:$0xff]
        %v3468 = vld [vmem:[%s212 + $0x490] sm:$0xff]
        %v3469 = vld [vmem:[%s212 + $0x498] sm:$0xff]
        %v3470 = vld [vmem:[%s212 + $0x4a0] sm:$0xff]
        %v3471 = vld [vmem:[%s212 + $0x4a8] sm:$0xff]
        %v3472 = vld [vmem:[%s212 + $0x4b0] sm:$0xff]
        %v3473 = vld [vmem:[%s212 + $0x4b8] sm:$0xff]
        %v3474 = vld [vmem:[%s212 + $0x4c0] sm:$0xff]
        %v3475 = vld [vmem:[%s212 + $0x4c8] sm:$0xff]
        %v3476 = vld [vmem:[%s212 + $0x4d0] sm:$0xff]
        %v3477 = vld [vmem:[%s212 + $0x4d8] sm:$0xff]
        %v3478 = vld [vmem:[%s212 + $0x4e0] sm:$0xff]
        %v3479 = vld [vmem:[%s212 + $0x4e8] sm:$0xff]
        %v3480 = vld [vmem:[%s212 + $0x4f0] sm:$0xff]
        %v3481 = vld [vmem:[%s212 + $0x4f8] sm:$0xff]
        %v3482 = vld [vmem:[%s212 + $0x500] sm:$0xff]
        %v3483 = vld [vmem:[%s212 + $0x508] sm:$0xff]
        %v3484 = vld [vmem:[%s212 + $0x510] sm:$0xff]
        %v3485 = vld [vmem:[%s212 + $0x518] sm:$0xff]
        %v3486 = vld [vmem:[%s212 + $0x520] sm:$0xff]
        %v3487 = vld [vmem:[%s212 + $0x528] sm:$0xff]
        %v3488 = vld [vmem:[%s212 + $0x530] sm:$0xff]
        %v3489 = vld [vmem:[%s212 + $0x538] sm:$0xff]
        %v3490 = vld [vmem:[%s212 + $0x540] sm:$0xff]
        %v3491 = vld [vmem:[%s212 + $0x548] sm:$0xff]
        %v3492 = vld [vmem:[%s212 + $0x550] sm:$0xff]
        %v3493 = vld [vmem:[%s212 + $0x558] sm:$0xff]
        %v3494 = vld [vmem:[%s212 + $0x560] sm:$0xff]
        %v3495 = vld [vmem:[%s212 + $0x568] sm:$0xff]
        %v3496 = vld [vmem:[%s212 + $0x570] sm:$0xff]
        %v3497 = vld [vmem:[%s212 + $0x578] sm:$0xff]
        %v3498 = vld [vmem:[%s212 + $0x580] sm:$0xff]
        %v3499 = vld [vmem:[%s212 + $0x588] sm:$0xff]
        %v3500 = vld [vmem:[%s212 + $0x590] sm:$0xff]
        %v3501 = vld [vmem:[%s212 + $0x598] sm:$0xff]
        %v3502 = vld [vmem:[%s212 + $0x5a0] sm:$0xff]
        %v3503 = vld [vmem:[%s212 + $0x5a8] sm:$0xff]
        %v3504 = vld [vmem:[%s212 + $0x5b0] sm:$0xff]
        %v3505 = vld [vmem:[%s212 + $0x5b8] sm:$0xff]
        %v3506 = vld [vmem:[%s212 + $0x5c0] sm:$0xff]
        %v3507 = vld [vmem:[%s212 + $0x5c8] sm:$0xff]
        %v3508 = vld [vmem:[%s212 + $0x5d0] sm:$0xff]
        %v3509 = vld [vmem:[%s212 + $0x5d8] sm:$0xff]
        %v3510 = vld [vmem:[%s212 + $0x5e0] sm:$0xff]
        %v3511 = vld [vmem:[%s212 + $0x5e8] sm:$0xff]
        %v3512 = vld [vmem:[%s212 + $0x5f0] sm:$0xff]
        %v3513 = vld [vmem:[%s212 + $0x5f8] sm:$0xff]
        %v3514 = vld [vmem:[%s212 + $0x600] sm:$0xff]
        %v3515 = vld [vmem:[%s212 + $0x608] sm:$0xff]
        %v3516 = vld [vmem:[%s212 + $0x610] sm:$0xff]
        %v3517 = vld [vmem:[%s212 + $0x618] sm:$0xff]
        %v3518 = vld [vmem:[%s212 + $0x620] sm:$0xff]
        %v3519 = vld [vmem:[%s212 + $0x628] sm:$0xff]
        %v3520 = vld [vmem:[%s212 + $0x630] sm:$0xff]
        %v3521 = vld [vmem:[%s212 + $0x638] sm:$0xff]
        %v3522 = vld [vmem:[%s212 + $0x640] sm:$0xff]
        %v3523 = vld [vmem:[%s212 + $0x648] sm:$0xff]
        %v3524 = vld [vmem:[%s212 + $0x650] sm:$0xff]
        %v3525 = vld [vmem:[%s212 + $0x658] sm:$0xff]
        %v3526 = vld [vmem:[%s212 + $0x660] sm:$0xff]
        %v3527 = vld [vmem:[%s212 + $0x668] sm:$0xff]
        %v3528 = vld [vmem:[%s212 + $0x670] sm:$0xff]
        %v3529 = vld [vmem:[%s212 + $0x678] sm:$0xff]
        %v3530 = vld [vmem:[%s212 + $0x680] sm:$0xff]
        %v3531 = vld [vmem:[%s212 + $0x688] sm:$0xff]
        %v3532 = vld [vmem:[%s212 + $0x690] sm:$0xff]
        %v3533 = vld [vmem:[%s212 + $0x698] sm:$0xff]
        %v3534 = vld [vmem:[%s212 + $0x6a0] sm:$0xff]
        %v3535 = vld [vmem:[%s212 + $0x6a8] sm:$0xff]
        %v3536 = vld [vmem:[%s212 + $0x6b0] sm:$0xff]
        %v3537 = vld [vmem:[%s212 + $0x6b8] sm:$0xff]
        %v3538 = vld [vmem:[%s212 + $0x6c0] sm:$0xff]
        %v3539 = vld [vmem:[%s212 + $0x6c8] sm:$0xff]
        %v3540 = vld [vmem:[%s212 + $0x6d0] sm:$0xff]
        %v3541 = vld [vmem:[%s212 + $0x6d8] sm:$0xff]
        %v3542 = vld [vmem:[%s212 + $0x6e0] sm:$0xff]
        %v3543 = vld [vmem:[%s212 + $0x6e8] sm:$0xff]
        %v3544 = vld [vmem:[%s212 + $0x6f0] sm:$0xff]
        %v3545 = vld [vmem:[%s212 + $0x6f8] sm:$0xff]
        %v3546 = vld [vmem:[%s212 + $0x700] sm:$0xff]
        %v3547 = vld [vmem:[%s212 + $0x708] sm:$0xff]
        %v3548 = vld [vmem:[%s212 + $0x710] sm:$0xff]
        %v3549 = vld [vmem:[%s212 + $0x718] sm:$0xff]
        %v3550 = vld [vmem:[%s212 + $0x720] sm:$0xff]
        %v3551 = vld [vmem:[%s212 + $0x728] sm:$0xff]
        %v3552 = vld [vmem:[%s212 + $0x730] sm:$0xff]
        %v3553 = vld [vmem:[%s212 + $0x738] sm:$0xff]
        %v3554 = vld [vmem:[%s212 + $0x740] sm:$0xff]
        %v3555 = vld [vmem:[%s212 + $0x748] sm:$0xff]
        %v3556 = vld [vmem:[%s212 + $0x750] sm:$0xff]
        %v3557 = vld [vmem:[%s212 + $0x758] sm:$0xff]
        %v3558 = vld [vmem:[%s212 + $0x760] sm:$0xff]
        %v3559 = vld [vmem:[%s212 + $0x768] sm:$0xff]
        %v3560 = vld [vmem:[%s212 + $0x770] sm:$0xff]
        %v3561 = vld [vmem:[%s212 + $0x778] sm:$0xff]
        %v3562 = vld [vmem:[%s212 + $0x780] sm:$0xff]
        %v3563 = vld [vmem:[%s212 + $0x788] sm:$0xff]
        %v3564 = vld [vmem:[%s212 + $0x790] sm:$0xff]
        %v3565 = vld [vmem:[%s212 + $0x798] sm:$0xff]
        %v3566 = vld [vmem:[%s212 + $0x7a0] sm:$0xff]
        %v3567 = vld [vmem:[%s212 + $0x7a8] sm:$0xff]
        %v3568 = vld [vmem:[%s212 + $0x7b0] sm:$0xff]
        %v3569 = vld [vmem:[%s212 + $0x7b8] sm:$0xff]
        %v3570 = vld [vmem:[%s212 + $0x7c0] sm:$0xff]
        %v3571 = vld [vmem:[%s212 + $0x7c8] sm:$0xff]
        %v3572 = vld [vmem:[%s212 + $0x7d0] sm:$0xff]
        %v3573 = vld [vmem:[%s212 + $0x7d8] sm:$0xff]
        %v3574 = vld [vmem:[%s212 + $0x7e0] sm:$0xff]
        %v3575 = vld [vmem:[%s212 + $0x7e8] sm:$0xff]
        %v3576 = vld [vmem:[%s212 + $0x7f0] sm:$0xff]
        %v3577 = vld [vmem:[%s212 + $0x7f8] sm:$0xff]
        %v3578 = vld [vmem:[%s212 + $0x800] sm:$0xff]
        %v3579 = vld [vmem:[%s212 + $0x808] sm:$0xff]
        %v3580 = vld [vmem:[%s212 + $0x810] sm:$0xff]
        %v3581 = vld [vmem:[%s212 + $0x818] sm:$0xff]
        %v3582 = vld [vmem:[%s212 + $0x820] sm:$0xff]
        %v3583 = vld [vmem:[%s212 + $0x828] sm:$0xff]
        %v3584 = vld [vmem:[%s212 + $0x830] sm:$0xff]
        %v3585 = vld [vmem:[%s212 + $0x838] sm:$0xff]
        %v3586 = vld [vmem:[%s212 + $0x840] sm:$0xff]
        %v3587 = vld [vmem:[%s212 + $0x848] sm:$0xff]
        %v3588 = vld [vmem:[%s212 + $0x850] sm:$0xff]
        %v3589 = vld [vmem:[%s212 + $0x858] sm:$0xff]
        %v3590 = vld [vmem:[%s212 + $0x860] sm:$0xff]
        %v3591 = vld [vmem:[%s212 + $0x868] sm:$0xff]
        %v3592 = vld [vmem:[%s212 + $0x870] sm:$0xff]
        %v3593 = vld [vmem:[%s212 + $0x878] sm:$0xff]
        %v3594 = vld [vmem:[%s212 + $0x880] sm:$0xff]
        %v3595 = vld [vmem:[%s212 + $0x888] sm:$0xff]
        %v3596 = vld [vmem:[%s212 + $0x890] sm:$0xff]
        %v3597 = vld [vmem:[%s212 + $0x898] sm:$0xff]
        %v3598 = vld [vmem:[%s212 + $0x8a0] sm:$0xff]
        %v3599 = vld [vmem:[%s212 + $0x8a8] sm:$0xff]
        %v3600 = vld [vmem:[%s212 + $0x8b0] sm:$0xff]
        %v3601 = vld [vmem:[%s212 + $0x8b8] sm:$0xff]
        %v3602 = vld [vmem:[%s212 + $0x8c0] sm:$0xff]
        %v3603 = vld [vmem:[%s212 + $0x8c8] sm:$0xff]
        %v3604 = vld [vmem:[%s212 + $0x8d0] sm:$0xff]
        %v3605 = vld [vmem:[%s212 + $0x8d8] sm:$0xff]
        %v3606 = vld [vmem:[%s212 + $0x8e0] sm:$0xff]
        %v3607 = vld [vmem:[%s212 + $0x8e8] sm:$0xff]
        %v3608 = vld [vmem:[%s212 + $0x8f0] sm:$0xff]
        %v3609 = vld [vmem:[%s212 + $0x8f8] sm:$0xff]
        %v3610 = vld [vmem:[%s212 + $0x900] sm:$0xff]
        %v3611 = vld [vmem:[%s212 + $0x908] sm:$0xff]
        %v3612 = vld [vmem:[%s212 + $0x910] sm:$0xff]
        %v3613 = vld [vmem:[%s212 + $0x918] sm:$0xff]
        %v3614 = vld [vmem:[%s212 + $0x920] sm:$0xff]
        %v3615 = vld [vmem:[%s212 + $0x928] sm:$0xff]
        %v3616 = vld [vmem:[%s212 + $0x930] sm:$0xff]
        %v3617 = vld [vmem:[%s212 + $0x938] sm:$0xff]
        %v3618 = vld [vmem:[%s212 + $0x940] sm:$0xff]
        %v3619 = vld [vmem:[%s212 + $0x948] sm:$0xff]
        %v3620 = vld [vmem:[%s212 + $0x950] sm:$0xff]
        %v3621 = vld [vmem:[%s212 + $0x958] sm:$0xff]
        %v3622 = vld [vmem:[%s212 + $0x960] sm:$0xff]
        %v3623 = vld [vmem:[%s212 + $0x968] sm:$0xff]
        %v3624 = vld [vmem:[%s212 + $0x970] sm:$0xff]
        %v3625 = vld [vmem:[%s212 + $0x978] sm:$0xff]
        %v3626 = vld [vmem:[%s212 + $0x980] sm:$0xff]
        %v3627 = vld [vmem:[%s212 + $0x988] sm:$0xff]
        %v3628 = vld [vmem:[%s212 + $0x990] sm:$0xff]
        %v3629 = vld [vmem:[%s212 + $0x998] sm:$0xff]
        %v3630 = vld [vmem:[%s212 + $0x9a0] sm:$0xff]
        %v3631 = vld [vmem:[%s212 + $0x9a8] sm:$0xff]
        %v3632 = vld [vmem:[%s212 + $0x9b0] sm:$0xff]
        %v3633 = vld [vmem:[%s212 + $0x9b8] sm:$0xff]
        %v3634 = vld [vmem:[%s212 + $0x9c0] sm:$0xff]
        %v3635 = vld [vmem:[%s212 + $0x9c8] sm:$0xff]
        %v3636 = vld [vmem:[%s212 + $0x9d0] sm:$0xff]
        %v3637 = vld [vmem:[%s212 + $0x9d8] sm:$0xff]
        %v3638 = vld [vmem:[%s212 + $0x9e0] sm:$0xff]
        %v3639 = vld [vmem:[%s212 + $0x9e8] sm:$0xff]
        %v3640 = vld [vmem:[%s212 + $0x9f0] sm:$0xff]
        %v3641 = vld [vmem:[%s212 + $0x9f8] sm:$0xff]
        %v3642 = vld [vmem:[%s212 + $0xa00] sm:$0xff]
        %v3643 = vld [vmem:[%s212 + $0xa08] sm:$0xff]
        %v3644 = vld [vmem:[%s212 + $0xa10] sm:$0xff]
        %v3645 = vld [vmem:[%s212 + $0xa18] sm:$0xff]
        %v3646 = vld [vmem:[%s212 + $0xa20] sm:$0xff]
        %v3647 = vld [vmem:[%s212 + $0xa28] sm:$0xff]
        %v3648 = vld [vmem:[%s212 + $0xa30] sm:$0xff]
        %v3649 = vld [vmem:[%s212 + $0xa38] sm:$0xff]
        %v3650 = vld [vmem:[%s212 + $0xa40] sm:$0xff]
        %v3651 = vld [vmem:[%s212 + $0xa48] sm:$0xff]
        %v3652 = vld [vmem:[%s212 + $0xa50] sm:$0xff]
        %v3653 = vld [vmem:[%s212 + $0xa58] sm:$0xff]
        %v3654 = vld [vmem:[%s212 + $0xa60] sm:$0xff]
        %v3655 = vld [vmem:[%s212 + $0xa68] sm:$0xff]
        %v3656 = vld [vmem:[%s212 + $0xa70] sm:$0xff]
        %v3657 = vld [vmem:[%s212 + $0xa78] sm:$0xff]
        %v3658 = vld [vmem:[%s212 + $0xa80] sm:$0xff]
        %v3659 = vld [vmem:[%s212 + $0xa88] sm:$0xff]
        %v3660 = vld [vmem:[%s212 + $0xa90] sm:$0xff]
        %v3661 = vld [vmem:[%s212 + $0xa98] sm:$0xff]
        %v3662 = vld [vmem:[%s212 + $0xaa0] sm:$0xff]
        %v3663 = vld [vmem:[%s212 + $0xaa8] sm:$0xff]
        %v3664 = vld [vmem:[%s212 + $0xab0] sm:$0xff]
        %v3665 = vld [vmem:[%s212 + $0xab8] sm:$0xff]
        %v3666 = vld [vmem:[%s212 + $0xac0] sm:$0xff]
        %v3667 = vld [vmem:[%s212 + $0xac8] sm:$0xff]
        %v3668 = vld [vmem:[%s212 + $0xad0] sm:$0xff]
        %v3669 = vld [vmem:[%s212 + $0xad8] sm:$0xff]
        %v3670 = vld [vmem:[%s212 + $0xae0] sm:$0xff]
        %v3671 = vld [vmem:[%s212 + $0xae8] sm:$0xff]
        %v3672 = vld [vmem:[%s212 + $0xaf0] sm:$0xff]
        %v3673 = vld [vmem:[%s212 + $0xaf8] sm:$0xff]
        %v3674 = vld [vmem:[%s212 + $0xb00] sm:$0xff]
        %v3675 = vld [vmem:[%s212 + $0xb08] sm:$0xff]
        %v3676 = vld [vmem:[%s212 + $0xb10] sm:$0xff]
        %v3677 = vld [vmem:[%s212 + $0xb18] sm:$0xff]
        %v3678 = vld [vmem:[%s212 + $0xb20] sm:$0xff]
        %v3679 = vld [vmem:[%s212 + $0xb28] sm:$0xff]
        %v3680 = vld [vmem:[%s212 + $0xb30] sm:$0xff]
        %v3681 = vld [vmem:[%s212 + $0xb38] sm:$0xff]
        %v3682 = vld [vmem:[%s212 + $0xb40] sm:$0xff]
        %v3683 = vld [vmem:[%s212 + $0xb48] sm:$0xff]
        %v3684 = vld [vmem:[%s212 + $0xb50] sm:$0xff]
        %v3685 = vld [vmem:[%s212 + $0xb58] sm:$0xff]
        %v3686 = vld [vmem:[%s212 + $0xb60] sm:$0xff]
        %v3687 = vld [vmem:[%s212 + $0xb68] sm:$0xff]
        %v3688 = vld [vmem:[%s212 + $0xb70] sm:$0xff]
        %v3689 = vld [vmem:[%s212 + $0xb78] sm:$0xff]
        %v3690 = vld [vmem:[%s212 + $0xb80] sm:$0xff]
        %v3691 = vld [vmem:[%s212 + $0xb88] sm:$0xff]
        %v3692 = vld [vmem:[%s212 + $0xb90] sm:$0xff]
        %v3693 = vld [vmem:[%s212 + $0xb98] sm:$0xff]
        %v3694 = vld [vmem:[%s212 + $0xba0] sm:$0xff]
        %v3695 = vld [vmem:[%s212 + $0xba8] sm:$0xff]
        %v3696 = vld [vmem:[%s212 + $0xbb0] sm:$0xff]
        %v3697 = vld [vmem:[%s212 + $0xbb8] sm:$0xff]
        %v3698 = vld [vmem:[%s212 + $0xbc0] sm:$0xff]
        %v3699 = vld [vmem:[%s212 + $0xbc8] sm:$0xff]
        %v3700 = vld [vmem:[%s212 + $0xbd0] sm:$0xff]
        %v3701 = vld [vmem:[%s212 + $0xbd8] sm:$0xff]
        %v3702 = vld [vmem:[%s212 + $0xbe0] sm:$0xff]
        %v3703 = vld [vmem:[%s212 + $0xbe8] sm:$0xff]
        %v3704 = vld [vmem:[%s212 + $0xbf0] sm:$0xff]
        %v3705 = vld [vmem:[%s212 + $0xbf8] sm:$0xff]
        %v3706 = vld [vmem:[%s212 + $0xc00] sm:$0xff]
        %v3707 = vld [vmem:[%s212 + $0xc08] sm:$0xff]
        %v3708 = vld [vmem:[%s212 + $0xc10] sm:$0xff]
        %v3709 = vld [vmem:[%s212 + $0xc18] sm:$0xff]
        %v3710 = vld [vmem:[%s212 + $0xc20] sm:$0xff]
        %v3711 = vld [vmem:[%s212 + $0xc28] sm:$0xff]
        %v3712 = vld [vmem:[%s212 + $0xc30] sm:$0xff]
        %v3713 = vld [vmem:[%s212 + $0xc38] sm:$0xff]
        %v3714 = vld [vmem:[%s212 + $0xc40] sm:$0xff]
        %v3715 = vld [vmem:[%s212 + $0xc48] sm:$0xff]
        %v3716 = vld [vmem:[%s212 + $0xc50] sm:$0xff]
        %v3717 = vld [vmem:[%s212 + $0xc58] sm:$0xff]
        %v3718 = vld [vmem:[%s212 + $0xc60] sm:$0xff]
        %v3719 = vld [vmem:[%s212 + $0xc68] sm:$0xff]
        %v3720 = vld [vmem:[%s212 + $0xc70] sm:$0xff]
        %v3721 = vld [vmem:[%s212 + $0xc78] sm:$0xff]
        %v3722 = vld [vmem:[%s212 + $0xc80] sm:$0xff]
        %v3723 = vld [vmem:[%s212 + $0xc88] sm:$0xff]
        %v3724 = vld [vmem:[%s212 + $0xc90] sm:$0xff]
        %v3725 = vld [vmem:[%s212 + $0xc98] sm:$0xff]
        %v3726 = vld [vmem:[%s212 + $0xca0] sm:$0xff]
        %v3727 = vld [vmem:[%s212 + $0xca8] sm:$0xff]
        %v3728 = vld [vmem:[%s212 + $0xcb0] sm:$0xff]
        %v3729 = vld [vmem:[%s212 + $0xcb8] sm:$0xff]
        %v3730 = vld [vmem:[%s212 + $0xcc0] sm:$0xff]
        %v3731 = vld [vmem:[%s212 + $0xcc8] sm:$0xff]
        %v3732 = vld [vmem:[%s212 + $0xcd0] sm:$0xff]
        %v3733 = vld [vmem:[%s212 + $0xcd8] sm:$0xff]
        %v3734 = vld [vmem:[%s212 + $0xce0] sm:$0xff]
        %v3735 = vld [vmem:[%s212 + $0xce8] sm:$0xff]
        %v3736 = vld [vmem:[%s212 + $0xcf0] sm:$0xff]
        %v3737 = vld [vmem:[%s212 + $0xcf8] sm:$0xff]
        %v3738 = vld [vmem:[%s212 + $0xd00] sm:$0xff]
        %v3739 = vld [vmem:[%s212 + $0xd08] sm:$0xff]
        %v3740 = vld [vmem:[%s212 + $0xd10] sm:$0xff]
        %v3741 = vld [vmem:[%s212 + $0xd18] sm:$0xff]
        %v3742 = vld [vmem:[%s212 + $0xd20] sm:$0xff]
        %v3743 = vld [vmem:[%s212 + $0xd28] sm:$0xff]
        %v3744 = vld [vmem:[%s212 + $0xd30] sm:$0xff]
        %v3745 = vld [vmem:[%s212 + $0xd38] sm:$0xff]
        %v3746 = vld [vmem:[%s212 + $0xd40] sm:$0xff]
        %v3747 = vld [vmem:[%s212 + $0xd48] sm:$0xff]
        %v3748 = vld [vmem:[%s212 + $0xd50] sm:$0xff]
        %v3749 = vld [vmem:[%s212 + $0xd58] sm:$0xff]
        %v3750 = vld [vmem:[%s212 + $0xd60] sm:$0xff]
        %v3751 = vld [vmem:[%s212 + $0xd68] sm:$0xff]
        %v3752 = vld [vmem:[%s212 + $0xd70] sm:$0xff]
        %v3753 = vld [vmem:[%s212 + $0xd78] sm:$0xff]
        %v3754 = vld [vmem:[%s212 + $0xd80] sm:$0xff]
        %v3755 = vld [vmem:[%s212 + $0xd88] sm:$0xff]
        %v3756 = vld [vmem:[%s212 + $0xd90] sm:$0xff]
        %v3757 = vld [vmem:[%s212 + $0xd98] sm:$0xff]
        %v3758 = vld [vmem:[%s212 + $0xda0] sm:$0xff]
        %v3759 = vld [vmem:[%s212 + $0xda8] sm:$0xff]
        %v3760 = vld [vmem:[%s212 + $0xdb0] sm:$0xff]
        %v3761 = vld [vmem:[%s212 + $0xdb8] sm:$0xff]
        %v3762 = vld [vmem:[%s212 + $0xdc0] sm:$0xff]
        %v3763 = vld [vmem:[%s212 + $0xdc8] sm:$0xff]
        %v3764 = vld [vmem:[%s212 + $0xdd0] sm:$0xff]
        %v3765 = vld [vmem:[%s212 + $0xdd8] sm:$0xff]
        %v3766 = vld [vmem:[%s212 + $0xde0] sm:$0xff]
        %v3767 = vld [vmem:[%s212 + $0xde8] sm:$0xff]
        %v3768 = vld [vmem:[%s212 + $0xdf0] sm:$0xff]
        %v3769 = vld [vmem:[%s212 + $0xdf8] sm:$0xff]
        %v3770 = vld [vmem:[%s212 + $0xe00] sm:$0xff]
        %v3771 = vld [vmem:[%s212 + $0xe08] sm:$0xff]
        %v3772 = vld [vmem:[%s212 + $0xe10] sm:$0xff]
        %v3773 = vld [vmem:[%s212 + $0xe18] sm:$0xff]
        %v3774 = vld [vmem:[%s212 + $0xe20] sm:$0xff]
        %v3775 = vld [vmem:[%s212 + $0xe28] sm:$0xff]
        %v3776 = vld [vmem:[%s212 + $0xe30] sm:$0xff]
        %v3777 = vld [vmem:[%s212 + $0xe38] sm:$0xff]
        %v3778 = vld [vmem:[%s212 + $0xe40] sm:$0xff]
        %v3779 = vld [vmem:[%s212 + $0xe48] sm:$0xff]
        %v3780 = vld [vmem:[%s212 + $0xe50] sm:$0xff]
        %v3781 = vld [vmem:[%s212 + $0xe58] sm:$0xff]
        %v3782 = vld [vmem:[%s212 + $0xe60] sm:$0xff]
        %v3783 = vld [vmem:[%s212 + $0xe68] sm:$0xff]
        %v3784 = vld [vmem:[%s212 + $0xe70] sm:$0xff]
        %v3785 = vld [vmem:[%s212 + $0xe78] sm:$0xff]
        %v3786 = vld [vmem:[%s212 + $0xe80] sm:$0xff]
        %v3787 = vld [vmem:[%s212 + $0xe88] sm:$0xff]
        %v3788 = vld [vmem:[%s212 + $0xe90] sm:$0xff]
        %v3789 = vld [vmem:[%s212 + $0xe98] sm:$0xff]
        %v3790 = vld [vmem:[%s212 + $0xea0] sm:$0xff]
        %v3791 = vld [vmem:[%s212 + $0xea8] sm:$0xff]
        %v3792 = vld [vmem:[%s212 + $0xeb0] sm:$0xff]
        %v3793 = vld [vmem:[%s212 + $0xeb8] sm:$0xff]
        %v3794 = vld [vmem:[%s212 + $0xec0] sm:$0xff]
        %v3795 = vld [vmem:[%s212 + $0xec8] sm:$0xff]
        %v3796 = vld [vmem:[%s212 + $0xed0] sm:$0xff]
        %v3797 = vld [vmem:[%s212 + $0xed8] sm:$0xff]
        %v3798 = vld [vmem:[%s212 + $0xee0] sm:$0xff]
        %v3799 = vld [vmem:[%s212 + $0xee8] sm:$0xff]
        %v3800 = vld [vmem:[%s212 + $0xef0] sm:$0xff]
        %v3801 = vld [vmem:[%s212 + $0xef8] sm:$0xff]
        %v3802 = vld [vmem:[%s212 + $0xf00] sm:$0xff]
        %v3803 = vld [vmem:[%s212 + $0xf08] sm:$0xff]
        %v3804 = vld [vmem:[%s212 + $0xf10] sm:$0xff]
        %v3805 = vld [vmem:[%s212 + $0xf18] sm:$0xff]
        %v3806 = vld [vmem:[%s212 + $0xf20] sm:$0xff]
        %v3807 = vld [vmem:[%s212 + $0xf28] sm:$0xff]
        %v3808 = vld [vmem:[%s212 + $0xf30] sm:$0xff]
        %v3809 = vld [vmem:[%s212 + $0xf38] sm:$0xff]
        %v3810 = vld [vmem:[%s212 + $0xf40] sm:$0xff]
        %v3811 = vld [vmem:[%s212 + $0xf48] sm:$0xff]
        %v3812 = vld [vmem:[%s212 + $0xf50] sm:$0xff]
        %v3813 = vld [vmem:[%s212 + $0xf58] sm:$0xff]
        %v3814 = vld [vmem:[%s212 + $0xf60] sm:$0xff]
        %v3815 = vld [vmem:[%s212 + $0xf68] sm:$0xff]
        %v3816 = vld [vmem:[%s212 + $0xf70] sm:$0xff]
        %v3817 = vld [vmem:[%s212 + $0xf78] sm:$0xff]
        %v3818 = vld [vmem:[%s212 + $0xf80] sm:$0xff]
        %v3819 = vld [vmem:[%s212 + $0xf88] sm:$0xff]
        %v3820 = vld [vmem:[%s212 + $0xf90] sm:$0xff]
        %v3821 = vld [vmem:[%s212 + $0xf98] sm:$0xff]
        %v3822 = vld [vmem:[%s212 + $0xfa0] sm:$0xff]
        %v3823 = vld [vmem:[%s212 + $0xfa8] sm:$0xff]
        %v3824 = vld [vmem:[%s212 + $0xfb0] sm:$0xff]
        %v3825 = vld [vmem:[%s212 + $0xfb8] sm:$0xff]
        %v3826 = vld [vmem:[%s212 + $0xfc0] sm:$0xff]
        %v3827 = vld [vmem:[%s212 + $0xfc8] sm:$0xff]
        %v3828 = vld [vmem:[%s212 + $0xfd0] sm:$0xff]
        %v3829 = vld [vmem:[%s212 + $0xfd8] sm:$0xff]
        %v3830 = vld [vmem:[%s212 + $0xfe0] sm:$0xff]
        %v3831 = vld [vmem:[%s212 + $0xfe8] sm:$0xff]
        %v3832 = vld [vmem:[%s212 + $0xff0] sm:$0xff]
        %v3833 = vld [vmem:[%s212 + $0xff8] sm:$0xff]
        %v3834 = vsub.f32 1.0, %v3322
        %v3835 = vsub.f32 1.0, %v3323
        %v3836 = vsub.f32 1.0, %v3324
        %v3837 = vsub.f32 1.0, %v3325
        %v3838 = vsub.f32 1.0, %v3326
        %v3839 = vsub.f32 1.0, %v3327
        %v3840 = vsub.f32 1.0, %v3328
        %v3841 = vsub.f32 1.0, %v3329
        %v3842 = vsub.f32 1.0, %v3330
        %v3843 = vsub.f32 1.0, %v3331
        %v3844 = vsub.f32 1.0, %v3332
        %v3845 = vsub.f32 1.0, %v3333
        %v3846 = vsub.f32 1.0, %v3334
        %v3847 = vsub.f32 1.0, %v3335
        %v3848 = vsub.f32 1.0, %v3336
        %v3849 = vsub.f32 1.0, %v3337
        %v3850 = vsub.f32 1.0, %v3338
        %v3851 = vsub.f32 1.0, %v3339
        %v3852 = vsub.f32 1.0, %v3340
        %v3853 = vsub.f32 1.0, %v3341
        %v3854 = vsub.f32 1.0, %v3342
        %v3855 = vsub.f32 1.0, %v3343
        %v3856 = vsub.f32 1.0, %v3344
        %v3857 = vsub.f32 1.0, %v3345
        %v3858 = vsub.f32 1.0, %v3346
        %v3859 = vsub.f32 1.0, %v3347
        %v3860 = vsub.f32 1.0, %v3348
        %v3861 = vsub.f32 1.0, %v3349
        %v3862 = vsub.f32 1.0, %v3350
        %v3863 = vsub.f32 1.0, %v3351
        %v3864 = vsub.f32 1.0, %v3352
        %v3865 = vsub.f32 1.0, %v3353
        %v3866 = vsub.f32 1.0, %v3354
        %v3867 = vsub.f32 1.0, %v3355
        %v3868 = vsub.f32 1.0, %v3356
        %v3869 = vsub.f32 1.0, %v3357
        %v3870 = vsub.f32 1.0, %v3358
        %v3871 = vsub.f32 1.0, %v3359
        %v3872 = vsub.f32 1.0, %v3360
        %v3873 = vsub.f32 1.0, %v3361
        %v3874 = vsub.f32 1.0, %v3362
        %v3875 = vsub.f32 1.0, %v3363
        %v3876 = vsub.f32 1.0, %v3364
        %v3877 = vsub.f32 1.0, %v3365
        %v3878 = vsub.f32 1.0, %v3366
        %v3879 = vsub.f32 1.0, %v3367
        %v3880 = vsub.f32 1.0, %v3368
        %v3881 = vsub.f32 1.0, %v3369
        %v3882 = vsub.f32 1.0, %v3370
        %v3883 = vsub.f32 1.0, %v3371
        %v3884 = vsub.f32 1.0, %v3372
        %v3885 = vsub.f32 1.0, %v3373
        %v3886 = vsub.f32 1.0, %v3374
        %v3887 = vsub.f32 1.0, %v3375
        %v3888 = vsub.f32 1.0, %v3376
        %v3889 = vsub.f32 1.0, %v3377
        %v3890 = vsub.f32 1.0, %v3378
        %v3891 = vsub.f32 1.0, %v3379
        %v3892 = vsub.f32 1.0, %v3380
        %v3893 = vsub.f32 1.0, %v3381
        %v3894 = vsub.f32 1.0, %v3382
        %v3895 = vsub.f32 1.0, %v3383
        %v3896 = vsub.f32 1.0, %v3384
        %v3897 = vsub.f32 1.0, %v3385
        %v3898 = vsub.f32 1.0, %v3386
        %v3899 = vsub.f32 1.0, %v3387
        %v3900 = vsub.f32 1.0, %v3388
        %v3901 = vsub.f32 1.0, %v3389
        %v3902 = vsub.f32 1.0, %v3390
        %v3903 = vsub.f32 1.0, %v3391
        %v3904 = vsub.f32 1.0, %v3392
        %v3905 = vsub.f32 1.0, %v3393
        %v3906 = vsub.f32 1.0, %v3394
        %v3907 = vsub.f32 1.0, %v3395
        %v3908 = vsub.f32 1.0, %v3396
        %v3909 = vsub.f32 1.0, %v3397
        %v3910 = vsub.f32 1.0, %v3398
        %v3911 = vsub.f32 1.0, %v3399
        %v3912 = vsub.f32 1.0, %v3400
        %v3913 = vsub.f32 1.0, %v3401
        %v3914 = vsub.f32 1.0, %v3402
        %v3915 = vsub.f32 1.0, %v3403
        %v3916 = vsub.f32 1.0, %v3404
        %v3917 = vsub.f32 1.0, %v3405
        %v3918 = vsub.f32 1.0, %v3406
        %v3919 = vsub.f32 1.0, %v3407
        %v3920 = vsub.f32 1.0, %v3408
        %v3921 = vsub.f32 1.0, %v3409
        %v3922 = vsub.f32 1.0, %v3410
        %v3923 = vsub.f32 1.0, %v3411
        %v3924 = vsub.f32 1.0, %v3412
        %v3925 = vsub.f32 1.0, %v3413
        %v3926 = vsub.f32 1.0, %v3414
        %v3927 = vsub.f32 1.0, %v3415
        %v3928 = vsub.f32 1.0, %v3416
        %v3929 = vsub.f32 1.0, %v3417
        %v3930 = vsub.f32 1.0, %v3418
        %v3931 = vsub.f32 1.0, %v3419
        %v3932 = vsub.f32 1.0, %v3420
        %v3933 = vsub.f32 1.0, %v3421
        %v3934 = vsub.f32 1.0, %v3422
        %v3935 = vsub.f32 1.0, %v3423
        %v3936 = vsub.f32 1.0, %v3424
        %v3937 = vsub.f32 1.0, %v3425
        %v3938 = vsub.f32 1.0, %v3426
        %v3939 = vsub.f32 1.0, %v3427
        %v3940 = vsub.f32 1.0, %v3428
        %v3941 = vsub.f32 1.0, %v3429
        %v3942 = vsub.f32 1.0, %v3430
        %v3943 = vsub.f32 1.0, %v3431
        %v3944 = vsub.f32 1.0, %v3432
        %v3945 = vsub.f32 1.0, %v3433
        %v3946 = vsub.f32 1.0, %v3434
        %v3947 = vsub.f32 1.0, %v3435
        %v3948 = vsub.f32 1.0, %v3436
        %v3949 = vsub.f32 1.0, %v3437
        %v3950 = vsub.f32 1.0, %v3438
        %v3951 = vsub.f32 1.0, %v3439
        %v3952 = vsub.f32 1.0, %v3440
        %v3953 = vsub.f32 1.0, %v3441
        %v3954 = vsub.f32 1.0, %v3442
        %v3955 = vsub.f32 1.0, %v3443
        %v3956 = vsub.f32 1.0, %v3444
        %v3957 = vsub.f32 1.0, %v3445
        %v3958 = vsub.f32 1.0, %v3446
        %v3959 = vsub.f32 1.0, %v3447
        %v3960 = vsub.f32 1.0, %v3448
        %v3961 = vsub.f32 1.0, %v3449
        %v3962 = vsub.f32 1.0, %v3450
        %v3963 = vsub.f32 1.0, %v3451
        %v3964 = vsub.f32 1.0, %v3452
        %v3965 = vsub.f32 1.0, %v3453
        %v3966 = vsub.f32 1.0, %v3454
        %v3967 = vsub.f32 1.0, %v3455
        %v3968 = vsub.f32 1.0, %v3456
        %v3969 = vsub.f32 1.0, %v3457
        %v3970 = vsub.f32 1.0, %v3458
        %v3971 = vsub.f32 1.0, %v3459
        %v3972 = vsub.f32 1.0, %v3460
        %v3973 = vsub.f32 1.0, %v3461
        %v3974 = vsub.f32 1.0, %v3462
        %v3975 = vsub.f32 1.0, %v3463
        %v3976 = vsub.f32 1.0, %v3464
        %v3977 = vsub.f32 1.0, %v3465
        %v3978 = vsub.f32 1.0, %v3466
        %v3979 = vsub.f32 1.0, %v3467
        %v3980 = vsub.f32 1.0, %v3468
        %v3981 = vsub.f32 1.0, %v3469
        %v3982 = vsub.f32 1.0, %v3470
        %v3983 = vsub.f32 1.0, %v3471
        %v3984 = vsub.f32 1.0, %v3472
        %v3985 = vsub.f32 1.0, %v3473
        %v3986 = vsub.f32 1.0, %v3474
        %v3987 = vsub.f32 1.0, %v3475
        %v3988 = vsub.f32 1.0, %v3476
        %v3989 = vsub.f32 1.0, %v3477
        %v3990 = vsub.f32 1.0, %v3478
        %v3991 = vsub.f32 1.0, %v3479
        %v3992 = vsub.f32 1.0, %v3480
        %v3993 = vsub.f32 1.0, %v3481
        %v3994 = vsub.f32 1.0, %v3482
        %v3995 = vsub.f32 1.0, %v3483
        %v3996 = vsub.f32 1.0, %v3484
        %v3997 = vsub.f32 1.0, %v3485
        %v3998 = vsub.f32 1.0, %v3486
        %v3999 = vsub.f32 1.0, %v3487
        %v4000 = vsub.f32 1.0, %v3488
        %v4001 = vsub.f32 1.0, %v3489
        %v4002 = vsub.f32 1.0, %v3490
        %v4003 = vsub.f32 1.0, %v3491
        %v4004 = vsub.f32 1.0, %v3492
        %v4005 = vsub.f32 1.0, %v3493
        %v4006 = vsub.f32 1.0, %v3494
        %v4007 = vsub.f32 1.0, %v3495
        %v4008 = vsub.f32 1.0, %v3496
        %v4009 = vsub.f32 1.0, %v3497
        %v4010 = vsub.f32 1.0, %v3498
        %v4011 = vsub.f32 1.0, %v3499
        %v4012 = vsub.f32 1.0, %v3500
        %v4013 = vsub.f32 1.0, %v3501
        %v4014 = vsub.f32 1.0, %v3502
        %v4015 = vsub.f32 1.0, %v3503
        %v4016 = vsub.f32 1.0, %v3504
        %v4017 = vsub.f32 1.0, %v3505
        %v4018 = vsub.f32 1.0, %v3506
        %v4019 = vsub.f32 1.0, %v3507
        %v4020 = vsub.f32 1.0, %v3508
        %v4021 = vsub.f32 1.0, %v3509
        %v4022 = vsub.f32 1.0, %v3510
        %v4023 = vsub.f32 1.0, %v3511
        %v4024 = vsub.f32 1.0, %v3512
        %v4025 = vsub.f32 1.0, %v3513
        %v4026 = vsub.f32 1.0, %v3514
        %v4027 = vsub.f32 1.0, %v3515
        %v4028 = vsub.f32 1.0, %v3516
        %v4029 = vsub.f32 1.0, %v3517
        %v4030 = vsub.f32 1.0, %v3518
        %v4031 = vsub.f32 1.0, %v3519
        %v4032 = vsub.f32 1.0, %v3520
        %v4033 = vsub.f32 1.0, %v3521
        %v4034 = vsub.f32 1.0, %v3522
        %v4035 = vsub.f32 1.0, %v3523
        %v4036 = vsub.f32 1.0, %v3524
        %v4037 = vsub.f32 1.0, %v3525
        %v4038 = vsub.f32 1.0, %v3526
        %v4039 = vsub.f32 1.0, %v3527
        %v4040 = vsub.f32 1.0, %v3528
        %v4041 = vsub.f32 1.0, %v3529
        %v4042 = vsub.f32 1.0, %v3530
        %v4043 = vsub.f32 1.0, %v3531
        %v4044 = vsub.f32 1.0, %v3532
        %v4045 = vsub.f32 1.0, %v3533
        %v4046 = vsub.f32 1.0, %v3534
        %v4047 = vsub.f32 1.0, %v3535
        %v4048 = vsub.f32 1.0, %v3536
        %v4049 = vsub.f32 1.0, %v3537
        %v4050 = vsub.f32 1.0, %v3538
        %v4051 = vsub.f32 1.0, %v3539
        %v4052 = vsub.f32 1.0, %v3540
        %v4053 = vsub.f32 1.0, %v3541
        %v4054 = vsub.f32 1.0, %v3542
        %v4055 = vsub.f32 1.0, %v3543
        %v4056 = vsub.f32 1.0, %v3544
        %v4057 = vsub.f32 1.0, %v3545
        %v4058 = vsub.f32 1.0, %v3546
        %v4059 = vsub.f32 1.0, %v3547
        %v4060 = vsub.f32 1.0, %v3548
        %v4061 = vsub.f32 1.0, %v3549
        %v4062 = vsub.f32 1.0, %v3550
        %v4063 = vsub.f32 1.0, %v3551
        %v4064 = vsub.f32 1.0, %v3552
        %v4065 = vsub.f32 1.0, %v3553
        %v4066 = vsub.f32 1.0, %v3554
        %v4067 = vsub.f32 1.0, %v3555
        %v4068 = vsub.f32 1.0, %v3556
        %v4069 = vsub.f32 1.0, %v3557
        %v4070 = vsub.f32 1.0, %v3558
        %v4071 = vsub.f32 1.0, %v3559
        %v4072 = vsub.f32 1.0, %v3560
        %v4073 = vsub.f32 1.0, %v3561
        %v4074 = vsub.f32 1.0, %v3562
        %v4075 = vsub.f32 1.0, %v3563
        %v4076 = vsub.f32 1.0, %v3564
        %v4077 = vsub.f32 1.0, %v3565
        %v4078 = vsub.f32 1.0, %v3566
        %v4079 = vsub.f32 1.0, %v3567
        %v4080 = vsub.f32 1.0, %v3568
        %v4081 = vsub.f32 1.0, %v3569
        %v4082 = vsub.f32 1.0, %v3570
        %v4083 = vsub.f32 1.0, %v3571
        %v4084 = vsub.f32 1.0, %v3572
        %v4085 = vsub.f32 1.0, %v3573
        %v4086 = vsub.f32 1.0, %v3574
        %v4087 = vsub.f32 1.0, %v3575
        %v4088 = vsub.f32 1.0, %v3576
        %v4089 = vsub.f32 1.0, %v3577
        %v4090 = vsub.f32 1.0, %v3578
        %v4091 = vsub.f32 1.0, %v3579
        %v4092 = vsub.f32 1.0, %v3580
        %v4093 = vsub.f32 1.0, %v3581
        %v4094 = vsub.f32 1.0, %v3582
        %v4095 = vsub.f32 1.0, %v3583
        %v4096 = vsub.f32 1.0, %v3584
        %v4097 = vsub.f32 1.0, %v3585
        %v4098 = vsub.f32 1.0, %v3586
        %v4099 = vsub.f32 1.0, %v3587
        %v4100 = vsub.f32 1.0, %v3588
        %v4101 = vsub.f32 1.0, %v3589
        %v4102 = vsub.f32 1.0, %v3590
        %v4103 = vsub.f32 1.0, %v3591
        %v4104 = vsub.f32 1.0, %v3592
        %v4105 = vsub.f32 1.0, %v3593
        %v4106 = vsub.f32 1.0, %v3594
        %v4107 = vsub.f32 1.0, %v3595
        %v4108 = vsub.f32 1.0, %v3596
        %v4109 = vsub.f32 1.0, %v3597
        %v4110 = vsub.f32 1.0, %v3598
        %v4111 = vsub.f32 1.0, %v3599
        %v4112 = vsub.f32 1.0, %v3600
        %v4113 = vsub.f32 1.0, %v3601
        %v4114 = vsub.f32 1.0, %v3602
        %v4115 = vsub.f32 1.0, %v3603
        %v4116 = vsub.f32 1.0, %v3604
        %v4117 = vsub.f32 1.0, %v3605
        %v4118 = vsub.f32 1.0, %v3606
        %v4119 = vsub.f32 1.0, %v3607
        %v4120 = vsub.f32 1.0, %v3608
        %v4121 = vsub.f32 1.0, %v3609
        %v4122 = vsub.f32 1.0, %v3610
        %v4123 = vsub.f32 1.0, %v3611
        %v4124 = vsub.f32 1.0, %v3612
        %v4125 = vsub.f32 1.0, %v3613
        %v4126 = vsub.f32 1.0, %v3614
        %v4127 = vsub.f32 1.0, %v3615
        %v4128 = vsub.f32 1.0, %v3616
        %v4129 = vsub.f32 1.0, %v3617
        %v4130 = vsub.f32 1.0, %v3618
        %v4131 = vsub.f32 1.0, %v3619
        %v4132 = vsub.f32 1.0, %v3620
        %v4133 = vsub.f32 1.0, %v3621
        %v4134 = vsub.f32 1.0, %v3622
        %v4135 = vsub.f32 1.0, %v3623
        %v4136 = vsub.f32 1.0, %v3624
        %v4137 = vsub.f32 1.0, %v3625
        %v4138 = vsub.f32 1.0, %v3626
        %v4139 = vsub.f32 1.0, %v3627
        %v4140 = vsub.f32 1.0, %v3628
        %v4141 = vsub.f32 1.0, %v3629
        %v4142 = vsub.f32 1.0, %v3630
        %v4143 = vsub.f32 1.0, %v3631
        %v4144 = vsub.f32 1.0, %v3632
        %v4145 = vsub.f32 1.0, %v3633
        %v4146 = vsub.f32 1.0, %v3634
        %v4147 = vsub.f32 1.0, %v3635
        %v4148 = vsub.f32 1.0, %v3636
        %v4149 = vsub.f32 1.0, %v3637
        %v4150 = vsub.f32 1.0, %v3638
        %v4151 = vsub.f32 1.0, %v3639
        %v4152 = vsub.f32 1.0, %v3640
        %v4153 = vsub.f32 1.0, %v3641
        %v4154 = vsub.f32 1.0, %v3642
        %v4155 = vsub.f32 1.0, %v3643
        %v4156 = vsub.f32 1.0, %v3644
        %v4157 = vsub.f32 1.0, %v3645
        %v4158 = vsub.f32 1.0, %v3646
        %v4159 = vsub.f32 1.0, %v3647
        %v4160 = vsub.f32 1.0, %v3648
        %v4161 = vsub.f32 1.0, %v3649
        %v4162 = vsub.f32 1.0, %v3650
        %v4163 = vsub.f32 1.0, %v3651
        %v4164 = vsub.f32 1.0, %v3652
        %v4165 = vsub.f32 1.0, %v3653
        %v4166 = vsub.f32 1.0, %v3654
        %v4167 = vsub.f32 1.0, %v3655
        %v4168 = vsub.f32 1.0, %v3656
        %v4169 = vsub.f32 1.0, %v3657
        %v4170 = vsub.f32 1.0, %v3658
        %v4171 = vsub.f32 1.0, %v3659
        %v4172 = vsub.f32 1.0, %v3660
        %v4173 = vsub.f32 1.0, %v3661
        %v4174 = vsub.f32 1.0, %v3662
        %v4175 = vsub.f32 1.0, %v3663
        %v4176 = vsub.f32 1.0, %v3664
        %v4177 = vsub.f32 1.0, %v3665
        %v4178 = vsub.f32 1.0, %v3666
        %v4179 = vsub.f32 1.0, %v3667
        %v4180 = vsub.f32 1.0, %v3668
        %v4181 = vsub.f32 1.0, %v3669
        %v4182 = vsub.f32 1.0, %v3670
        %v4183 = vsub.f32 1.0, %v3671
        %v4184 = vsub.f32 1.0, %v3672
        %v4185 = vsub.f32 1.0, %v3673
        %v4186 = vsub.f32 1.0, %v3674
        %v4187 = vsub.f32 1.0, %v3675
        %v4188 = vsub.f32 1.0, %v3676
        %v4189 = vsub.f32 1.0, %v3677
        %v4190 = vsub.f32 1.0, %v3678
        %v4191 = vsub.f32 1.0, %v3679
        %v4192 = vsub.f32 1.0, %v3680
        %v4193 = vsub.f32 1.0, %v3681
        %v4194 = vsub.f32 1.0, %v3682
        %v4195 = vsub.f32 1.0, %v3683
        %v4196 = vsub.f32 1.0, %v3684
        %v4197 = vsub.f32 1.0, %v3685
        %v4198 = vsub.f32 1.0, %v3686
        %v4199 = vsub.f32 1.0, %v3687
        %v4200 = vsub.f32 1.0, %v3688
        %v4201 = vsub.f32 1.0, %v3689
        %v4202 = vsub.f32 1.0, %v3690
        %v4203 = vsub.f32 1.0, %v3691
        %v4204 = vsub.f32 1.0, %v3692
        %v4205 = vsub.f32 1.0, %v3693
        %v4206 = vsub.f32 1.0, %v3694
        %v4207 = vsub.f32 1.0, %v3695
        %v4208 = vsub.f32 1.0, %v3696
        %v4209 = vsub.f32 1.0, %v3697
        %v4210 = vsub.f32 1.0, %v3698
        %v4211 = vsub.f32 1.0, %v3699
        %v4212 = vsub.f32 1.0, %v3700
        %v4213 = vsub.f32 1.0, %v3701
        %v4214 = vsub.f32 1.0, %v3702
        %v4215 = vsub.f32 1.0, %v3703
        %v4216 = vsub.f32 1.0, %v3704
        %v4217 = vsub.f32 1.0, %v3705
        %v4218 = vsub.f32 1.0, %v3706
        %v4219 = vsub.f32 1.0, %v3707
        %v4220 = vsub.f32 1.0, %v3708
        %v4221 = vsub.f32 1.0, %v3709
        %v4222 = vsub.f32 1.0, %v3710
        %v4223 = vsub.f32 1.0, %v3711
        %v4224 = vsub.f32 1.0, %v3712
        %v4225 = vsub.f32 1.0, %v3713
        %v4226 = vsub.f32 1.0, %v3714
        %v4227 = vsub.f32 1.0, %v3715
        %v4228 = vsub.f32 1.0, %v3716
        %v4229 = vsub.f32 1.0, %v3717
        %v4230 = vsub.f32 1.0, %v3718
        %v4231 = vsub.f32 1.0, %v3719
        %v4232 = vsub.f32 1.0, %v3720
        %v4233 = vsub.f32 1.0, %v3721
        %v4234 = vsub.f32 1.0, %v3722
        %v4235 = vsub.f32 1.0, %v3723
        %v4236 = vsub.f32 1.0, %v3724
        %v4237 = vsub.f32 1.0, %v3725
        %v4238 = vsub.f32 1.0, %v3726
        %v4239 = vsub.f32 1.0, %v3727
        %v4240 = vsub.f32 1.0, %v3728
        %v4241 = vsub.f32 1.0, %v3729
        %v4242 = vsub.f32 1.0, %v3730
        %v4243 = vsub.f32 1.0, %v3731
        %v4244 = vsub.f32 1.0, %v3732
        %v4245 = vsub.f32 1.0, %v3733
        %v4246 = vsub.f32 1.0, %v3734
        %v4247 = vsub.f32 1.0, %v3735
        %v4248 = vsub.f32 1.0, %v3736
        %v4249 = vsub.f32 1.0, %v3737
        %v4250 = vsub.f32 1.0, %v3738
        %v4251 = vsub.f32 1.0, %v3739
        %v4252 = vsub.f32 1.0, %v3740
        %v4253 = vsub.f32 1.0, %v3741
        %v4254 = vsub.f32 1.0, %v3742
        %v4255 = vsub.f32 1.0, %v3743
        %v4256 = vsub.f32 1.0, %v3744
        %v4257 = vsub.f32 1.0, %v3745
        %v4258 = vsub.f32 1.0, %v3746
        %v4259 = vsub.f32 1.0, %v3747
        %v4260 = vsub.f32 1.0, %v3748
        %v4261 = vsub.f32 1.0, %v3749
        %v4262 = vsub.f32 1.0, %v3750
        %v4263 = vsub.f32 1.0, %v3751
        %v4264 = vsub.f32 1.0, %v3752
        %v4265 = vsub.f32 1.0, %v3753
        %v4266 = vsub.f32 1.0, %v3754
        %v4267 = vsub.f32 1.0, %v3755
        %v4268 = vsub.f32 1.0, %v3756
        %v4269 = vsub.f32 1.0, %v3757
        %v4270 = vsub.f32 1.0, %v3758
        %v4271 = vsub.f32 1.0, %v3759
        %v4272 = vsub.f32 1.0, %v3760
        %v4273 = vsub.f32 1.0, %v3761
        %v4274 = vsub.f32 1.0, %v3762
        %v4275 = vsub.f32 1.0, %v3763
        %v4276 = vsub.f32 1.0, %v3764
        %v4277 = vsub.f32 1.0, %v3765
        %v4278 = vsub.f32 1.0, %v3766
        %v4279 = vsub.f32 1.0, %v3767
        %v4280 = vsub.f32 1.0, %v3768
        %v4281 = vsub.f32 1.0, %v3769
        %v4282 = vsub.f32 1.0, %v3770
        %v4283 = vsub.f32 1.0, %v3771
        %v4284 = vsub.f32 1.0, %v3772
        %v4285 = vsub.f32 1.0, %v3773
        %v4286 = vsub.f32 1.0, %v3774
        %v4287 = vsub.f32 1.0, %v3775
        %v4288 = vsub.f32 1.0, %v3776
        %v4289 = vsub.f32 1.0, %v3777
        %v4290 = vsub.f32 1.0, %v3778
        %v4291 = vsub.f32 1.0, %v3779
        %v4292 = vsub.f32 1.0, %v3780
        %v4293 = vsub.f32 1.0, %v3781
        %v4294 = vsub.f32 1.0, %v3782
        %v4295 = vsub.f32 1.0, %v3783
        %v4296 = vsub.f32 1.0, %v3784
        %v4297 = vsub.f32 1.0, %v3785
        %v4298 = vsub.f32 1.0, %v3786
        %v4299 = vsub.f32 1.0, %v3787
        %v4300 = vsub.f32 1.0, %v3788
        %v4301 = vsub.f32 1.0, %v3789
        %v4302 = vsub.f32 1.0, %v3790
        %v4303 = vsub.f32 1.0, %v3791
        %v4304 = vsub.f32 1.0, %v3792
        %v4305 = vsub.f32 1.0, %v3793
        %v4306 = vsub.f32 1.0, %v3794
        %v4307 = vsub.f32 1.0, %v3795
        %v4308 = vsub.f32 1.0, %v3796
        %v4309 = vsub.f32 1.0, %v3797
        %v4310 = vsub.f32 1.0, %v3798
        %v4311 = vsub.f32 1.0, %v3799
        %v4312 = vsub.f32 1.0, %v3800
        %v4313 = vsub.f32 1.0, %v3801
        %v4314 = vsub.f32 1.0, %v3802
        %v4315 = vsub.f32 1.0, %v3803
        %v4316 = vsub.f32 1.0, %v3804
        %v4317 = vsub.f32 1.0, %v3805
        %v4318 = vsub.f32 1.0, %v3806
        %v4319 = vsub.f32 1.0, %v3807
        %v4320 = vsub.f32 1.0, %v3808
        %v4321 = vsub.f32 1.0, %v3809
        %v4322 = vsub.f32 1.0, %v3810
        %v4323 = vsub.f32 1.0, %v3811
        %v4324 = vsub.f32 1.0, %v3812
        %v4325 = vsub.f32 1.0, %v3813
        %v4326 = vsub.f32 1.0, %v3814
        %v4327 = vsub.f32 1.0, %v3815
        %v4328 = vsub.f32 1.0, %v3816
        %v4329 = vsub.f32 1.0, %v3817
        %v4330 = vsub.f32 1.0, %v3818
        %v4331 = vsub.f32 1.0, %v3819
        %v4332 = vsub.f32 1.0, %v3820
        %v4333 = vsub.f32 1.0, %v3821
        %v4334 = vsub.f32 1.0, %v3822
        %v4335 = vsub.f32 1.0, %v3823
        %v4336 = vsub.f32 1.0, %v3824
        %v4337 = vsub.f32 1.0, %v3825
        %v4338 = vsub.f32 1.0, %v3826
        %v4339 = vsub.f32 1.0, %v3827
        %v4340 = vsub.f32 1.0, %v3828
        %v4341 = vsub.f32 1.0, %v3829
        %v4342 = vsub.f32 1.0, %v3830
        %v4343 = vsub.f32 1.0, %v3831
        %v4344 = vsub.f32 1.0, %v3832
        %v4345 = vsub.f32 1.0, %v3833
        %4346 = vst [vmem:[%s245] sm:$0xff] %v3834
        %4347 = vst [vmem:[%s245 + $0x8] sm:$0xff] %v3835
        %4348 = vst [vmem:[%s245 + $0x10] sm:$0xff] %v3836
        %4349 = vst [vmem:[%s245 + $0x18] sm:$0xff] %v3837
        %4350 = vst [vmem:[%s245 + $0x20] sm:$0xff] %v3838
        %4351 = vst [vmem:[%s245 + $0x28] sm:$0xff] %v3839
        %4352 = vst [vmem:[%s245 + $0x30] sm:$0xff] %v3840
        %4353 = vst [vmem:[%s245 + $0x38] sm:$0xff] %v3841
        %4354 = vst [vmem:[%s245 + $0x40] sm:$0xff] %v3842
        %4355 = vst [vmem:[%s245 + $0x48] sm:$0xff] %v3843
        %4356 = vst [vmem:[%s245 + $0x50] sm:$0xff] %v3844
        %4357 = vst [vmem:[%s245 + $0x58] sm:$0xff] %v3845
        %4358 = vst [vmem:[%s245 + $0x60] sm:$0xff] %v3846
        %4359 = vst [vmem:[%s245 + $0x68] sm:$0xff] %v3847
        %4360 = vst [vmem:[%s245 + $0x70] sm:$0xff] %v3848
        %4361 = vst [vmem:[%s245 + $0x78] sm:$0xff] %v3849
        %4362 = vst [vmem:[%s245 + $0x80] sm:$0xff] %v3850
        %4363 = vst [vmem:[%s245 + $0x88] sm:$0xff] %v3851
        %4364 = vst [vmem:[%s245 + $0x90] sm:$0xff] %v3852
        %4365 = vst [vmem:[%s245 + $0x98] sm:$0xff] %v3853
        %4366 = vst [vmem:[%s245 + $0xa0] sm:$0xff] %v3854
        %4367 = vst [vmem:[%s245 + $0xa8] sm:$0xff] %v3855
        %4368 = vst [vmem:[%s245 + $0xb0] sm:$0xff] %v3856
        %4369 = vst [vmem:[%s245 + $0xb8] sm:$0xff] %v3857
        %4370 = vst [vmem:[%s245 + $0xc0] sm:$0xff] %v3858
        %4371 = vst [vmem:[%s245 + $0xc8] sm:$0xff] %v3859
        %4372 = vst [vmem:[%s245 + $0xd0] sm:$0xff] %v3860
        %4373 = vst [vmem:[%s245 + $0xd8] sm:$0xff] %v3861
        %4374 = vst [vmem:[%s245 + $0xe0] sm:$0xff] %v3862
        %4375 = vst [vmem:[%s245 + $0xe8] sm:$0xff] %v3863
        %4376 = vst [vmem:[%s245 + $0xf0] sm:$0xff] %v3864
        %4377 = vst [vmem:[%s245 + $0xf8] sm:$0xff] %v3865
        %4378 = vst [vmem:[%s245 + $0x100] sm:$0xff] %v3866
        %4379 = vst [vmem:[%s245 + $0x108] sm:$0xff] %v3867
        %4380 = vst [vmem:[%s245 + $0x110] sm:$0xff] %v3868
        %4381 = vst [vmem:[%s245 + $0x118] sm:$0xff] %v3869
        %4382 = vst [vmem:[%s245 + $0x120] sm:$0xff] %v3870
        %4383 = vst [vmem:[%s245 + $0x128] sm:$0xff] %v3871
        %4384 = vst [vmem:[%s245 + $0x130] sm:$0xff] %v3872
        %4385 = vst [vmem:[%s245 + $0x138] sm:$0xff] %v3873
        %4386 = vst [vmem:[%s245 + $0x140] sm:$0xff] %v3874
        %4387 = vst [vmem:[%s245 + $0x148] sm:$0xff] %v3875
        %4388 = vst [vmem:[%s245 + $0x150] sm:$0xff] %v3876
        %4389 = vst [vmem:[%s245 + $0x158] sm:$0xff] %v3877
        %4390 = vst [vmem:[%s245 + $0x160] sm:$0xff] %v3878
        %4391 = vst [vmem:[%s245 + $0x168] sm:$0xff] %v3879
        %4392 = vst [vmem:[%s245 + $0x170] sm:$0xff] %v3880
        %4393 = vst [vmem:[%s245 + $0x178] sm:$0xff] %v3881
        %4394 = vst [vmem:[%s245 + $0x180] sm:$0xff] %v3882
        %4395 = vst [vmem:[%s245 + $0x188] sm:$0xff] %v3883
        %4396 = vst [vmem:[%s245 + $0x190] sm:$0xff] %v3884
        %4397 = vst [vmem:[%s245 + $0x198] sm:$0xff] %v3885
        %4398 = vst [vmem:[%s245 + $0x1a0] sm:$0xff] %v3886
        %4399 = vst [vmem:[%s245 + $0x1a8] sm:$0xff] %v3887
        %4400 = vst [vmem:[%s245 + $0x1b0] sm:$0xff] %v3888
        %4401 = vst [vmem:[%s245 + $0x1b8] sm:$0xff] %v3889
        %4402 = vst [vmem:[%s245 + $0x1c0] sm:$0xff] %v3890
        %4403 = vst [vmem:[%s245 + $0x1c8] sm:$0xff] %v3891
        %4404 = vst [vmem:[%s245 + $0x1d0] sm:$0xff] %v3892
        %4405 = vst [vmem:[%s245 + $0x1d8] sm:$0xff] %v3893
        %4406 = vst [vmem:[%s245 + $0x1e0] sm:$0xff] %v3894
        %4407 = vst [vmem:[%s245 + $0x1e8] sm:$0xff] %v3895
        %4408 = vst [vmem:[%s245 + $0x1f0] sm:$0xff] %v3896
        %4409 = vst [vmem:[%s245 + $0x1f8] sm:$0xff] %v3897
        %4410 = vst [vmem:[%s245 + $0x200] sm:$0xff] %v3898
        %4411 = vst [vmem:[%s245 + $0x208] sm:$0xff] %v3899
        %4412 = vst [vmem:[%s245 + $0x210] sm:$0xff] %v3900
        %4413 = vst [vmem:[%s245 + $0x218] sm:$0xff] %v3901
        %4414 = vst [vmem:[%s245 + $0x220] sm:$0xff] %v3902
        %4415 = vst [vmem:[%s245 + $0x228] sm:$0xff] %v3903
        %4416 = vst [vmem:[%s245 + $0x230] sm:$0xff] %v3904
        %4417 = vst [vmem:[%s245 + $0x238] sm:$0xff] %v3905
        %4418 = vst [vmem:[%s245 + $0x240] sm:$0xff] %v3906
        %4419 = vst [vmem:[%s245 + $0x248] sm:$0xff] %v3907
        %4420 = vst [vmem:[%s245 + $0x250] sm:$0xff] %v3908
        %4421 = vst [vmem:[%s245 + $0x258] sm:$0xff] %v3909
        %4422 = vst [vmem:[%s245 + $0x260] sm:$0xff] %v3910
        %4423 = vst [vmem:[%s245 + $0x268] sm:$0xff] %v3911
        %4424 = vst [vmem:[%s245 + $0x270] sm:$0xff] %v3912
        %4425 = vst [vmem:[%s245 + $0x278] sm:$0xff] %v3913
        %4426 = vst [vmem:[%s245 + $0x280] sm:$0xff] %v3914
        %4427 = vst [vmem:[%s245 + $0x288] sm:$0xff] %v3915
        %4428 = vst [vmem:[%s245 + $0x290] sm:$0xff] %v3916
        %4429 = vst [vmem:[%s245 + $0x298] sm:$0xff] %v3917
        %4430 = vst [vmem:[%s245 + $0x2a0] sm:$0xff] %v3918
        %4431 = vst [vmem:[%s245 + $0x2a8] sm:$0xff] %v3919
        %4432 = vst [vmem:[%s245 + $0x2b0] sm:$0xff] %v3920
        %4433 = vst [vmem:[%s245 + $0x2b8] sm:$0xff] %v3921
        %4434 = vst [vmem:[%s245 + $0x2c0] sm:$0xff] %v3922
        %4435 = vst [vmem:[%s245 + $0x2c8] sm:$0xff] %v3923
        %4436 = vst [vmem:[%s245 + $0x2d0] sm:$0xff] %v3924
        %4437 = vst [vmem:[%s245 + $0x2d8] sm:$0xff] %v3925
        %4438 = vst [vmem:[%s245 + $0x2e0] sm:$0xff] %v3926
        %4439 = vst [vmem:[%s245 + $0x2e8] sm:$0xff] %v3927
        %4440 = vst [vmem:[%s245 + $0x2f0] sm:$0xff] %v3928
        %4441 = vst [vmem:[%s245 + $0x2f8] sm:$0xff] %v3929
        %4442 = vst [vmem:[%s245 + $0x300] sm:$0xff] %v3930
        %4443 = vst [vmem:[%s245 + $0x308] sm:$0xff] %v3931
        %4444 = vst [vmem:[%s245 + $0x310] sm:$0xff] %v3932
        %4445 = vst [vmem:[%s245 + $0x318] sm:$0xff] %v3933
        %4446 = vst [vmem:[%s245 + $0x320] sm:$0xff] %v3934
        %4447 = vst [vmem:[%s245 + $0x328] sm:$0xff] %v3935
        %4448 = vst [vmem:[%s245 + $0x330] sm:$0xff] %v3936
        %4449 = vst [vmem:[%s245 + $0x338] sm:$0xff] %v3937
        %4450 = vst [vmem:[%s245 + $0x340] sm:$0xff] %v3938
        %4451 = vst [vmem:[%s245 + $0x348] sm:$0xff] %v3939
        %4452 = vst [vmem:[%s245 + $0x350] sm:$0xff] %v3940
        %4453 = vst [vmem:[%s245 + $0x358] sm:$0xff] %v3941
        %4454 = vst [vmem:[%s245 + $0x360] sm:$0xff] %v3942
        %4455 = vst [vmem:[%s245 + $0x368] sm:$0xff] %v3943
        %4456 = vst [vmem:[%s245 + $0x370] sm:$0xff] %v3944
        %4457 = vst [vmem:[%s245 + $0x378] sm:$0xff] %v3945
        %4458 = vst [vmem:[%s245 + $0x380] sm:$0xff] %v3946
        %4459 = vst [vmem:[%s245 + $0x388] sm:$0xff] %v3947
        %4460 = vst [vmem:[%s245 + $0x390] sm:$0xff] %v3948
        %4461 = vst [vmem:[%s245 + $0x398] sm:$0xff] %v3949
        %4462 = vst [vmem:[%s245 + $0x3a0] sm:$0xff] %v3950
        %4463 = vst [vmem:[%s245 + $0x3a8] sm:$0xff] %v3951
        %4464 = vst [vmem:[%s245 + $0x3b0] sm:$0xff] %v3952
        %4465 = vst [vmem:[%s245 + $0x3b8] sm:$0xff] %v3953
        %4466 = vst [vmem:[%s245 + $0x3c0] sm:$0xff] %v3954
        %4467 = vst [vmem:[%s245 + $0x3c8] sm:$0xff] %v3955
        %4468 = vst [vmem:[%s245 + $0x3d0] sm:$0xff] %v3956
        %4469 = vst [vmem:[%s245 + $0x3d8] sm:$0xff] %v3957
        %4470 = vst [vmem:[%s245 + $0x3e0] sm:$0xff] %v3958
        %4471 = vst [vmem:[%s245 + $0x3e8] sm:$0xff] %v3959
        %4472 = vst [vmem:[%s245 + $0x3f0] sm:$0xff] %v3960
        %4473 = vst [vmem:[%s245 + $0x3f8] sm:$0xff] %v3961
        %4474 = vst [vmem:[%s245 + $0x400] sm:$0xff] %v3962
        %4475 = vst [vmem:[%s245 + $0x408] sm:$0xff] %v3963
        %4476 = vst [vmem:[%s245 + $0x410] sm:$0xff] %v3964
        %4477 = vst [vmem:[%s245 + $0x418] sm:$0xff] %v3965
        %4478 = vst [vmem:[%s245 + $0x420] sm:$0xff] %v3966
        %4479 = vst [vmem:[%s245 + $0x428] sm:$0xff] %v3967
        %4480 = vst [vmem:[%s245 + $0x430] sm:$0xff] %v3968
        %4481 = vst [vmem:[%s245 + $0x438] sm:$0xff] %v3969
        %4482 = vst [vmem:[%s245 + $0x440] sm:$0xff] %v3970
        %4483 = vst [vmem:[%s245 + $0x448] sm:$0xff] %v3971
        %4484 = vst [vmem:[%s245 + $0x450] sm:$0xff] %v3972
        %4485 = vst [vmem:[%s245 + $0x458] sm:$0xff] %v3973
        %4486 = vst [vmem:[%s245 + $0x460] sm:$0xff] %v3974
        %4487 = vst [vmem:[%s245 + $0x468] sm:$0xff] %v3975
        %4488 = vst [vmem:[%s245 + $0x470] sm:$0xff] %v3976
        %4489 = vst [vmem:[%s245 + $0x478] sm:$0xff] %v3977
        %4490 = vst [vmem:[%s245 + $0x480] sm:$0xff] %v3978
        %4491 = vst [vmem:[%s245 + $0x488] sm:$0xff] %v3979
        %4492 = vst [vmem:[%s245 + $0x490] sm:$0xff] %v3980
        %4493 = vst [vmem:[%s245 + $0x498] sm:$0xff] %v3981
        %4494 = vst [vmem:[%s245 + $0x4a0] sm:$0xff] %v3982
        %4495 = vst [vmem:[%s245 + $0x4a8] sm:$0xff] %v3983
        %4496 = vst [vmem:[%s245 + $0x4b0] sm:$0xff] %v3984
        %4497 = vst [vmem:[%s245 + $0x4b8] sm:$0xff] %v3985
        %4498 = vst [vmem:[%s245 + $0x4c0] sm:$0xff] %v3986
        %4499 = vst [vmem:[%s245 + $0x4c8] sm:$0xff] %v3987
        %4500 = vst [vmem:[%s245 + $0x4d0] sm:$0xff] %v3988
        %4501 = vst [vmem:[%s245 + $0x4d8] sm:$0xff] %v3989
        %4502 = vst [vmem:[%s245 + $0x4e0] sm:$0xff] %v3990
        %4503 = vst [vmem:[%s245 + $0x4e8] sm:$0xff] %v3991
        %4504 = vst [vmem:[%s245 + $0x4f0] sm:$0xff] %v3992
        %4505 = vst [vmem:[%s245 + $0x4f8] sm:$0xff] %v3993
        %4506 = vst [vmem:[%s245 + $0x500] sm:$0xff] %v3994
        %4507 = vst [vmem:[%s245 + $0x508] sm:$0xff] %v3995
        %4508 = vst [vmem:[%s245 + $0x510] sm:$0xff] %v3996
        %4509 = vst [vmem:[%s245 + $0x518] sm:$0xff] %v3997
        %4510 = vst [vmem:[%s245 + $0x520] sm:$0xff] %v3998
        %4511 = vst [vmem:[%s245 + $0x528] sm:$0xff] %v3999
        %4512 = vst [vmem:[%s245 + $0x530] sm:$0xff] %v4000
        %4513 = vst [vmem:[%s245 + $0x538] sm:$0xff] %v4001
        %4514 = vst [vmem:[%s245 + $0x540] sm:$0xff] %v4002
        %4515 = vst [vmem:[%s245 + $0x548] sm:$0xff] %v4003
        %4516 = vst [vmem:[%s245 + $0x550] sm:$0xff] %v4004
        %4517 = vst [vmem:[%s245 + $0x558] sm:$0xff] %v4005
        %4518 = vst [vmem:[%s245 + $0x560] sm:$0xff] %v4006
        %4519 = vst [vmem:[%s245 + $0x568] sm:$0xff] %v4007
        %4520 = vst [vmem:[%s245 + $0x570] sm:$0xff] %v4008
        %4521 = vst [vmem:[%s245 + $0x578] sm:$0xff] %v4009
        %4522 = vst [vmem:[%s245 + $0x580] sm:$0xff] %v4010
        %4523 = vst [vmem:[%s245 + $0x588] sm:$0xff] %v4011
        %4524 = vst [vmem:[%s245 + $0x590] sm:$0xff] %v4012
        %4525 = vst [vmem:[%s245 + $0x598] sm:$0xff] %v4013
        %4526 = vst [vmem:[%s245 + $0x5a0] sm:$0xff] %v4014
        %4527 = vst [vmem:[%s245 + $0x5a8] sm:$0xff] %v4015
        %4528 = vst [vmem:[%s245 + $0x5b0] sm:$0xff] %v4016
        %4529 = vst [vmem:[%s245 + $0x5b8] sm:$0xff] %v4017
        %4530 = vst [vmem:[%s245 + $0x5c0] sm:$0xff] %v4018
        %4531 = vst [vmem:[%s245 + $0x5c8] sm:$0xff] %v4019
        %4532 = vst [vmem:[%s245 + $0x5d0] sm:$0xff] %v4020
        %4533 = vst [vmem:[%s245 + $0x5d8] sm:$0xff] %v4021
        %4534 = vst [vmem:[%s245 + $0x5e0] sm:$0xff] %v4022
        %4535 = vst [vmem:[%s245 + $0x5e8] sm:$0xff] %v4023
        %4536 = vst [vmem:[%s245 + $0x5f0] sm:$0xff] %v4024
        %4537 = vst [vmem:[%s245 + $0x5f8] sm:$0xff] %v4025
        %4538 = vst [vmem:[%s245 + $0x600] sm:$0xff] %v4026
        %4539 = vst [vmem:[%s245 + $0x608] sm:$0xff] %v4027
        %4540 = vst [vmem:[%s245 + $0x610] sm:$0xff] %v4028
        %4541 = vst [vmem:[%s245 + $0x618] sm:$0xff] %v4029
        %4542 = vst [vmem:[%s245 + $0x620] sm:$0xff] %v4030
        %4543 = vst [vmem:[%s245 + $0x628] sm:$0xff] %v4031
        %4544 = vst [vmem:[%s245 + $0x630] sm:$0xff] %v4032
        %4545 = vst [vmem:[%s245 + $0x638] sm:$0xff] %v4033
        %4546 = vst [vmem:[%s245 + $0x640] sm:$0xff] %v4034
        %4547 = vst [vmem:[%s245 + $0x648] sm:$0xff] %v4035
        %4548 = vst [vmem:[%s245 + $0x650] sm:$0xff] %v4036
        %4549 = vst [vmem:[%s245 + $0x658] sm:$0xff] %v4037
        %4550 = vst [vmem:[%s245 + $0x660] sm:$0xff] %v4038
        %4551 = vst [vmem:[%s245 + $0x668] sm:$0xff] %v4039
        %4552 = vst [vmem:[%s245 + $0x670] sm:$0xff] %v4040
        %4553 = vst [vmem:[%s245 + $0x678] sm:$0xff] %v4041
        %4554 = vst [vmem:[%s245 + $0x680] sm:$0xff] %v4042
        %4555 = vst [vmem:[%s245 + $0x688] sm:$0xff] %v4043
        %4556 = vst [vmem:[%s245 + $0x690] sm:$0xff] %v4044
        %4557 = vst [vmem:[%s245 + $0x698] sm:$0xff] %v4045
        %4558 = vst [vmem:[%s245 + $0x6a0] sm:$0xff] %v4046
        %4559 = vst [vmem:[%s245 + $0x6a8] sm:$0xff] %v4047
        %4560 = vst [vmem:[%s245 + $0x6b0] sm:$0xff] %v4048
        %4561 = vst [vmem:[%s245 + $0x6b8] sm:$0xff] %v4049
        %4562 = vst [vmem:[%s245 + $0x6c0] sm:$0xff] %v4050
        %4563 = vst [vmem:[%s245 + $0x6c8] sm:$0xff] %v4051
        %4564 = vst [vmem:[%s245 + $0x6d0] sm:$0xff] %v4052
        %4565 = vst [vmem:[%s245 + $0x6d8] sm:$0xff] %v4053
        %4566 = vst [vmem:[%s245 + $0x6e0] sm:$0xff] %v4054
        %4567 = vst [vmem:[%s245 + $0x6e8] sm:$0xff] %v4055
        %4568 = vst [vmem:[%s245 + $0x6f0] sm:$0xff] %v4056
        %4569 = vst [vmem:[%s245 + $0x6f8] sm:$0xff] %v4057
        %4570 = vst [vmem:[%s245 + $0x700] sm:$0xff] %v4058
        %4571 = vst [vmem:[%s245 + $0x708] sm:$0xff] %v4059
        %4572 = vst [vmem:[%s245 + $0x710] sm:$0xff] %v4060
        %4573 = vst [vmem:[%s245 + $0x718] sm:$0xff] %v4061
        %4574 = vst [vmem:[%s245 + $0x720] sm:$0xff] %v4062
        %4575 = vst [vmem:[%s245 + $0x728] sm:$0xff] %v4063
        %4576 = vst [vmem:[%s245 + $0x730] sm:$0xff] %v4064
        %4577 = vst [vmem:[%s245 + $0x738] sm:$0xff] %v4065
        %4578 = vst [vmem:[%s245 + $0x740] sm:$0xff] %v4066
        %4579 = vst [vmem:[%s245 + $0x748] sm:$0xff] %v4067
        %4580 = vst [vmem:[%s245 + $0x750] sm:$0xff] %v4068
        %4581 = vst [vmem:[%s245 + $0x758] sm:$0xff] %v4069
        %4582 = vst [vmem:[%s245 + $0x760] sm:$0xff] %v4070
        %4583 = vst [vmem:[%s245 + $0x768] sm:$0xff] %v4071
        %4584 = vst [vmem:[%s245 + $0x770] sm:$0xff] %v4072
        %4585 = vst [vmem:[%s245 + $0x778] sm:$0xff] %v4073
        %4586 = vst [vmem:[%s245 + $0x780] sm:$0xff] %v4074
        %4587 = vst [vmem:[%s245 + $0x788] sm:$0xff] %v4075
        %4588 = vst [vmem:[%s245 + $0x790] sm:$0xff] %v4076
        %4589 = vst [vmem:[%s245 + $0x798] sm:$0xff] %v4077
        %4590 = vst [vmem:[%s245 + $0x7a0] sm:$0xff] %v4078
        %4591 = vst [vmem:[%s245 + $0x7a8] sm:$0xff] %v4079
        %4592 = vst [vmem:[%s245 + $0x7b0] sm:$0xff] %v4080
        %4593 = vst [vmem:[%s245 + $0x7b8] sm:$0xff] %v4081
        %4594 = vst [vmem:[%s245 + $0x7c0] sm:$0xff] %v4082
        %4595 = vst [vmem:[%s245 + $0x7c8] sm:$0xff] %v4083
        %4596 = vst [vmem:[%s245 + $0x7d0] sm:$0xff] %v4084
        %4597 = vst [vmem:[%s245 + $0x7d8] sm:$0xff] %v4085
        %4598 = vst [vmem:[%s245 + $0x7e0] sm:$0xff] %v4086
        %4599 = vst [vmem:[%s245 + $0x7e8] sm:$0xff] %v4087
        %4600 = vst [vmem:[%s245 + $0x7f0] sm:$0xff] %v4088
        %4601 = vst [vmem:[%s245 + $0x7f8] sm:$0xff] %v4089
        %4602 = vst [vmem:[%s245 + $0x800] sm:$0xff] %v4090
        %4603 = vst [vmem:[%s245 + $0x808] sm:$0xff] %v4091
        %4604 = vst [vmem:[%s245 + $0x810] sm:$0xff] %v4092
        %4605 = vst [vmem:[%s245 + $0x818] sm:$0xff] %v4093
        %4606 = vst [vmem:[%s245 + $0x820] sm:$0xff] %v4094
        %4607 = vst [vmem:[%s245 + $0x828] sm:$0xff] %v4095
        %4608 = vst [vmem:[%s245 + $0x830] sm:$0xff] %v4096
        %4609 = vst [vmem:[%s245 + $0x838] sm:$0xff] %v4097
        %4610 = vst [vmem:[%s245 + $0x840] sm:$0xff] %v4098
        %4611 = vst [vmem:[%s245 + $0x848] sm:$0xff] %v4099
        %4612 = vst [vmem:[%s245 + $0x850] sm:$0xff] %v4100
        %4613 = vst [vmem:[%s245 + $0x858] sm:$0xff] %v4101
        %4614 = vst [vmem:[%s245 + $0x860] sm:$0xff] %v4102
        %4615 = vst [vmem:[%s245 + $0x868] sm:$0xff] %v4103
        %4616 = vst [vmem:[%s245 + $0x870] sm:$0xff] %v4104
        %4617 = vst [vmem:[%s245 + $0x878] sm:$0xff] %v4105
        %4618 = vst [vmem:[%s245 + $0x880] sm:$0xff] %v4106
        %4619 = vst [vmem:[%s245 + $0x888] sm:$0xff] %v4107
        %4620 = vst [vmem:[%s245 + $0x890] sm:$0xff] %v4108
        %4621 = vst [vmem:[%s245 + $0x898] sm:$0xff] %v4109
        %4622 = vst [vmem:[%s245 + $0x8a0] sm:$0xff] %v4110
        %4623 = vst [vmem:[%s245 + $0x8a8] sm:$0xff] %v4111
        %4624 = vst [vmem:[%s245 + $0x8b0] sm:$0xff] %v4112
        %4625 = vst [vmem:[%s245 + $0x8b8] sm:$0xff] %v4113
        %4626 = vst [vmem:[%s245 + $0x8c0] sm:$0xff] %v4114
        %4627 = vst [vmem:[%s245 + $0x8c8] sm:$0xff] %v4115
        %4628 = vst [vmem:[%s245 + $0x8d0] sm:$0xff] %v4116
        %4629 = vst [vmem:[%s245 + $0x8d8] sm:$0xff] %v4117
        %4630 = vst [vmem:[%s245 + $0x8e0] sm:$0xff] %v4118
        %4631 = vst [vmem:[%s245 + $0x8e8] sm:$0xff] %v4119
        %4632 = vst [vmem:[%s245 + $0x8f0] sm:$0xff] %v4120
        %4633 = vst [vmem:[%s245 + $0x8f8] sm:$0xff] %v4121
        %4634 = vst [vmem:[%s245 + $0x900] sm:$0xff] %v4122
        %4635 = vst [vmem:[%s245 + $0x908] sm:$0xff] %v4123
        %4636 = vst [vmem:[%s245 + $0x910] sm:$0xff] %v4124
        %4637 = vst [vmem:[%s245 + $0x918] sm:$0xff] %v4125
        %4638 = vst [vmem:[%s245 + $0x920] sm:$0xff] %v4126
        %4639 = vst [vmem:[%s245 + $0x928] sm:$0xff] %v4127
        %4640 = vst [vmem:[%s245 + $0x930] sm:$0xff] %v4128
        %4641 = vst [vmem:[%s245 + $0x938] sm:$0xff] %v4129
        %4642 = vst [vmem:[%s245 + $0x940] sm:$0xff] %v4130
        %4643 = vst [vmem:[%s245 + $0x948] sm:$0xff] %v4131
        %4644 = vst [vmem:[%s245 + $0x950] sm:$0xff] %v4132
        %4645 = vst [vmem:[%s245 + $0x958] sm:$0xff] %v4133
        %4646 = vst [vmem:[%s245 + $0x960] sm:$0xff] %v4134
        %4647 = vst [vmem:[%s245 + $0x968] sm:$0xff] %v4135
        %4648 = vst [vmem:[%s245 + $0x970] sm:$0xff] %v4136
        %4649 = vst [vmem:[%s245 + $0x978] sm:$0xff] %v4137
        %4650 = vst [vmem:[%s245 + $0x980] sm:$0xff] %v4138
        %4651 = vst [vmem:[%s245 + $0x988] sm:$0xff] %v4139
        %4652 = vst [vmem:[%s245 + $0x990] sm:$0xff] %v4140
        %4653 = vst [vmem:[%s245 + $0x998] sm:$0xff] %v4141
        %4654 = vst [vmem:[%s245 + $0x9a0] sm:$0xff] %v4142
        %4655 = vst [vmem:[%s245 + $0x9a8] sm:$0xff] %v4143
        %4656 = vst [vmem:[%s245 + $0x9b0] sm:$0xff] %v4144
        %4657 = vst [vmem:[%s245 + $0x9b8] sm:$0xff] %v4145
        %4658 = vst [vmem:[%s245 + $0x9c0] sm:$0xff] %v4146
        %4659 = vst [vmem:[%s245 + $0x9c8] sm:$0xff] %v4147
        %4660 = vst [vmem:[%s245 + $0x9d0] sm:$0xff] %v4148
        %4661 = vst [vmem:[%s245 + $0x9d8] sm:$0xff] %v4149
        %4662 = vst [vmem:[%s245 + $0x9e0] sm:$0xff] %v4150
        %4663 = vst [vmem:[%s245 + $0x9e8] sm:$0xff] %v4151
        %4664 = vst [vmem:[%s245 + $0x9f0] sm:$0xff] %v4152
        %4665 = vst [vmem:[%s245 + $0x9f8] sm:$0xff] %v4153
        %4666 = vst [vmem:[%s245 + $0xa00] sm:$0xff] %v4154
        %4667 = vst [vmem:[%s245 + $0xa08] sm:$0xff] %v4155
        %4668 = vst [vmem:[%s245 + $0xa10] sm:$0xff] %v4156
        %4669 = vst [vmem:[%s245 + $0xa18] sm:$0xff] %v4157
        %4670 = vst [vmem:[%s245 + $0xa20] sm:$0xff] %v4158
        %4671 = vst [vmem:[%s245 + $0xa28] sm:$0xff] %v4159
        %4672 = vst [vmem:[%s245 + $0xa30] sm:$0xff] %v4160
        %4673 = vst [vmem:[%s245 + $0xa38] sm:$0xff] %v4161
        %4674 = vst [vmem:[%s245 + $0xa40] sm:$0xff] %v4162
        %4675 = vst [vmem:[%s245 + $0xa48] sm:$0xff] %v4163
        %4676 = vst [vmem:[%s245 + $0xa50] sm:$0xff] %v4164
        %4677 = vst [vmem:[%s245 + $0xa58] sm:$0xff] %v4165
        %4678 = vst [vmem:[%s245 + $0xa60] sm:$0xff] %v4166
        %4679 = vst [vmem:[%s245 + $0xa68] sm:$0xff] %v4167
        %4680 = vst [vmem:[%s245 + $0xa70] sm:$0xff] %v4168
        %4681 = vst [vmem:[%s245 + $0xa78] sm:$0xff] %v4169
        %4682 = vst [vmem:[%s245 + $0xa80] sm:$0xff] %v4170
        %4683 = vst [vmem:[%s245 + $0xa88] sm:$0xff] %v4171
        %4684 = vst [vmem:[%s245 + $0xa90] sm:$0xff] %v4172
        %4685 = vst [vmem:[%s245 + $0xa98] sm:$0xff] %v4173
        %4686 = vst [vmem:[%s245 + $0xaa0] sm:$0xff] %v4174
        %4687 = vst [vmem:[%s245 + $0xaa8] sm:$0xff] %v4175
        %4688 = vst [vmem:[%s245 + $0xab0] sm:$0xff] %v4176
        %4689 = vst [vmem:[%s245 + $0xab8] sm:$0xff] %v4177
        %4690 = vst [vmem:[%s245 + $0xac0] sm:$0xff] %v4178
        %4691 = vst [vmem:[%s245 + $0xac8] sm:$0xff] %v4179
        %4692 = vst [vmem:[%s245 + $0xad0] sm:$0xff] %v4180
        %4693 = vst [vmem:[%s245 + $0xad8] sm:$0xff] %v4181
        %4694 = vst [vmem:[%s245 + $0xae0] sm:$0xff] %v4182
        %4695 = vst [vmem:[%s245 + $0xae8] sm:$0xff] %v4183
        %4696 = vst [vmem:[%s245 + $0xaf0] sm:$0xff] %v4184
        %4697 = vst [vmem:[%s245 + $0xaf8] sm:$0xff] %v4185
        %4698 = vst [vmem:[%s245 + $0xb00] sm:$0xff] %v4186
        %4699 = vst [vmem:[%s245 + $0xb08] sm:$0xff] %v4187
        %4700 = vst [vmem:[%s245 + $0xb10] sm:$0xff] %v4188
        %4701 = vst [vmem:[%s245 + $0xb18] sm:$0xff] %v4189
        %4702 = vst [vmem:[%s245 + $0xb20] sm:$0xff] %v4190
        %4703 = vst [vmem:[%s245 + $0xb28] sm:$0xff] %v4191
        %4704 = vst [vmem:[%s245 + $0xb30] sm:$0xff] %v4192
        %4705 = vst [vmem:[%s245 + $0xb38] sm:$0xff] %v4193
        %4706 = vst [vmem:[%s245 + $0xb40] sm:$0xff] %v4194
        %4707 = vst [vmem:[%s245 + $0xb48] sm:$0xff] %v4195
        %4708 = vst [vmem:[%s245 + $0xb50] sm:$0xff] %v4196
        %4709 = vst [vmem:[%s245 + $0xb58] sm:$0xff] %v4197
        %4710 = vst [vmem:[%s245 + $0xb60] sm:$0xff] %v4198
        %4711 = vst [vmem:[%s245 + $0xb68] sm:$0xff] %v4199
        %4712 = vst [vmem:[%s245 + $0xb70] sm:$0xff] %v4200
        %4713 = vst [vmem:[%s245 + $0xb78] sm:$0xff] %v4201
        %4714 = vst [vmem:[%s245 + $0xb80] sm:$0xff] %v4202
        %4715 = vst [vmem:[%s245 + $0xb88] sm:$0xff] %v4203
        %4716 = vst [vmem:[%s245 + $0xb90] sm:$0xff] %v4204
        %4717 = vst [vmem:[%s245 + $0xb98] sm:$0xff] %v4205
        %4718 = vst [vmem:[%s245 + $0xba0] sm:$0xff] %v4206
        %4719 = vst [vmem:[%s245 + $0xba8] sm:$0xff] %v4207
        %4720 = vst [vmem:[%s245 + $0xbb0] sm:$0xff] %v4208
        %4721 = vst [vmem:[%s245 + $0xbb8] sm:$0xff] %v4209
        %4722 = vst [vmem:[%s245 + $0xbc0] sm:$0xff] %v4210
        %4723 = vst [vmem:[%s245 + $0xbc8] sm:$0xff] %v4211
        %4724 = vst [vmem:[%s245 + $0xbd0] sm:$0xff] %v4212
        %4725 = vst [vmem:[%s245 + $0xbd8] sm:$0xff] %v4213
        %4726 = vst [vmem:[%s245 + $0xbe0] sm:$0xff] %v4214
        %4727 = vst [vmem:[%s245 + $0xbe8] sm:$0xff] %v4215
        %4728 = vst [vmem:[%s245 + $0xbf0] sm:$0xff] %v4216
        %4729 = vst [vmem:[%s245 + $0xbf8] sm:$0xff] %v4217
        %4730 = vst [vmem:[%s245 + $0xc00] sm:$0xff] %v4218
        %4731 = vst [vmem:[%s245 + $0xc08] sm:$0xff] %v4219
        %4732 = vst [vmem:[%s245 + $0xc10] sm:$0xff] %v4220
        %4733 = vst [vmem:[%s245 + $0xc18] sm:$0xff] %v4221
        %4734 = vst [vmem:[%s245 + $0xc20] sm:$0xff] %v4222
        %4735 = vst [vmem:[%s245 + $0xc28] sm:$0xff] %v4223
        %4736 = vst [vmem:[%s245 + $0xc30] sm:$0xff] %v4224
        %4737 = vst [vmem:[%s245 + $0xc38] sm:$0xff] %v4225
        %4738 = vst [vmem:[%s245 + $0xc40] sm:$0xff] %v4226
        %4739 = vst [vmem:[%s245 + $0xc48] sm:$0xff] %v4227
        %4740 = vst [vmem:[%s245 + $0xc50] sm:$0xff] %v4228
        %4741 = vst [vmem:[%s245 + $0xc58] sm:$0xff] %v4229
        %4742 = vst [vmem:[%s245 + $0xc60] sm:$0xff] %v4230
        %4743 = vst [vmem:[%s245 + $0xc68] sm:$0xff] %v4231
        %4744 = vst [vmem:[%s245 + $0xc70] sm:$0xff] %v4232
        %4745 = vst [vmem:[%s245 + $0xc78] sm:$0xff] %v4233
        %4746 = vst [vmem:[%s245 + $0xc80] sm:$0xff] %v4234
        %4747 = vst [vmem:[%s245 + $0xc88] sm:$0xff] %v4235
        %4748 = vst [vmem:[%s245 + $0xc90] sm:$0xff] %v4236
        %4749 = vst [vmem:[%s245 + $0xc98] sm:$0xff] %v4237
        %4750 = vst [vmem:[%s245 + $0xca0] sm:$0xff] %v4238
        %4751 = vst [vmem:[%s245 + $0xca8] sm:$0xff] %v4239
        %4752 = vst [vmem:[%s245 + $0xcb0] sm:$0xff] %v4240
        %4753 = vst [vmem:[%s245 + $0xcb8] sm:$0xff] %v4241
        %4754 = vst [vmem:[%s245 + $0xcc0] sm:$0xff] %v4242
        %4755 = vst [vmem:[%s245 + $0xcc8] sm:$0xff] %v4243
        %4756 = vst [vmem:[%s245 + $0xcd0] sm:$0xff] %v4244
        %4757 = vst [vmem:[%s245 + $0xcd8] sm:$0xff] %v4245
        %4758 = vst [vmem:[%s245 + $0xce0] sm:$0xff] %v4246
        %4759 = vst [vmem:[%s245 + $0xce8] sm:$0xff] %v4247
        %4760 = vst [vmem:[%s245 + $0xcf0] sm:$0xff] %v4248
        %4761 = vst [vmem:[%s245 + $0xcf8] sm:$0xff] %v4249
        %4762 = vst [vmem:[%s245 + $0xd00] sm:$0xff] %v4250
        %4763 = vst [vmem:[%s245 + $0xd08] sm:$0xff] %v4251
        %4764 = vst [vmem:[%s245 + $0xd10] sm:$0xff] %v4252
        %4765 = vst [vmem:[%s245 + $0xd18] sm:$0xff] %v4253
        %4766 = vst [vmem:[%s245 + $0xd20] sm:$0xff] %v4254
        %4767 = vst [vmem:[%s245 + $0xd28] sm:$0xff] %v4255
        %4768 = vst [vmem:[%s245 + $0xd30] sm:$0xff] %v4256
        %4769 = vst [vmem:[%s245 + $0xd38] sm:$0xff] %v4257
        %4770 = vst [vmem:[%s245 + $0xd40] sm:$0xff] %v4258
        %4771 = vst [vmem:[%s245 + $0xd48] sm:$0xff] %v4259
        %4772 = vst [vmem:[%s245 + $0xd50] sm:$0xff] %v4260
        %4773 = vst [vmem:[%s245 + $0xd58] sm:$0xff] %v4261
        %4774 = vst [vmem:[%s245 + $0xd60] sm:$0xff] %v4262
        %4775 = vst [vmem:[%s245 + $0xd68] sm:$0xff] %v4263
        %4776 = vst [vmem:[%s245 + $0xd70] sm:$0xff] %v4264
        %4777 = vst [vmem:[%s245 + $0xd78] sm:$0xff] %v4265
        %4778 = vst [vmem:[%s245 + $0xd80] sm:$0xff] %v4266
        %4779 = vst [vmem:[%s245 + $0xd88] sm:$0xff] %v4267
        %4780 = vst [vmem:[%s245 + $0xd90] sm:$0xff] %v4268
        %4781 = vst [vmem:[%s245 + $0xd98] sm:$0xff] %v4269
        %4782 = vst [vmem:[%s245 + $0xda0] sm:$0xff] %v4270
        %4783 = vst [vmem:[%s245 + $0xda8] sm:$0xff] %v4271
        %4784 = vst [vmem:[%s245 + $0xdb0] sm:$0xff] %v4272
        %4785 = vst [vmem:[%s245 + $0xdb8] sm:$0xff] %v4273
        %4786 = vst [vmem:[%s245 + $0xdc0] sm:$0xff] %v4274
        %4787 = vst [vmem:[%s245 + $0xdc8] sm:$0xff] %v4275
        %4788 = vst [vmem:[%s245 + $0xdd0] sm:$0xff] %v4276
        %4789 = vst [vmem:[%s245 + $0xdd8] sm:$0xff] %v4277
        %4790 = vst [vmem:[%s245 + $0xde0] sm:$0xff] %v4278
        %4791 = vst [vmem:[%s245 + $0xde8] sm:$0xff] %v4279
        %4792 = vst [vmem:[%s245 + $0xdf0] sm:$0xff] %v4280
        %4793 = vst [vmem:[%s245 + $0xdf8] sm:$0xff] %v4281
        %4794 = vst [vmem:[%s245 + $0xe00] sm:$0xff] %v4282
        %4795 = vst [vmem:[%s245 + $0xe08] sm:$0xff] %v4283
        %4796 = vst [vmem:[%s245 + $0xe10] sm:$0xff] %v4284
        %4797 = vst [vmem:[%s245 + $0xe18] sm:$0xff] %v4285
        %4798 = vst [vmem:[%s245 + $0xe20] sm:$0xff] %v4286
        %4799 = vst [vmem:[%s245 + $0xe28] sm:$0xff] %v4287
        %4800 = vst [vmem:[%s245 + $0xe30] sm:$0xff] %v4288
        %4801 = vst [vmem:[%s245 + $0xe38] sm:$0xff] %v4289
        %4802 = vst [vmem:[%s245 + $0xe40] sm:$0xff] %v4290
        %4803 = vst [vmem:[%s245 + $0xe48] sm:$0xff] %v4291
        %4804 = vst [vmem:[%s245 + $0xe50] sm:$0xff] %v4292
        %4805 = vst [vmem:[%s245 + $0xe58] sm:$0xff] %v4293
        %4806 = vst [vmem:[%s245 + $0xe60] sm:$0xff] %v4294
        %4807 = vst [vmem:[%s245 + $0xe68] sm:$0xff] %v4295
        %4808 = vst [vmem:[%s245 + $0xe70] sm:$0xff] %v4296
        %4809 = vst [vmem:[%s245 + $0xe78] sm:$0xff] %v4297
        %4810 = vst [vmem:[%s245 + $0xe80] sm:$0xff] %v4298
        %4811 = vst [vmem:[%s245 + $0xe88] sm:$0xff] %v4299
        %4812 = vst [vmem:[%s245 + $0xe90] sm:$0xff] %v4300
        %4813 = vst [vmem:[%s245 + $0xe98] sm:$0xff] %v4301
        %4814 = vst [vmem:[%s245 + $0xea0] sm:$0xff] %v4302
        %4815 = vst [vmem:[%s245 + $0xea8] sm:$0xff] %v4303
        %4816 = vst [vmem:[%s245 + $0xeb0] sm:$0xff] %v4304
        %4817 = vst [vmem:[%s245 + $0xeb8] sm:$0xff] %v4305
        %4818 = vst [vmem:[%s245 + $0xec0] sm:$0xff] %v4306
        %4819 = vst [vmem:[%s245 + $0xec8] sm:$0xff] %v4307
        %4820 = vst [vmem:[%s245 + $0xed0] sm:$0xff] %v4308
        %4821 = vst [vmem:[%s245 + $0xed8] sm:$0xff] %v4309
        %4822 = vst [vmem:[%s245 + $0xee0] sm:$0xff] %v4310
        %4823 = vst [vmem:[%s245 + $0xee8] sm:$0xff] %v4311
        %4824 = vst [vmem:[%s245 + $0xef0] sm:$0xff] %v4312
        %4825 = vst [vmem:[%s245 + $0xef8] sm:$0xff] %v4313
        %4826 = vst [vmem:[%s245 + $0xf00] sm:$0xff] %v4314
        %4827 = vst [vmem:[%s245 + $0xf08] sm:$0xff] %v4315
        %4828 = vst [vmem:[%s245 + $0xf10] sm:$0xff] %v4316
        %4829 = vst [vmem:[%s245 + $0xf18] sm:$0xff] %v4317
        %4830 = vst [vmem:[%s245 + $0xf20] sm:$0xff] %v4318
        %4831 = vst [vmem:[%s245 + $0xf28] sm:$0xff] %v4319
        %4832 = vst [vmem:[%s245 + $0xf30] sm:$0xff] %v4320
        %4833 = vst [vmem:[%s245 + $0xf38] sm:$0xff] %v4321
        %4834 = vst [vmem:[%s245 + $0xf40] sm:$0xff] %v4322
        %4835 = vst [vmem:[%s245 + $0xf48] sm:$0xff] %v4323
        %4836 = vst [vmem:[%s245 + $0xf50] sm:$0xff] %v4324
        %4837 = vst [vmem:[%s245 + $0xf58] sm:$0xff] %v4325
        %4838 = vst [vmem:[%s245 + $0xf60] sm:$0xff] %v4326
        %4839 = vst [vmem:[%s245 + $0xf68] sm:$0xff] %v4327
        %4840 = vst [vmem:[%s245 + $0xf70] sm:$0xff] %v4328
        %4841 = vst [vmem:[%s245 + $0xf78] sm:$0xff] %v4329
        %4842 = vst [vmem:[%s245 + $0xf80] sm:$0xff] %v4330
        %4843 = vst [vmem:[%s245 + $0xf88] sm:$0xff] %v4331
        %4844 = vst [vmem:[%s245 + $0xf90] sm:$0xff] %v4332
        %4845 = vst [vmem:[%s245 + $0xf98] sm:$0xff] %v4333
        %4846 = vst [vmem:[%s245 + $0xfa0] sm:$0xff] %v4334
        %4847 = vst [vmem:[%s245 + $0xfa8] sm:$0xff] %v4335
        %4848 = vst [vmem:[%s245 + $0xfb0] sm:$0xff] %v4336
        %4849 = vst [vmem:[%s245 + $0xfb8] sm:$0xff] %v4337
        %4850 = vst [vmem:[%s245 + $0xfc0] sm:$0xff] %v4338
        %4851 = vst [vmem:[%s245 + $0xfc8] sm:$0xff] %v4339
        %4852 = vst [vmem:[%s245 + $0xfd0] sm:$0xff] %v4340
        %4853 = vst [vmem:[%s245 + $0xfd8] sm:$0xff] %v4341
        %4854 = vst [vmem:[%s245 + $0xfe0] sm:$0xff] %v4342
        %4855 = vst [vmem:[%s245 + $0xfe8] sm:$0xff] %v4343
        %4856 = vst [vmem:[%s245 + $0xff0] sm:$0xff] %v4344
        %4857 = vst [vmem:[%s245 + $0xff8] sm:$0xff] %v4345
        %s4858 = sand.u32 %s87, 1
        %s4859 = scalar_lea.sflag [#allocation4], %s4858
        %s4860 = sand.u32 %s87, 1
        %s4861 = smul.addr %s4860, 4096
        %s4862 = scalar_lea.vmem [#allocation7], %s4861
        %s4863 = sand.u32 %s113, 1
        %s4864 = scalar_lea.sflag [#allocation9], %s4863
        %s4865 = sand.u32 %s113, 1
        %s4866 = smul.addr %s4865, 4096
        %s4867 = scalar_lea.vmem [#allocation8], %s4866
        // Predicated region
        $region37: #{tpu_custom_call.1} parent=27 // pred_check
          %p4868 = pneg %p97
        $region38: #{tpu_custom_call.1} parent=27 // pred_check_branch
          %4870 = sbr.rel (%p4868) target = $region40
        $region39: #{tpu_custom_call.1} parent=27 // pred_region
          %s4871 = smul.u32 128, %s27
          %4873 = vsyncadd %s4859, 0
          %s4874 = smul.addr %s4871, 4
          %s4875 = smul.addr %s4874, 8
          %s4876 = scalar_lea.hbm %s2, %s4875
          %s4877 = sshll.u32 %s4862, 4
          %s4878 = int_to_ptr.vmem [resolvable:$true] %s4877
          %s4879 = sshll.u32 %s4876, 4
          %s4880 = int_to_ptr.hbm [resolvable:$true] %s4879
          %4885 = dma.vmem_to_hbm [thread:$0]  %s4878, 65536, %s4880, %s4859, 512, 512, 32
        $region40: #{tpu_custom_call.1} parent=27 // pred_fallthru
          _
        // Predicated region
        $region41: #{tpu_custom_call.1} parent=27 // pred_check
          %p4886 = pneg %p123
        $region42: #{tpu_custom_call.1} parent=27 // pred_check_branch
          %4888 = sbr.rel (%p4886) target = $region44
        $region43: #{tpu_custom_call.1} parent=27 // pred_region
          %s4889 = smul.u32 128, %s27
          %4891 = vsyncadd %s4864, 0
          %s4892 = smul.addr %s4889, 4
          %s4893 = smul.addr %s4892, 8
          %s4894 = scalar_lea.hbm %s3, %s4893
          %s4895 = sshll.u32 %s4867, 4
          %s4896 = int_to_ptr.vmem [resolvable:$true] %s4895
          %s4897 = sshll.u32 %s4894, 4
          %s4898 = int_to_ptr.hbm [resolvable:$true] %s4897
          %4903 = dma.vmem_to_hbm [thread:$0]  %s4896, 65536, %s4898, %s4864, 512, 512, 32
        $region44: #{tpu_custom_call.1} parent=27 // pred_fallthru
          _
      $region28: #{tpu_custom_call.1} parent=5 // pred_fallthru
        _
      %p4904 = scmp.le.s32.totalorder 2, %s22
      // Predicated region
      $region45: #{tpu_custom_call.1} parent=5 // pred_check
        %p4905 = pneg %p4904
      $region46: #{tpu_custom_call.1} parent=5 // pred_check_branch
        %4907 = sbr.rel (%p4905) target = $region48
      $region47: #{tpu_custom_call.1} parent=5 // pred_region
        %s4908 = ssub.s32 %s22, 2
        // Predicated region
        $region49: #{tpu_custom_call.1} parent=47 // pred_check
          %p4909 = pneg %p103
        $region50: #{tpu_custom_call.1} parent=47 // pred_check_branch
          %4911 = sbr.rel (%p4909) target = $region52
        $region51: #{tpu_custom_call.1} parent=47 // pred_region
          %s4912 = sand.u32 %s88, 1
          %s4913 = scalar_lea.sflag [#allocation4], %s4912
          %s4914 = sand.u32 %s88, 1
          %s4915 = smul.addr %s4914, 4096
          %s4916 = scalar_lea.vmem [#allocation7], %s4915
          %4918 = dma.done %s4913, 65536
        $region52: #{tpu_custom_call.1} parent=47 // pred_fallthru
          _
        // Predicated region
        $region53: #{tpu_custom_call.1} parent=47 // pred_check
          %p4919 = pneg %p129
        $region54: #{tpu_custom_call.1} parent=47 // pred_check_branch
          %4921 = sbr.rel (%p4919) target = $region56
        $region55: #{tpu_custom_call.1} parent=47 // pred_region
          %s4922 = sand.u32 %s114, 1
          %s4923 = scalar_lea.sflag [#allocation9], %s4922
          %s4924 = sand.u32 %s114, 1
          %s4925 = smul.addr %s4924, 4096
          %s4926 = scalar_lea.vmem [#allocation8], %s4925
          %4928 = dma.done %s4923, 65536
        $region56: #{tpu_custom_call.1} parent=47 // pred_fallthru
          _
      $region48: #{tpu_custom_call.1} parent=5 // pred_fallthru
        _
    $region6: #{tpu_custom_call.1} parent=1 // loop_footer
      %s26 = sadd.s32 1, %s22
    $region7: #{tpu_custom_call.1} parent=1 // loop_footer_branch
      %21 = sbr.rel target = $region3
    $region8: #{tpu_custom_call.1} parent=1 // loop_exit
      _
    %4929 = vsyncpa [#allocation3], 1
    %s4930 = scalar_lea.sflag [#allocation3], 1
    %4931 = vsyncpa %s4930, 1
    %4932 = vsyncpa [#allocation6], 1
    %s4933 = scalar_lea.sflag [#allocation6], 1
    %4934 = vsyncpa %s4933, 1
    %4935 = vsyncpa [#allocation4], 1
    %s4936 = scalar_lea.sflag [#allocation4], 1
    %4937 = vsyncpa %s4936, 1
    %4938 = vsyncpa [#allocation9], 1
    %s4939 = scalar_lea.sflag [#allocation9], 1
    %4940 = vsyncpa %s4939, 1

</llo_original>
